<compile_context>
chip_gen: v5e
topology: v5e:2x2
jax: 0.10.0
libtpu: 0.0.40
codegen_flags: <defaults>
</compile_context>

<pallas_src>
import functools

import jax
import jax.numpy as jnp
from jax.experimental import pallas as pl
from jax.experimental.pallas import tpu as pltpu


# ---------------------------------------------------------------------------
# Pallas kernels
# ---------------------------------------------------------------------------

def _gru_layer_kernel(x_ref, wih_ref, bih_ref, whh_ref, bhh_ref, o_ref,
                      gi_scr, *, B, T, H, bidir_input):
    """One direction of a bidirectional GRU layer (grid axis 0 = direction).

    Kernel views (direction dim of weights squeezed by the BlockSpecs):
      x_ref  : (T*B, K)      flat input features            (bidir_input=False)
               (2, T*B, H)   previous layer's bidir output  (bidir_input=True)
      wih_ref: (K, 3H)       input weights, gates packed along lanes (r|z|n)
      bih_ref: (1, 3H)
      whh_ref: (H, 3H)       hidden weights, gates packed along lanes (r|z|n)
      bhh_ref: (1, 3H)
      o_ref  : (T*B, H)      this direction's hidden states (time-major rows)
      gi_scr : (T*B, 3H)     all-timestep input projections (VMEM scratch)
    """
    d = pl.program_id(0)                      # 0 = forward, 1 = backward

    # ---- input projection for all timesteps / all gates: ONE matmul -------
    if bidir_input:
        x = jnp.concatenate([x_ref[0], x_ref[1]], axis=-1)        # (T*B, 2H)
    else:
        x = x_ref[...]                                            # (T*B, K)
    gi_scr[...] = (jnp.dot(x, wih_ref[...],
                           preferred_element_type=jnp.float32) + bih_ref[...])

    whh = whh_ref[...]                                            # (H, 3H)
    bhh = bhh_ref[...]                                            # (1, 3H)

    # ---- recurrence: fully unrolled in-kernel time loop (T static, small) -
    h = jnp.zeros((B, H), jnp.float32)
    for t in range(T):
        row = jnp.where(d == 0, t, T - 1 - t) * B                 # time row
        gi = gi_scr[pl.ds(row, B), :]                             # (B, 3H)
        gh = jnp.dot(h, whh, preferred_element_type=jnp.float32) + bhh
        r = jax.nn.sigmoid(gi[:, 0:H] + gh[:, 0:H])
        z = jax.nn.sigmoid(gi[:, H:2 * H] + gh[:, H:2 * H])
        n = jnp.tanh(gi[:, 2 * H:3 * H] + r * gh[:, 2 * H:3 * H])
        h = (1.0 - z) * n + z * h
        o_ref[pl.ds(row, B), :] = h


def _heads_kernel(h_ref, w1_ref, b1_ref, w2_ref, b2_ref, ev_ref, doa_ref,
                  *, n_classes):
    """Fused event / x / y / z FC heads (2 matmul "layers" total).

    h_ref  : (2, T*B, H)           bidirectional GRU output (dir-major)
    w1_ref : (2, H, 4*Hm)          fc_1 weights of the 4 heads stacked along
                                   lanes; leading dim = fwd/bwd input halves
    b1_ref : (1, 4*Hm)
    w2_ref : (4*Hm, 4*n_classes)   block-diagonal fc_2 weights
    b2_ref : (1, 4*n_classes)
    ev_ref : (T*B, n_classes)      event logits (no activation)
    doa_ref: (T*B, 3*n_classes)    tanh(x | y | z)
    """
    y1 = (jnp.dot(h_ref[0], w1_ref[0], preferred_element_type=jnp.float32)
          + jnp.dot(h_ref[1], w1_ref[1], preferred_element_type=jnp.float32)
          + b1_ref[...])
    y1 = jnp.maximum(y1, 0.0)                                     # ReLU
    y2 = jnp.dot(y1, w2_ref[...],
                 preferred_element_type=jnp.float32) + b2_ref[...]
    ev_ref[...] = y2[:, :n_classes]
    doa_ref[...] = jnp.tanh(y2[:, n_classes:])


# ---------------------------------------------------------------------------
# pallas_call wrappers
# ---------------------------------------------------------------------------

def gru_layer(x_in, wih, bih, whh, bhh, *, B, T, H, bidir_input):
    K = wih.shape[1]
    if bidir_input:
        x_spec = pl.BlockSpec((2, T * B, H), lambda d: (0, 0, 0))
    else:
        x_spec = pl.BlockSpec((T * B, K), lambda d: (0, 0))
    return pl.pallas_call(
        functools.partial(_gru_layer_kernel, B=B, T=T, H=H,
                          bidir_input=bidir_input),
        out_shape=jax.ShapeDtypeStruct((2, T * B, H), jnp.float32),
        grid_spec=pltpu.PrefetchScalarGridSpec(
            num_scalar_prefetch=0,
            grid=(2,),                      # direction axis: 0 = fwd, 1 = bwd
            in_specs=[
                x_spec,
                pl.BlockSpec((None, K, 3 * H), lambda d: (d, 0, 0)),
                pl.BlockSpec((None, 1, 3 * H), lambda d: (d, 0, 0)),
                pl.BlockSpec((None, H, 3 * H), lambda d: (d, 0, 0)),
                pl.BlockSpec((None, 1, 3 * H), lambda d: (d, 0, 0)),
            ],
            out_specs=pl.BlockSpec((None, T * B, H), lambda d: (d, 0, 0)),
            scratch_shapes=[pltpu.VMEM((T * B, 3 * H), jnp.float32)],
        ),
        compiler_params=pltpu.CompilerParams(
            dimension_semantics=("parallel",)),  # 2 TCs on v7x; serial on 1-TC
    )(x_in, wih, bih, whh, bhh)


def fc_heads(h_bidir, w1, b1, w2, b2, *, TB, n_classes):
    return pl.pallas_call(
        functools.partial(_heads_kernel, n_classes=n_classes),
        out_shape=(jax.ShapeDtypeStruct((TB, n_classes), jnp.float32),
                   jax.ShapeDtypeStruct((TB, 3 * n_classes), jnp.float32)),
    )(h_bidir, w1, b1, w2, b2)


# ---------------------------------------------------------------------------
# Parameters (PyTorch layout) and kernel-layout packing
# ---------------------------------------------------------------------------

def make_params(key, n_in, gru_size, n_classes):
    fc_size = gru_size * 2
    params = {}

    def norm(k, shape, scale):
        return scale * jax.random.normal(k, shape, dtype=jnp.float32)

    keys = iter(jax.random.split(key, 64))

    gru = []
    for layer in range(2):
        in_l = n_in if layer == 0 else 2 * gru_size
        for _direction in range(2):  # 0 = forward, 1 = backward
            s_i = 1.0 / jnp.sqrt(jnp.float32(in_l))
            s_h = 1.0 / jnp.sqrt(jnp.float32(gru_size))
            gru.append(dict(
                W_ih=norm(next(keys), (3 * gru_size, in_l), s_i),
                b_ih=norm(next(keys), (3 * gru_size,), s_i),
                W_hh=norm(next(keys), (3 * gru_size, gru_size), s_h),
                b_hh=norm(next(keys), (3 * gru_size,), s_h),
            ))
    params["gru"] = gru

    def fc(k, fan_in, fan_out):
        k1, k2 = jax.random.split(k)
        s = 1.0 / jnp.sqrt(jnp.float32(fan_in))
        return {"w": norm(k1, (fan_in, fan_out), s),   # stored as (in, out)
                "b": norm(k2, (fan_out,), 0.1)}

    params["event_fc_1"] = fc(next(keys), fc_size, fc_size // 2)
    params["event_fc_2"] = fc(next(keys), fc_size // 2, n_classes)
    for name in ("x", "y", "z"):
        params[f"{name}_fc_1"] = fc(next(keys), fc_size, fc_size // 2)
        params[f"{name}_fc_2"] = fc(next(keys), fc_size // 2, n_classes)
    return params


def pack_params(params, *, C, F, H):
    """Repack PyTorch-layout parameters into the fused-kernel layouts."""
    packed = {}
    for layer in range(2):
        wih, bih, whh, bhh = [], [], [], []
        for d in range(2):                       # 0 = forward, 1 = backward
            p = params["gru"][2 * layer + d]
            w = p["W_ih"].T                      # (K, 3H), lanes = (r|z|n)
            if layer == 0:
                # Fold the freq-average (mean over F) into the projection:
                # layer-0 input is presented as (T*B, C*F), so repeat every
                # channel row F times and scale by 1/F.
                w = jnp.repeat(w, F, axis=0) / F  # (C*F, 3H)
            wih.append(w)
            bih.append(p["b_ih"].reshape(1, 3 * H))
            whh.append(p["W_hh"].T)              # (H, 3H)
            bhh.append(p["b_hh"].reshape(1, 3 * H))
        packed[f"l{layer}"] = dict(wih=jnp.stack(wih), bih=jnp.stack(bih),
                                   whh=jnp.stack(whh), bhh=jnp.stack(bhh))

    names = ("event", "x", "y", "z")
    # fc_1: stack the 4 heads along the output (lane) dim, split fwd/bwd rows.
    w1cat = jnp.concatenate([params[f"{n}_fc_1"]["w"] for n in names], axis=1)
    packed["w1"] = jnp.stack([w1cat[:H], w1cat[H:]])            # (2, H, 4*Hm)
    packed["b1"] = jnp.concatenate(
        [params[f"{n}_fc_1"]["b"] for n in names]).reshape(1, -1)
    # fc_2: block-diagonal so all 4 heads are one matmul.
    w2_blocks = [params[f"{n}_fc_2"]["w"] for n in names]
    Hm, nc = w2_blocks[0].shape
    w2 = jnp.zeros((4 * Hm, 4 * nc), jnp.float32)
    for k, blk in enumerate(w2_blocks):
        w2 = w2.at[k * Hm:(k + 1) * Hm, k * nc:(k + 1) * nc].set(blk)
    packed["w2"] = w2                                            # (4Hm, 4nc)
    packed["b2"] = jnp.concatenate(
        [params[f"{n}_fc_2"]["b"] for n in names]).reshape(1, -1)
    return packed


# ---------------------------------------------------------------------------
# SeldDecoder forward (3 fused Pallas kernels + tiny XLA epilogue)
# ---------------------------------------------------------------------------

def seld_decoder_forward(x, packed, *, gru_size, n_classes):
    # x: (B, C, T, F)  -- same layout as the PyTorch module's input.
    B, C, T, F = x.shape
    H = gru_size

    # torch.mean(x, dim=3) + transpose(1, 2) is folded into the layer-0
    # projection weights; only present the raw input as a flat (T*B, C*F)
    # matrix (single small relayout of the network input).
    x_flat = jnp.transpose(x, (2, 0, 1, 3)).reshape(T * B, C * F)
    x_flat = x_flat.astype(jnp.float32)

    # TODO(synk): dropout layers have no effect in eval mode; train-mode
    # dropout (RNG masks) is not implemented in these kernels.
    h0 = gru_layer(x_flat, **packed["l0"], B=B, T=T, H=H, bidir_input=False)
    h1 = gru_layer(h0, **packed["l1"], B=B, T=T, H=H, bidir_input=True)

    ev, doa = fc_heads(h1, packed["w1"], packed["b1"],
                       packed["w2"], packed["b2"],
                       TB=T * B, n_classes=n_classes)

    # Tiny output-format epilogue in XLA: time-major -> (B, T, .) + time mean.
    ev = ev.reshape(T, B, n_classes)
    doa = doa.reshape(T, B, 3 * n_classes)
    return {
        "event_frame_logit": jnp.transpose(ev, (1, 0, 2)),
        "event_logit": jnp.mean(ev, axis=0),
        "doa_frame_output": jnp.transpose(doa, (1, 0, 2)),
    }


# ---------------------------------------------------------------------------
# Plain-JAX reference (PyTorch GRU semantics) for validation
# ---------------------------------------------------------------------------

def seld_decoder_reference(x, params, *, gru_size, n_classes):
    B, C, T, F = x.shape
    H = gru_size
    seq = jnp.transpose(jnp.mean(x, axis=3), (0, 2, 1))          # (B, T, C)

    def run_dir(inp, p, reverse):
        xs = inp[:, ::-1, :] if reverse else inp

        def step(h, x_t):
            gi = x_t @ p["W_ih"].T + p["b_ih"]
            gh = h @ p["W_hh"].T + p["b_hh"]
            i_r, i_z, i_n = jnp.split(gi, 3, axis=-1)
            h_r, h_z, h_n = jnp.split(gh, 3, axis=-1)
            r = jax.nn.sigmoid(i_r + h_r)
            z = jax.nn.sigmoid(i_z + h_z)
            n = jnp.tanh(i_n + r * h_n)
            h_new = (1.0 - z) * n + z * h
            return h_new, h_new

        _, ys = jax.lax.scan(step, jnp.zeros((B, H), jnp.float32),
                             jnp.swapaxes(xs, 0, 1))
        ys = jnp.swapaxes(ys, 0, 1)                              # (B, T, H)
        return ys[:, ::-1, :] if reverse else ys

    h = seq
    for layer in range(2):
        f = run_dir(h, params["gru"][2 * layer + 0], reverse=False)
        b = run_dir(h, params["gru"][2 * layer + 1], reverse=True)
        h = jnp.concatenate([f, b], axis=-1)

    def head(name, tanh_out):
        y = jnp.maximum(h @ params[f"{name}_fc_1"]["w"]
                        + params[f"{name}_fc_1"]["b"], 0.0)
        y = y @ params[f"{name}_fc_2"]["w"] + params[f"{name}_fc_2"]["b"]
        return jnp.tanh(y) if tanh_out else y

    ev = head("event", False)
    doa = jnp.concatenate([head("x", True), head("y", True), head("z", True)],
                          axis=-1)
    return {"event_frame_logit": ev,
            "event_logit": jnp.mean(ev, axis=1),
            "doa_frame_output": doa}


# ---------------------------------------------------------------------------
# Main
# ---------------------------------------------------------------------------

if __name__ == "__main__":
    # Small, module-consistent shapes.
    B, C, T, F = 2, 32, 8, 4          # n_output_channels = 32 (GRU input size)
    GRU_SIZE = 16                     # decoder_size
    N_CLASSES = 2

    key = jax.random.PRNGKey(0)
    k_x, k_p = jax.random.split(key)

    x = jax.random.normal(k_x, (B, C, T, F), dtype=jnp.float32)
    params = make_params(k_p, C, GRU_SIZE, N_CLASSES)
    packed = pack_params(params, C=C, F=F, H=GRU_SIZE)

    fwd = jax.jit(functools.partial(seld_decoder_forward,
                                    gru_size=GRU_SIZE, n_classes=N_CLASSES))
    out = jax.block_until_ready(fwd(x, packed))

    assert out["event_frame_logit"].shape == (B, T, N_CLASSES)
    assert out["event_logit"].shape == (B, N_CLASSES)
    assert out["doa_frame_output"].shape == (B, T, 3 * N_CLASSES)
    assert bool(jnp.all(jnp.isfinite(out["event_frame_logit"])))
    assert bool(jnp.all(jnp.isfinite(out["doa_frame_output"])))
    assert bool(jnp.all(jnp.abs(out["doa_frame_output"]) <= 1.0 + 1e-6))

    # Validate against a plain-JAX reference with PyTorch GRU semantics.
    with jax.default_matmul_precision("highest"):
        ref = jax.jit(functools.partial(seld_decoder_reference,
                                        gru_size=GRU_SIZE,
                                        n_classes=N_CLASSES))(x, params)
    ref = jax.block_until_ready(ref)
    for name in ("event_frame_logit", "event_logit", "doa_frame_output"):
        err = float(jnp.max(jnp.abs(out[name] - ref[name])))
        assert err < 2e-2, f"{name}: max abs diff {err}"

    print("KERNEL_OK")
</pallas_src>

<mosaic_0001>
module attributes {stable_mosaic.version = 11 : i64} {
  func.func @_gru_layer_kernel(%arg0: i32, %arg1: memref<16x128xf32, #tpu.memory_space<vmem>>, %arg2: memref<1x128x48xf32, #tpu.memory_space<vmem>>, %arg3: memref<1x1x48xf32, #tpu.memory_space<vmem>>, %arg4: memref<1x16x48xf32, #tpu.memory_space<vmem>>, %arg5: memref<1x1x48xf32, #tpu.memory_space<vmem>>, %arg6: memref<1x16x16xf32, #tpu.memory_space<vmem>>, %arg7: memref<16x48xf32, #tpu.memory_space<vmem>>) attributes {dimension_semantics = [#tpu.dimension_semantics<parallel>], iteration_bounds = array<i64: 2>, scalar_prefetch = 0 : i64, scratch_operands = 1 : i64, tpu.core_type = #tpu.core_type<tc>, window_params = [{pipeline_mode = #tpu.pipeline_mode<synchronous>, transform_indices = @transform_0, window_bounds = array<i64: 16, 128>}, {transform_indices = @transform_1, window_bounds = array<i64: 1, 128, 48>}, {transform_indices = @transform_2, window_bounds = array<i64: 1, 1, 48>}, {transform_indices = @transform_3, window_bounds = array<i64: 1, 16, 48>}, {transform_indices = @transform_4, window_bounds = array<i64: 1, 1, 48>}, {transform_indices = @transform_5, window_bounds = array<i64: 1, 16, 16>}]} {
    %c0 = arith.constant 0 : index
    %c0_0 = arith.constant 0 : index
    %0 = vector.load %arg1[%c0, %c0_0] : memref<16x128xf32, #tpu.memory_space<vmem>>, vector<16x128xf32>
    %c0_1 = arith.constant 0 : index
    %c0_2 = arith.constant 0 : index
    %c0_3 = arith.constant 0 : index
    %1 = vector.load %arg2[%c0_1, %c0_2, %c0_3] : memref<1x128x48xf32, #tpu.memory_space<vmem>>, vector<1x128x48xf32>
    %2 = vector.shape_cast %1 : vector<1x128x48xf32> to vector<128x48xf32>
    %cst = arith.constant dense<0.000000e+00> : vector<16x48xf32>
    %3 = tpu.matmul %0, %2, %cst {dimension_numbers = #tpu.dot_dimension_numbers<[1], [0], [0], [1], [0, 0, 1, 1], [], []>} : vector<16x128xf32>, vector<128x48xf32>, vector<16x48xf32> -> vector<16x48xf32>
    %c0_4 = arith.constant 0 : index
    %c0_5 = arith.constant 0 : index
    %c0_6 = arith.constant 0 : index
    %4 = vector.load %arg3[%c0_4, %c0_5, %c0_6] : memref<1x1x48xf32, #tpu.memory_space<vmem>>, vector<1x1x48xf32>
    %5 = vector.shape_cast %4 : vector<1x1x48xf32> to vector<1x48xf32>
    %6 = vector.broadcast %5 : vector<1x48xf32> to vector<16x48xf32>
    %7 = arith.addf %3, %6 : vector<16x48xf32>
    %c0_7 = arith.constant 0 : index
    %c0_8 = arith.constant 0 : index
    %8 = vector.load %arg7[%c0_7, %c0_8] : memref<16x48xf32, #tpu.memory_space<vmem>>, vector<16x48xf32>
    tpu.vector_store %arg7[%c0_7, %c0_8], %7 {strides = array<i32>} : memref<16x48xf32, #tpu.memory_space<vmem>>, vector<16x48xf32>,
    %c0_9 = arith.constant 0 : index
    %c0_10 = arith.constant 0 : index
    %c0_11 = arith.constant 0 : index
    %9 = vector.load %arg4[%c0_9, %c0_10, %c0_11] : memref<1x16x48xf32, #tpu.memory_space<vmem>>, vector<1x16x48xf32>
    %10 = vector.shape_cast %9 : vector<1x16x48xf32> to vector<16x48xf32>
    %c0_12 = arith.constant 0 : index
    %c0_13 = arith.constant 0 : index
    %c0_14 = arith.constant 0 : index
    %11 = vector.load %arg5[%c0_12, %c0_13, %c0_14] : memref<1x1x48xf32, #tpu.memory_space<vmem>>, vector<1x1x48xf32>
    %12 = vector.shape_cast %11 : vector<1x1x48xf32> to vector<1x48xf32>
    %cst_15 = arith.constant 0.000000e+00 : f32
    %13 = vector.broadcast %cst_15 : f32 to vector<2x16xf32>
    %c0_i32 = arith.constant 0 : i32
    %14 = arith.cmpi eq, %arg0, %c0_i32 : i32
    %c0_i32_16 = arith.constant 0 : i32
    %c7_i32 = arith.constant 7 : i32
    %15 = arith.select %14, %c0_i32_16, %c7_i32 : i32
    %c2_i32 = arith.constant 2 : i32
    %16 = arith.muli %15, %c2_i32 : i32
    %17 = arith.index_cast %16 : i32 to index
    %c0_17 = arith.constant 0 : index
    %18 = vector.load %arg7[%17, %c0_17] : memref<16x48xf32, #tpu.memory_space<vmem>>, vector<2x48xf32>
    %cst_18 = arith.constant dense<0.000000e+00> : vector<2x48xf32>
    %19 = tpu.matmul %13, %10, %cst_18 {dimension_numbers = #tpu.dot_dimension_numbers<[1], [0], [0], [1], [0, 0, 1, 1], [], []>} : vector<2x16xf32>, vector<16x48xf32>, vector<2x48xf32> -> vector<2x48xf32>
    %20 = vector.broadcast %12 : vector<1x48xf32> to vector<2x48xf32>
    %21 = arith.addf %19, %20 : vector<2x48xf32>
    %22 = vector.extract_strided_slice %18 {offsets = [0, 0], sizes = [2, 16], strides = [1, 1]} : vector<2x48xf32> to vector<2x16xf32>
    %23 = vector.extract_strided_slice %21 {offsets = [0, 0], sizes = [2, 16], strides = [1, 1]} : vector<2x48xf32> to vector<2x16xf32>
    %24 = arith.addf %22, %23 : vector<2x16xf32>
    %25 = arith.negf %24 : vector<2x16xf32>
    %26 = math.exp %25 : vector<2x16xf32>
    %cst_19 = arith.constant 1.000000e+00 : f32
    %27 = vector.broadcast %cst_19 : f32 to vector<2x16xf32>
    %28 = arith.addf %27, %26 : vector<2x16xf32>
    %29 = arith.divf %27, %28 : vector<2x16xf32>
    %30 = vector.extract_strided_slice %18 {offsets = [0, 16], sizes = [2, 16], strides = [1, 1]} : vector<2x48xf32> to vector<2x16xf32>
    %31 = vector.extract_strided_slice %21 {offsets = [0, 16], sizes = [2, 16], strides = [1, 1]} : vector<2x48xf32> to vector<2x16xf32>
    %32 = arith.addf %30, %31 : vector<2x16xf32>
    %33 = arith.negf %32 : vector<2x16xf32>
    %34 = math.exp %33 : vector<2x16xf32>
    %cst_20 = arith.constant 1.000000e+00 : f32
    %35 = vector.broadcast %cst_20 : f32 to vector<2x16xf32>
    %36 = arith.addf %35, %34 : vector<2x16xf32>
    %37 = arith.divf %35, %36 : vector<2x16xf32>
    %38 = vector.extract_strided_slice %18 {offsets = [0, 32], sizes = [2, 16], strides = [1, 1]} : vector<2x48xf32> to vector<2x16xf32>
    %39 = vector.extract_strided_slice %21 {offsets = [0, 32], sizes = [2, 16], strides = [1, 1]} : vector<2x48xf32> to vector<2x16xf32>
    %40 = arith.mulf %29, %39 : vector<2x16xf32>
    %41 = arith.addf %38, %40 : vector<2x16xf32>
    %42 = math.tanh %41 : vector<2x16xf32>
    %cst_21 = arith.constant 1.000000e+00 : f32
    %43 = vector.broadcast %cst_21 : f32 to vector<2x16xf32>
    %44 = arith.subf %43, %37 : vector<2x16xf32>
    %45 = arith.mulf %44, %42 : vector<2x16xf32>
    %46 = arith.mulf %37, %13 : vector<2x16xf32>
    %47 = arith.addf %45, %46 : vector<2x16xf32>
    %c0_22 = arith.constant 0 : index
    %48 = arith.index_cast %16 : i32 to index
    %c0_23 = arith.constant 0 : index
    %49 = vector.load %arg6[%c0_22, %48, %c0_23] : memref<1x16x16xf32, #tpu.memory_space<vmem>>, vector<1x2x16xf32>
    %50 = vector.shape_cast %49 : vector<1x2x16xf32> to vector<2x16xf32>
    %51 = vector.shape_cast %47 : vector<2x16xf32> to vector<1x2x16xf32>
    tpu.vector_store %arg6[%c0_22, %48, %c0_23], %51 {strides = array<i32>} : memref<1x16x16xf32, #tpu.memory_space<vmem>>, vector<1x2x16xf32>,
    %c0_i32_24 = arith.constant 0 : i32
    %52 = arith.cmpi eq, %arg0, %c0_i32_24 : i32
    %c1_i32 = arith.constant 1 : i32
    %c6_i32 = arith.constant 6 : i32
    %53 = arith.select %52, %c1_i32, %c6_i32 : i32
    %c2_i32_25 = arith.constant 2 : i32
    %54 = arith.muli %53, %c2_i32_25 : i32
    %55 = arith.index_cast %54 : i32 to index
    %c0_26 = arith.constant 0 : index
    %56 = vector.load %arg7[%55, %c0_26] : memref<16x48xf32, #tpu.memory_space<vmem>>, vector<2x48xf32>
    %cst_27 = arith.constant dense<0.000000e+00> : vector<2x48xf32>
    %57 = tpu.matmul %47, %10, %cst_27 {dimension_numbers = #tpu.dot_dimension_numbers<[1], [0], [0], [1], [0, 0, 1, 1], [], []>} : vector<2x16xf32>, vector<16x48xf32>, vector<2x48xf32> -> vector<2x48xf32>
    %58 = vector.broadcast %12 : vector<1x48xf32> to vector<2x48xf32>
    %59 = arith.addf %57, %58 : vector<2x48xf32>
    %60 = vector.extract_strided_slice %56 {offsets = [0, 0], sizes = [2, 16], strides = [1, 1]} : vector<2x48xf32> to vector<2x16xf32>
    %61 = vector.extract_strided_slice %59 {offsets = [0, 0], sizes = [2, 16], strides = [1, 1]} : vector<2x48xf32> to vector<2x16xf32>
    %62 = arith.addf %60, %61 : vector<2x16xf32>
    %63 = arith.negf %62 : vector<2x16xf32>
    %64 = math.exp %63 : vector<2x16xf32>
    %cst_28 = arith.constant 1.000000e+00 : f32
    %65 = vector.broadcast %cst_28 : f32 to vector<2x16xf32>
    %66 = arith.addf %65, %64 : vector<2x16xf32>
    %67 = arith.divf %65, %66 : vector<2x16xf32>
    %68 = vector.extract_strided_slice %56 {offsets = [0, 16], sizes = [2, 16], strides = [1, 1]} : vector<2x48xf32> to vector<2x16xf32>
    %69 = vector.extract_strided_slice %59 {offsets = [0, 16], sizes = [2, 16], strides = [1, 1]} : vector<2x48xf32> to vector<2x16xf32>
    %70 = arith.addf %68, %69 : vector<2x16xf32>
    %71 = arith.negf %70 : vector<2x16xf32>
    %72 = math.exp %71 : vector<2x16xf32>
    %cst_29 = arith.constant 1.000000e+00 : f32
    %73 = vector.broadcast %cst_29 : f32 to vector<2x16xf32>
    %74 = arith.addf %73, %72 : vector<2x16xf32>
    %75 = arith.divf %73, %74 : vector<2x16xf32>
    %76 = vector.extract_strided_slice %56 {offsets = [0, 32], sizes = [2, 16], strides = [1, 1]} : vector<2x48xf32> to vector<2x16xf32>
    %77 = vector.extract_strided_slice %59 {offsets = [0, 32], sizes = [2, 16], strides = [1, 1]} : vector<2x48xf32> to vector<2x16xf32>
    %78 = arith.mulf %67, %77 : vector<2x16xf32>
    %79 = arith.addf %76, %78 : vector<2x16xf32>
    %80 = math.tanh %79 : vector<2x16xf32>
    %cst_30 = arith.constant 1.000000e+00 : f32
    %81 = vector.broadcast %cst_30 : f32 to vector<2x16xf32>
    %82 = arith.subf %81, %75 : vector<2x16xf32>
    %83 = arith.mulf %82, %80 : vector<2x16xf32>
    %84 = arith.mulf %75, %47 : vector<2x16xf32>
    %85 = arith.addf %83, %84 : vector<2x16xf32>
    %c0_31 = arith.constant 0 : index
    %86 = arith.index_cast %54 : i32 to index
    %c0_32 = arith.constant 0 : index
    %87 = vector.load %arg6[%c0_31, %86, %c0_32] : memref<1x16x16xf32, #tpu.memory_space<vmem>>, vector<1x2x16xf32>
    %88 = vector.shape_cast %87 : vector<1x2x16xf32> to vector<2x16xf32>
    %89 = vector.shape_cast %85 : vector<2x16xf32> to vector<1x2x16xf32>
    tpu.vector_store %arg6[%c0_31, %86, %c0_32], %89 {strides = array<i32>} : memref<1x16x16xf32, #tpu.memory_space<vmem>>, vector<1x2x16xf32>,
    %c0_i32_33 = arith.constant 0 : i32
    %90 = arith.cmpi eq, %arg0, %c0_i32_33 : i32
    %c2_i32_34 = arith.constant 2 : i32
    %c5_i32 = arith.constant 5 : i32
    %91 = arith.select %90, %c2_i32_34, %c5_i32 : i32
    %c2_i32_35 = arith.constant 2 : i32
    %92 = arith.muli %91, %c2_i32_35 : i32
    %93 = arith.index_cast %92 : i32 to index
    %c0_36 = arith.constant 0 : index
    %94 = vector.load %arg7[%93, %c0_36] : memref<16x48xf32, #tpu.memory_space<vmem>>, vector<2x48xf32>
    %cst_37 = arith.constant dense<0.000000e+00> : vector<2x48xf32>
    %95 = tpu.matmul %85, %10, %cst_37 {dimension_numbers = #tpu.dot_dimension_numbers<[1], [0], [0], [1], [0, 0, 1, 1], [], []>} : vector<2x16xf32>, vector<16x48xf32>, vector<2x48xf32> -> vector<2x48xf32>
    %96 = vector.broadcast %12 : vector<1x48xf32> to vector<2x48xf32>
    %97 = arith.addf %95, %96 : vector<2x48xf32>
    %98 = vector.extract_strided_slice %94 {offsets = [0, 0], sizes = [2, 16], strides = [1, 1]} : vector<2x48xf32> to vector<2x16xf32>
    %99 = vector.extract_strided_slice %97 {offsets = [0, 0], sizes = [2, 16], strides = [1, 1]} : vector<2x48xf32> to vector<2x16xf32>
    %100 = arith.addf %98, %99 : vector<2x16xf32>
    %101 = arith.negf %100 : vector<2x16xf32>
    %102 = math.exp %101 : vector<2x16xf32>
    %cst_38 = arith.constant 1.000000e+00 : f32
    %103 = vector.broadcast %cst_38 : f32 to vector<2x16xf32>
    %104 = arith.addf %103, %102 : vector<2x16xf32>
    %105 = arith.divf %103, %104 : vector<2x16xf32>
    %106 = vector.extract_strided_slice %94 {offsets = [0, 16], sizes = [2, 16], strides = [1, 1]} : vector<2x48xf32> to vector<2x16xf32>
    %107 = vector.extract_strided_slice %97 {offsets = [0, 16], sizes = [2, 16], strides = [1, 1]} : vector<2x48xf32> to vector<2x16xf32>
    %108 = arith.addf %106, %107 : vector<2x16xf32>
    %109 = arith.negf %108 : vector<2x16xf32>
    %110 = math.exp %109 : vector<2x16xf32>
    %cst_39 = arith.constant 1.000000e+00 : f32
    %111 = vector.broadcast %cst_39 : f32 to vector<2x16xf32>
    %112 = arith.addf %111, %110 : vector<2x16xf32>
    %113 = arith.divf %111, %112 : vector<2x16xf32>
    %114 = vector.extract_strided_slice %94 {offsets = [0, 32], sizes = [2, 16], strides = [1, 1]} : vector<2x48xf32> to vector<2x16xf32>
    %115 = vector.extract_strided_slice %97 {offsets = [0, 32], sizes = [2, 16], strides = [1, 1]} : vector<2x48xf32> to vector<2x16xf32>
    %116 = arith.mulf %105, %115 : vector<2x16xf32>
    %117 = arith.addf %114, %116 : vector<2x16xf32>
    %118 = math.tanh %117 : vector<2x16xf32>
    %cst_40 = arith.constant 1.000000e+00 : f32
    %119 = vector.broadcast %cst_40 : f32 to vector<2x16xf32>
    %120 = arith.subf %119, %113 : vector<2x16xf32>
    %121 = arith.mulf %120, %118 : vector<2x16xf32>
    %122 = arith.mulf %113, %85 : vector<2x16xf32>
    %123 = arith.addf %121, %122 : vector<2x16xf32>
    %c0_41 = arith.constant 0 : index
    %124 = arith.index_cast %92 : i32 to index
    %c0_42 = arith.constant 0 : index
    %125 = vector.load %arg6[%c0_41, %124, %c0_42] : memref<1x16x16xf32, #tpu.memory_space<vmem>>, vector<1x2x16xf32>
    %126 = vector.shape_cast %125 : vector<1x2x16xf32> to vector<2x16xf32>
    %127 = vector.shape_cast %123 : vector<2x16xf32> to vector<1x2x16xf32>
    tpu.vector_store %arg6[%c0_41, %124, %c0_42], %127 {strides = array<i32>} : memref<1x16x16xf32, #tpu.memory_space<vmem>>, vector<1x2x16xf32>,
    %c0_i32_43 = arith.constant 0 : i32
    %128 = arith.cmpi eq, %arg0, %c0_i32_43 : i32
    %c3_i32 = arith.constant 3 : i32
    %c4_i32 = arith.constant 4 : i32
    %129 = arith.select %128, %c3_i32, %c4_i32 : i32
    %c2_i32_44 = arith.constant 2 : i32
    %130 = arith.muli %129, %c2_i32_44 : i32
    %131 = arith.index_cast %130 : i32 to index
    %c0_45 = arith.constant 0 : index
    %132 = vector.load %arg7[%131, %c0_45] : memref<16x48xf32, #tpu.memory_space<vmem>>, vector<2x48xf32>
    %cst_46 = arith.constant dense<0.000000e+00> : vector<2x48xf32>
    %133 = tpu.matmul %123, %10, %cst_46 {dimension_numbers = #tpu.dot_dimension_numbers<[1], [0], [0], [1], [0, 0, 1, 1], [], []>} : vector<2x16xf32>, vector<16x48xf32>, vector<2x48xf32> -> vector<2x48xf32>
    %134 = vector.broadcast %12 : vector<1x48xf32> to vector<2x48xf32>
    %135 = arith.addf %133, %134 : vector<2x48xf32>
    %136 = vector.extract_strided_slice %132 {offsets = [0, 0], sizes = [2, 16], strides = [1, 1]} : vector<2x48xf32> to vector<2x16xf32>
    %137 = vector.extract_strided_slice %135 {offsets = [0, 0], sizes = [2, 16], strides = [1, 1]} : vector<2x48xf32> to vector<2x16xf32>
    %138 = arith.addf %136, %137 : vector<2x16xf32>
    %139 = arith.negf %138 : vector<2x16xf32>
    %140 = math.exp %139 : vector<2x16xf32>
    %cst_47 = arith.constant 1.000000e+00 : f32
    %141 = vector.broadcast %cst_47 : f32 to vector<2x16xf32>
    %142 = arith.addf %141, %140 : vector<2x16xf32>
    %143 = arith.divf %141, %142 : vector<2x16xf32>
    %144 = vector.extract_strided_slice %132 {offsets = [0, 16], sizes = [2, 16], strides = [1, 1]} : vector<2x48xf32> to vector<2x16xf32>
    %145 = vector.extract_strided_slice %135 {offsets = [0, 16], sizes = [2, 16], strides = [1, 1]} : vector<2x48xf32> to vector<2x16xf32>
    %146 = arith.addf %144, %145 : vector<2x16xf32>
    %147 = arith.negf %146 : vector<2x16xf32>
    %148 = math.exp %147 : vector<2x16xf32>
    %cst_48 = arith.constant 1.000000e+00 : f32
    %149 = vector.broadcast %cst_48 : f32 to vector<2x16xf32>
    %150 = arith.addf %149, %148 : vector<2x16xf32>
    %151 = arith.divf %149, %150 : vector<2x16xf32>
    %152 = vector.extract_strided_slice %132 {offsets = [0, 32], sizes = [2, 16], strides = [1, 1]} : vector<2x48xf32> to vector<2x16xf32>
    %153 = vector.extract_strided_slice %135 {offsets = [0, 32], sizes = [2, 16], strides = [1, 1]} : vector<2x48xf32> to vector<2x16xf32>
    %154 = arith.mulf %143, %153 : vector<2x16xf32>
    %155 = arith.addf %152, %154 : vector<2x16xf32>
    %156 = math.tanh %155 : vector<2x16xf32>
    %cst_49 = arith.constant 1.000000e+00 : f32
    %157 = vector.broadcast %cst_49 : f32 to vector<2x16xf32>
    %158 = arith.subf %157, %151 : vector<2x16xf32>
    %159 = arith.mulf %158, %156 : vector<2x16xf32>
    %160 = arith.mulf %151, %123 : vector<2x16xf32>
    %161 = arith.addf %159, %160 : vector<2x16xf32>
    %c0_50 = arith.constant 0 : index
    %162 = arith.index_cast %130 : i32 to index
    %c0_51 = arith.constant 0 : index
    %163 = vector.load %arg6[%c0_50, %162, %c0_51] : memref<1x16x16xf32, #tpu.memory_space<vmem>>, vector<1x2x16xf32>
    %164 = vector.shape_cast %163 : vector<1x2x16xf32> to vector<2x16xf32>
    %165 = vector.shape_cast %161 : vector<2x16xf32> to vector<1x2x16xf32>
    tpu.vector_store %arg6[%c0_50, %162, %c0_51], %165 {strides = array<i32>} : memref<1x16x16xf32, #tpu.memory_space<vmem>>, vector<1x2x16xf32>,
    %c0_i32_52 = arith.constant 0 : i32
    %166 = arith.cmpi eq, %arg0, %c0_i32_52 : i32
    %c4_i32_53 = arith.constant 4 : i32
    %c3_i32_54 = arith.constant 3 : i32
    %167 = arith.select %166, %c4_i32_53, %c3_i32_54 : i32
    %c2_i32_55 = arith.constant 2 : i32
    %168 = arith.muli %167, %c2_i32_55 : i32
    %169 = arith.index_cast %168 : i32 to index
    %c0_56 = arith.constant 0 : index
    %170 = vector.load %arg7[%169, %c0_56] : memref<16x48xf32, #tpu.memory_space<vmem>>, vector<2x48xf32>
    %cst_57 = arith.constant dense<0.000000e+00> : vector<2x48xf32>
    %171 = tpu.matmul %161, %10, %cst_57 {dimension_numbers = #tpu.dot_dimension_numbers<[1], [0], [0], [1], [0, 0, 1, 1], [], []>} : vector<2x16xf32>, vector<16x48xf32>, vector<2x48xf32> -> vector<2x48xf32>
    %172 = vector.broadcast %12 : vector<1x48xf32> to vector<2x48xf32>
    %173 = arith.addf %171, %172 : vector<2x48xf32>
    %174 = vector.extract_strided_slice %170 {offsets = [0, 0], sizes = [2, 16], strides = [1, 1]} : vector<2x48xf32> to vector<2x16xf32>
    %175 = vector.extract_strided_slice %173 {offsets = [0, 0], sizes = [2, 16], strides = [1, 1]} : vector<2x48xf32> to vector<2x16xf32>
    %176 = arith.addf %174, %175 : vector<2x16xf32>
    %177 = arith.negf %176 : vector<2x16xf32>
    %178 = math.exp %177 : vector<2x16xf32>
    %cst_58 = arith.constant 1.000000e+00 : f32
    %179 = vector.broadcast %cst_58 : f32 to vector<2x16xf32>
    %180 = arith.addf %179, %178 : vector<2x16xf32>
    %181 = arith.divf %179, %180 : vector<2x16xf32>
    %182 = vector.extract_strided_slice %170 {offsets = [0, 16], sizes = [2, 16], strides = [1, 1]} : vector<2x48xf32> to vector<2x16xf32>
    %183 = vector.extract_strided_slice %173 {offsets = [0, 16], sizes = [2, 16], strides = [1, 1]} : vector<2x48xf32> to vector<2x16xf32>
    %184 = arith.addf %182, %183 : vector<2x16xf32>
    %185 = arith.negf %184 : vector<2x16xf32>
    %186 = math.exp %185 : vector<2x16xf32>
    %cst_59 = arith.constant 1.000000e+00 : f32
    %187 = vector.broadcast %cst_59 : f32 to vector<2x16xf32>
    %188 = arith.addf %187, %186 : vector<2x16xf32>
    %189 = arith.divf %187, %188 : vector<2x16xf32>
    %190 = vector.extract_strided_slice %170 {offsets = [0, 32], sizes = [2, 16], strides = [1, 1]} : vector<2x48xf32> to vector<2x16xf32>
    %191 = vector.extract_strided_slice %173 {offsets = [0, 32], sizes = [2, 16], strides = [1, 1]} : vector<2x48xf32> to vector<2x16xf32>
    %192 = arith.mulf %181, %191 : vector<2x16xf32>
    %193 = arith.addf %190, %192 : vector<2x16xf32>
    %194 = math.tanh %193 : vector<2x16xf32>
    %cst_60 = arith.constant 1.000000e+00 : f32
    %195 = vector.broadcast %cst_60 : f32 to vector<2x16xf32>
    %196 = arith.subf %195, %189 : vector<2x16xf32>
    %197 = arith.mulf %196, %194 : vector<2x16xf32>
    %198 = arith.mulf %189, %161 : vector<2x16xf32>
    %199 = arith.addf %197, %198 : vector<2x16xf32>
    %c0_61 = arith.constant 0 : index
    %200 = arith.index_cast %168 : i32 to index
    %c0_62 = arith.constant 0 : index
    %201 = vector.load %arg6[%c0_61, %200, %c0_62] : memref<1x16x16xf32, #tpu.memory_space<vmem>>, vector<1x2x16xf32>
    %202 = vector.shape_cast %201 : vector<1x2x16xf32> to vector<2x16xf32>
    %203 = vector.shape_cast %199 : vector<2x16xf32> to vector<1x2x16xf32>
    tpu.vector_store %arg6[%c0_61, %200, %c0_62], %203 {strides = array<i32>} : memref<1x16x16xf32, #tpu.memory_space<vmem>>, vector<1x2x16xf32>,
    %c0_i32_63 = arith.constant 0 : i32
    %204 = arith.cmpi eq, %arg0, %c0_i32_63 : i32
    %c5_i32_64 = arith.constant 5 : i32
    %c2_i32_65 = arith.constant 2 : i32
    %205 = arith.select %204, %c5_i32_64, %c2_i32_65 : i32
    %c2_i32_66 = arith.constant 2 : i32
    %206 = arith.muli %205, %c2_i32_66 : i32
    %207 = arith.index_cast %206 : i32 to index
    %c0_67 = arith.constant 0 : index
    %208 = vector.load %arg7[%207, %c0_67] : memref<16x48xf32, #tpu.memory_space<vmem>>, vector<2x48xf32>
    %cst_68 = arith.constant dense<0.000000e+00> : vector<2x48xf32>
    %209 = tpu.matmul %199, %10, %cst_68 {dimension_numbers = #tpu.dot_dimension_numbers<[1], [0], [0], [1], [0, 0, 1, 1], [], []>} : vector<2x16xf32>, vector<16x48xf32>, vector<2x48xf32> -> vector<2x48xf32>
    %210 = vector.broadcast %12 : vector<1x48xf32> to vector<2x48xf32>
    %211 = arith.addf %209, %210 : vector<2x48xf32>
    %212 = vector.extract_strided_slice %208 {offsets = [0, 0], sizes = [2, 16], strides = [1, 1]} : vector<2x48xf32> to vector<2x16xf32>
    %213 = vector.extract_strided_slice %211 {offsets = [0, 0], sizes = [2, 16], strides = [1, 1]} : vector<2x48xf32> to vector<2x16xf32>
    %214 = arith.addf %212, %213 : vector<2x16xf32>
    %215 = arith.negf %214 : vector<2x16xf32>
    %216 = math.exp %215 : vector<2x16xf32>
    %cst_69 = arith.constant 1.000000e+00 : f32
    %217 = vector.broadcast %cst_69 : f32 to vector<2x16xf32>
    %218 = arith.addf %217, %216 : vector<2x16xf32>
    %219 = arith.divf %217, %218 : vector<2x16xf32>
    %220 = vector.extract_strided_slice %208 {offsets = [0, 16], sizes = [2, 16], strides = [1, 1]} : vector<2x48xf32> to vector<2x16xf32>
    %221 = vector.extract_strided_slice %211 {offsets = [0, 16], sizes = [2, 16], strides = [1, 1]} : vector<2x48xf32> to vector<2x16xf32>
    %222 = arith.addf %220, %221 : vector<2x16xf32>
    %223 = arith.negf %222 : vector<2x16xf32>
    %224 = math.exp %223 : vector<2x16xf32>
    %cst_70 = arith.constant 1.000000e+00 : f32
    %225 = vector.broadcast %cst_70 : f32 to vector<2x16xf32>
    %226 = arith.addf %225, %224 : vector<2x16xf32>
    %227 = arith.divf %225, %226 : vector<2x16xf32>
    %228 = vector.extract_strided_slice %208 {offsets = [0, 32], sizes = [2, 16], strides = [1, 1]} : vector<2x48xf32> to vector<2x16xf32>
    %229 = vector.extract_strided_slice %211 {offsets = [0, 32], sizes = [2, 16], strides = [1, 1]} : vector<2x48xf32> to vector<2x16xf32>
    %230 = arith.mulf %219, %229 : vector<2x16xf32>
    %231 = arith.addf %228, %230 : vector<2x16xf32>
    %232 = math.tanh %231 : vector<2x16xf32>
    %cst_71 = arith.constant 1.000000e+00 : f32
    %233 = vector.broadcast %cst_71 : f32 to vector<2x16xf32>
    %234 = arith.subf %233, %227 : vector<2x16xf32>
    %235 = arith.mulf %234, %232 : vector<2x16xf32>
    %236 = arith.mulf %227, %199 : vector<2x16xf32>
    %237 = arith.addf %235, %236 : vector<2x16xf32>
    %c0_72 = arith.constant 0 : index
    %238 = arith.index_cast %206 : i32 to index
    %c0_73 = arith.constant 0 : index
    %239 = vector.load %arg6[%c0_72, %238, %c0_73] : memref<1x16x16xf32, #tpu.memory_space<vmem>>, vector<1x2x16xf32>
    %240 = vector.shape_cast %239 : vector<1x2x16xf32> to vector<2x16xf32>
    %241 = vector.shape_cast %237 : vector<2x16xf32> to vector<1x2x16xf32>
    tpu.vector_store %arg6[%c0_72, %238, %c0_73], %241 {strides = array<i32>} : memref<1x16x16xf32, #tpu.memory_space<vmem>>, vector<1x2x16xf32>,
    %c0_i32_74 = arith.constant 0 : i32
    %242 = arith.cmpi eq, %arg0, %c0_i32_74 : i32
    %c6_i32_75 = arith.constant 6 : i32
    %c1_i32_76 = arith.constant 1 : i32
    %243 = arith.select %242, %c6_i32_75, %c1_i32_76 : i32
    %c2_i32_77 = arith.constant 2 : i32
    %244 = arith.muli %243, %c2_i32_77 : i32
    %245 = arith.index_cast %244 : i32 to index
    %c0_78 = arith.constant 0 : index
    %246 = vector.load %arg7[%245, %c0_78] : memref<16x48xf32, #tpu.memory_space<vmem>>, vector<2x48xf32>
    %cst_79 = arith.constant dense<0.000000e+00> : vector<2x48xf32>
    %247 = tpu.matmul %237, %10, %cst_79 {dimension_numbers = #tpu.dot_dimension_numbers<[1], [0], [0], [1], [0, 0, 1, 1], [], []>} : vector<2x16xf32>, vector<16x48xf32>, vector<2x48xf32> -> vector<2x48xf32>
    %248 = vector.broadcast %12 : vector<1x48xf32> to vector<2x48xf32>
    %249 = arith.addf %247, %248 : vector<2x48xf32>
    %250 = vector.extract_strided_slice %246 {offsets = [0, 0], sizes = [2, 16], strides = [1, 1]} : vector<2x48xf32> to vector<2x16xf32>
    %251 = vector.extract_strided_slice %249 {offsets = [0, 0], sizes = [2, 16], strides = [1, 1]} : vector<2x48xf32> to vector<2x16xf32>
    %252 = arith.addf %250, %251 : vector<2x16xf32>
    %253 = arith.negf %252 : vector<2x16xf32>
    %254 = math.exp %253 : vector<2x16xf32>
    %cst_80 = arith.constant 1.000000e+00 : f32
    %255 = vector.broadcast %cst_80 : f32 to vector<2x16xf32>
    %256 = arith.addf %255, %254 : vector<2x16xf32>
    %257 = arith.divf %255, %256 : vector<2x16xf32>
    %258 = vector.extract_strided_slice %246 {offsets = [0, 16], sizes = [2, 16], strides = [1, 1]} : vector<2x48xf32> to vector<2x16xf32>
    %259 = vector.extract_strided_slice %249 {offsets = [0, 16], sizes = [2, 16], strides = [1, 1]} : vector<2x48xf32> to vector<2x16xf32>
    %260 = arith.addf %258, %259 : vector<2x16xf32>
    %261 = arith.negf %260 : vector<2x16xf32>
    %262 = math.exp %261 : vector<2x16xf32>
    %cst_81 = arith.constant 1.000000e+00 : f32
    %263 = vector.broadcast %cst_81 : f32 to vector<2x16xf32>
    %264 = arith.addf %263, %262 : vector<2x16xf32>
    %265 = arith.divf %263, %264 : vector<2x16xf32>
    %266 = vector.extract_strided_slice %246 {offsets = [0, 32], sizes = [2, 16], strides = [1, 1]} : vector<2x48xf32> to vector<2x16xf32>
    %267 = vector.extract_strided_slice %249 {offsets = [0, 32], sizes = [2, 16], strides = [1, 1]} : vector<2x48xf32> to vector<2x16xf32>
    %268 = arith.mulf %257, %267 : vector<2x16xf32>
    %269 = arith.addf %266, %268 : vector<2x16xf32>
    %270 = math.tanh %269 : vector<2x16xf32>
    %cst_82 = arith.constant 1.000000e+00 : f32
    %271 = vector.broadcast %cst_82 : f32 to vector<2x16xf32>
    %272 = arith.subf %271, %265 : vector<2x16xf32>
    %273 = arith.mulf %272, %270 : vector<2x16xf32>
    %274 = arith.mulf %265, %237 : vector<2x16xf32>
    %275 = arith.addf %273, %274 : vector<2x16xf32>
    %c0_83 = arith.constant 0 : index
    %276 = arith.index_cast %244 : i32 to index
    %c0_84 = arith.constant 0 : index
    %277 = vector.load %arg6[%c0_83, %276, %c0_84] : memref<1x16x16xf32, #tpu.memory_space<vmem>>, vector<1x2x16xf32>
    %278 = vector.shape_cast %277 : vector<1x2x16xf32> to vector<2x16xf32>
    %279 = vector.shape_cast %275 : vector<2x16xf32> to vector<1x2x16xf32>
    tpu.vector_store %arg6[%c0_83, %276, %c0_84], %279 {strides = array<i32>} : memref<1x16x16xf32, #tpu.memory_space<vmem>>, vector<1x2x16xf32>,
    %c0_i32_85 = arith.constant 0 : i32
    %280 = arith.cmpi eq, %arg0, %c0_i32_85 : i32
    %c7_i32_86 = arith.constant 7 : i32
    %c0_i32_87 = arith.constant 0 : i32
    %281 = arith.select %280, %c7_i32_86, %c0_i32_87 : i32
    %c2_i32_88 = arith.constant 2 : i32
    %282 = arith.muli %281, %c2_i32_88 : i32
    %283 = arith.index_cast %282 : i32 to index
    %c0_89 = arith.constant 0 : index
    %284 = vector.load %arg7[%283, %c0_89] : memref<16x48xf32, #tpu.memory_space<vmem>>, vector<2x48xf32>
    %cst_90 = arith.constant dense<0.000000e+00> : vector<2x48xf32>
    %285 = tpu.matmul %275, %10, %cst_90 {dimension_numbers = #tpu.dot_dimension_numbers<[1], [0], [0], [1], [0, 0, 1, 1], [], []>} : vector<2x16xf32>, vector<16x48xf32>, vector<2x48xf32> -> vector<2x48xf32>
    %286 = vector.broadcast %12 : vector<1x48xf32> to vector<2x48xf32>
    %287 = arith.addf %285, %286 : vector<2x48xf32>
    %288 = vector.extract_strided_slice %284 {offsets = [0, 0], sizes = [2, 16], strides = [1, 1]} : vector<2x48xf32> to vector<2x16xf32>
    %289 = vector.extract_strided_slice %287 {offsets = [0, 0], sizes = [2, 16], strides = [1, 1]} : vector<2x48xf32> to vector<2x16xf32>
    %290 = arith.addf %288, %289 : vector<2x16xf32>
    %291 = arith.negf %290 : vector<2x16xf32>
    %292 = math.exp %291 : vector<2x16xf32>
    %cst_91 = arith.constant 1.000000e+00 : f32
    %293 = vector.broadcast %cst_91 : f32 to vector<2x16xf32>
    %294 = arith.addf %293, %292 : vector<2x16xf32>
    %295 = arith.divf %293, %294 : vector<2x16xf32>
    %296 = vector.extract_strided_slice %284 {offsets = [0, 16], sizes = [2, 16], strides = [1, 1]} : vector<2x48xf32> to vector<2x16xf32>
    %297 = vector.extract_strided_slice %287 {offsets = [0, 16], sizes = [2, 16], strides = [1, 1]} : vector<2x48xf32> to vector<2x16xf32>
    %298 = arith.addf %296, %297 : vector<2x16xf32>
    %299 = arith.negf %298 : vector<2x16xf32>
    %300 = math.exp %299 : vector<2x16xf32>
    %cst_92 = arith.constant 1.000000e+00 : f32
    %301 = vector.broadcast %cst_92 : f32 to vector<2x16xf32>
    %302 = arith.addf %301, %300 : vector<2x16xf32>
    %303 = arith.divf %301, %302 : vector<2x16xf32>
    %304 = vector.extract_strided_slice %284 {offsets = [0, 32], sizes = [2, 16], strides = [1, 1]} : vector<2x48xf32> to vector<2x16xf32>
    %305 = vector.extract_strided_slice %287 {offsets = [0, 32], sizes = [2, 16], strides = [1, 1]} : vector<2x48xf32> to vector<2x16xf32>
    %306 = arith.mulf %295, %305 : vector<2x16xf32>
    %307 = arith.addf %304, %306 : vector<2x16xf32>
    %308 = math.tanh %307 : vector<2x16xf32>
    %cst_93 = arith.constant 1.000000e+00 : f32
    %309 = vector.broadcast %cst_93 : f32 to vector<2x16xf32>
    %310 = arith.subf %309, %303 : vector<2x16xf32>
    %311 = arith.mulf %310, %308 : vector<2x16xf32>
    %312 = arith.mulf %303, %275 : vector<2x16xf32>
    %313 = arith.addf %311, %312 : vector<2x16xf32>
    %c0_94 = arith.constant 0 : index
    %314 = arith.index_cast %282 : i32 to index
    %c0_95 = arith.constant 0 : index
    %315 = vector.load %arg6[%c0_94, %314, %c0_95] : memref<1x16x16xf32, #tpu.memory_space<vmem>>, vector<1x2x16xf32>
    %316 = vector.shape_cast %315 : vector<1x2x16xf32> to vector<2x16xf32>
    %317 = vector.shape_cast %313 : vector<2x16xf32> to vector<1x2x16xf32>
    tpu.vector_store %arg6[%c0_94, %314, %c0_95], %317 {strides = array<i32>} : memref<1x16x16xf32, #tpu.memory_space<vmem>>, vector<1x2x16xf32>,
    return
  }
  func.func @transform_0(%arg0: i32) -> (i32, i32) {
    %c0_i32 = arith.constant 0 : i32
    %c0_i32_0 = arith.constant 0 : i32
    %c0_i32_1 = arith.constant 0 : i32
    return %c0_i32, %c0_i32_0 : i32, i32
  }
  func.func @transform_1(%arg0: i32) -> (i32, i32, i32) {
    %c0_i32 = arith.constant 0 : i32
    %c0_i32_0 = arith.constant 0 : i32
    %c0_i32_1 = arith.constant 0 : i32
    return %arg0, %c0_i32, %c0_i32_0 : i32, i32, i32
  }
  func.func @transform_2(%arg0: i32) -> (i32, i32, i32) {
    %c0_i32 = arith.constant 0 : i32
    %c0_i32_0 = arith.constant 0 : i32
    %c0_i32_1 = arith.constant 0 : i32
    return %arg0, %c0_i32, %c0_i32_0 : i32, i32, i32
  }
  func.func @transform_3(%arg0: i32) -> (i32, i32, i32) {
    %c0_i32 = arith.constant 0 : i32
    %c0_i32_0 = arith.constant 0 : i32
    %c0_i32_1 = arith.constant 0 : i32
    return %arg0, %c0_i32, %c0_i32_0 : i32, i32, i32
  }
  func.func @transform_4(%arg0: i32) -> (i32, i32, i32) {
    %c0_i32 = arith.constant 0 : i32
    %c0_i32_0 = arith.constant 0 : i32
    %c0_i32_1 = arith.constant 0 : i32
    return %arg0, %c0_i32, %c0_i32_0 : i32, i32, i32
  }
  func.func @transform_5(%arg0: i32) -> (i32, i32, i32) {
    %c0_i32 = arith.constant 0 : i32
    %c0_i32_0 = arith.constant 0 : i32
    %c0_i32_1 = arith.constant 0 : i32
    return %arg0, %c0_i32, %c0_i32_0 : i32, i32, i32
  }
}

module attributes {stable_mosaic.version = 11 : i64} {
  func.func @_heads_kernel(%arg0: memref<2x16x16xf32, #tpu.memory_space<vmem>>, %arg1: memref<2x16x64xf32, #tpu.memory_space<vmem>>, %arg2: memref<1x64xf32, #tpu.memory_space<vmem>>, %arg3: memref<64x8xf32, #tpu.memory_space<vmem>>, %arg4: memref<1x8xf32, #tpu.memory_space<vmem>>, %arg5: memref<16x2xf32, #tpu.memory_space<vmem>>, %arg6: memref<16x6xf32, #tpu.memory_space<vmem>>) attributes {dimension_semantics = [], scalar_prefetch = 0 : i64, scratch_operands = 0 : i64, tpu.core_type = #tpu.core_type<tc>} {
    %c0 = arith.constant 0 : index
    %c0_0 = arith.constant 0 : index
    %c0_1 = arith.constant 0 : index
    %0 = vector.load %arg0[%c0, %c0_0, %c0_1] : memref<2x16x16xf32, #tpu.memory_space<vmem>>, vector<1x16x16xf32>
    %1 = vector.shape_cast %0 : vector<1x16x16xf32> to vector<16x16xf32>
    %c0_2 = arith.constant 0 : index
    %c0_3 = arith.constant 0 : index
    %c0_4 = arith.constant 0 : index
    %2 = vector.load %arg1[%c0_2, %c0_3, %c0_4] : memref<2x16x64xf32, #tpu.memory_space<vmem>>, vector<1x16x64xf32>
    %3 = vector.shape_cast %2 : vector<1x16x64xf32> to vector<16x64xf32>
    %cst = arith.constant dense<0.000000e+00> : vector<16x64xf32>
    %4 = tpu.matmul %1, %3, %cst {dimension_numbers = #tpu.dot_dimension_numbers<[1], [0], [0], [1], [0, 0, 1, 1], [], []>} : vector<16x16xf32>, vector<16x64xf32>, vector<16x64xf32> -> vector<16x64xf32>
    %c1 = arith.constant 1 : index
    %c0_5 = arith.constant 0 : index
    %c0_6 = arith.constant 0 : index
    %5 = vector.load %arg0[%c1, %c0_5, %c0_6] : memref<2x16x16xf32, #tpu.memory_space<vmem>>, vector<1x16x16xf32>
    %6 = vector.shape_cast %5 : vector<1x16x16xf32> to vector<16x16xf32>
    %c1_7 = arith.constant 1 : index
    %c0_8 = arith.constant 0 : index
    %c0_9 = arith.constant 0 : index
    %7 = vector.load %arg1[%c1_7, %c0_8, %c0_9] : memref<2x16x64xf32, #tpu.memory_space<vmem>>, vector<1x16x64xf32>
    %8 = vector.shape_cast %7 : vector<1x16x64xf32> to vector<16x64xf32>
    %cst_10 = arith.constant dense<0.000000e+00> : vector<16x64xf32>
    %9 = tpu.matmul %6, %8, %cst_10 {dimension_numbers = #tpu.dot_dimension_numbers<[1], [0], [0], [1], [0, 0, 1, 1], [], []>} : vector<16x16xf32>, vector<16x64xf32>, vector<16x64xf32> -> vector<16x64xf32>
    %10 = arith.addf %4, %9 : vector<16x64xf32>
    %c0_11 = arith.constant 0 : index
    %c0_12 = arith.constant 0 : index
    %11 = vector.load %arg2[%c0_11, %c0_12] : memref<1x64xf32, #tpu.memory_space<vmem>>, vector<1x64xf32>
    %12 = vector.broadcast %11 : vector<1x64xf32> to vector<16x64xf32>
    %13 = arith.addf %10, %12 : vector<16x64xf32>
    %cst_13 = arith.constant 0.000000e+00 : f32
    %14 = vector.broadcast %cst_13 : f32 to vector<16x64xf32>
    %15 = arith.maximumf %13, %14 : vector<16x64xf32>
    %c0_14 = arith.constant 0 : index
    %c0_15 = arith.constant 0 : index
    %16 = vector.load %arg3[%c0_14, %c0_15] : memref<64x8xf32, #tpu.memory_space<vmem>>, vector<64x8xf32>
    %cst_16 = arith.constant dense<0.000000e+00> : vector<16x8xf32>
    %17 = tpu.matmul %15, %16, %cst_16 {dimension_numbers = #tpu.dot_dimension_numbers<[1], [0], [0], [1], [0, 0, 1, 1], [], []>} : vector<16x64xf32>, vector<64x8xf32>, vector<16x8xf32> -> vector<16x8xf32>
    %c0_17 = arith.constant 0 : index
    %c0_18 = arith.constant 0 : index
    %18 = vector.load %arg4[%c0_17, %c0_18] : memref<1x8xf32, #tpu.memory_space<vmem>>, vector<1x8xf32>
    %19 = vector.broadcast %18 : vector<1x8xf32> to vector<16x8xf32>
    %20 = arith.addf %17, %19 : vector<16x8xf32>
    %21 = vector.extract_strided_slice %20 {offsets = [0, 0], sizes = [16, 2], strides = [1, 1]} : vector<16x8xf32> to vector<16x2xf32>
    %c0_19 = arith.constant 0 : index
    %c0_20 = arith.constant 0 : index
    %22 = vector.load %arg5[%c0_19, %c0_20] : memref<16x2xf32, #tpu.memory_space<vmem>>, vector<16x2xf32>
    tpu.vector_store %arg5[%c0_19, %c0_20], %21 {strides = array<i32>} : memref<16x2xf32, #tpu.memory_space<vmem>>, vector<16x2xf32>,
    %23 = vector.extract_strided_slice %20 {offsets = [0, 2], sizes = [16, 6], strides = [1, 1]} : vector<16x8xf32> to vector<16x6xf32>
    %24 = math.tanh %23 : vector<16x6xf32>
    %c0_21 = arith.constant 0 : index
    %c0_22 = arith.constant 0 : index
    %25 = vector.load %arg6[%c0_21, %c0_22] : memref<16x6xf32, #tpu.memory_space<vmem>>, vector<16x6xf32>
    tpu.vector_store %arg6[%c0_21, %c0_22], %24 {strides = array<i32>} : memref<16x6xf32, #tpu.memory_space<vmem>>, vector<16x6xf32>,
    return
  }
}

module attributes {stable_mosaic.version = 11 : i64} {
  func.func @_gru_layer_kernel(%arg0: i32, %arg1: memref<2x16x16xf32, #tpu.memory_space<vmem>>, %arg2: memref<1x32x48xf32, #tpu.memory_space<vmem>>, %arg3: memref<1x1x48xf32, #tpu.memory_space<vmem>>, %arg4: memref<1x16x48xf32, #tpu.memory_space<vmem>>, %arg5: memref<1x1x48xf32, #tpu.memory_space<vmem>>, %arg6: memref<1x16x16xf32, #tpu.memory_space<vmem>>, %arg7: memref<16x48xf32, #tpu.memory_space<vmem>>) attributes {dimension_semantics = [#tpu.dimension_semantics<parallel>], iteration_bounds = array<i64: 2>, scalar_prefetch = 0 : i64, scratch_operands = 1 : i64, tpu.core_type = #tpu.core_type<tc>, window_params = [{pipeline_mode = #tpu.pipeline_mode<synchronous>, transform_indices = @transform_0, window_bounds = array<i64: 2, 16, 16>}, {transform_indices = @transform_1, window_bounds = array<i64: 1, 32, 48>}, {transform_indices = @transform_2, window_bounds = array<i64: 1, 1, 48>}, {transform_indices = @transform_3, window_bounds = array<i64: 1, 16, 48>}, {transform_indices = @transform_4, window_bounds = array<i64: 1, 1, 48>}, {transform_indices = @transform_5, window_bounds = array<i64: 1, 16, 16>}]} {
    %c0 = arith.constant 0 : index
    %c0_0 = arith.constant 0 : index
    %c0_1 = arith.constant 0 : index
    %0 = vector.load %arg1[%c0, %c0_0, %c0_1] : memref<2x16x16xf32, #tpu.memory_space<vmem>>, vector<1x16x16xf32>
    %1 = vector.shape_cast %0 : vector<1x16x16xf32> to vector<16x16xf32>
    %c1 = arith.constant 1 : index
    %c0_2 = arith.constant 0 : index
    %c0_3 = arith.constant 0 : index
    %2 = vector.load %arg1[%c1, %c0_2, %c0_3] : memref<2x16x16xf32, #tpu.memory_space<vmem>>, vector<1x16x16xf32>
    %3 = vector.shape_cast %2 : vector<1x16x16xf32> to vector<16x16xf32>
    %4 = tpu.concatenate %1, %3 in 1 : vector<16x16xf32>, vector<16x16xf32> -> vector<16x32xf32>
    %c0_4 = arith.constant 0 : index
    %c0_5 = arith.constant 0 : index
    %c0_6 = arith.constant 0 : index
    %5 = vector.load %arg2[%c0_4, %c0_5, %c0_6] : memref<1x32x48xf32, #tpu.memory_space<vmem>>, vector<1x32x48xf32>
    %6 = vector.shape_cast %5 : vector<1x32x48xf32> to vector<32x48xf32>
    %cst = arith.constant dense<0.000000e+00> : vector<16x48xf32>
    %7 = tpu.matmul %4, %6, %cst {dimension_numbers = #tpu.dot_dimension_numbers<[1], [0], [0], [1], [0, 0, 1, 1], [], []>} : vector<16x32xf32>, vector<32x48xf32>, vector<16x48xf32> -> vector<16x48xf32>
    %c0_7 = arith.constant 0 : index
    %c0_8 = arith.constant 0 : index
    %c0_9 = arith.constant 0 : index
    %8 = vector.load %arg3[%c0_7, %c0_8, %c0_9] : memref<1x1x48xf32, #tpu.memory_space<vmem>>, vector<1x1x48xf32>
    %9 = vector.shape_cast %8 : vector<1x1x48xf32> to vector<1x48xf32>
    %10 = vector.broadcast %9 : vector<1x48xf32> to vector<16x48xf32>
    %11 = arith.addf %7, %10 : vector<16x48xf32>
    %c0_10 = arith.constant 0 : index
    %c0_11 = arith.constant 0 : index
    %12 = vector.load %arg7[%c0_10, %c0_11] : memref<16x48xf32, #tpu.memory_space<vmem>>, vector<16x48xf32>
    tpu.vector_store %arg7[%c0_10, %c0_11], %11 {strides = array<i32>} : memref<16x48xf32, #tpu.memory_space<vmem>>, vector<16x48xf32>,
    %c0_12 = arith.constant 0 : index
    %c0_13 = arith.constant 0 : index
    %c0_14 = arith.constant 0 : index
    %13 = vector.load %arg4[%c0_12, %c0_13, %c0_14] : memref<1x16x48xf32, #tpu.memory_space<vmem>>, vector<1x16x48xf32>
    %14 = vector.shape_cast %13 : vector<1x16x48xf32> to vector<16x48xf32>
    %c0_15 = arith.constant 0 : index
    %c0_16 = arith.constant 0 : index
    %c0_17 = arith.constant 0 : index
    %15 = vector.load %arg5[%c0_15, %c0_16, %c0_17] : memref<1x1x48xf32, #tpu.memory_space<vmem>>, vector<1x1x48xf32>
    %16 = vector.shape_cast %15 : vector<1x1x48xf32> to vector<1x48xf32>
    %cst_18 = arith.constant 0.000000e+00 : f32
    %17 = vector.broadcast %cst_18 : f32 to vector<2x16xf32>
    %c0_i32 = arith.constant 0 : i32
    %18 = arith.cmpi eq, %arg0, %c0_i32 : i32
    %c0_i32_19 = arith.constant 0 : i32
    %c7_i32 = arith.constant 7 : i32
    %19 = arith.select %18, %c0_i32_19, %c7_i32 : i32
    %c2_i32 = arith.constant 2 : i32
    %20 = arith.muli %19, %c2_i32 : i32
    %21 = arith.index_cast %20 : i32 to index
    %c0_20 = arith.constant 0 : index
    %22 = vector.load %arg7[%21, %c0_20] : memref<16x48xf32, #tpu.memory_space<vmem>>, vector<2x48xf32>
    %cst_21 = arith.constant dense<0.000000e+00> : vector<2x48xf32>
    %23 = tpu.matmul %17, %14, %cst_21 {dimension_numbers = #tpu.dot_dimension_numbers<[1], [0], [0], [1], [0, 0, 1, 1], [], []>} : vector<2x16xf32>, vector<16x48xf32>, vector<2x48xf32> -> vector<2x48xf32>
    %24 = vector.broadcast %16 : vector<1x48xf32> to vector<2x48xf32>
    %25 = arith.addf %23, %24 : vector<2x48xf32>
    %26 = vector.extract_strided_slice %22 {offsets = [0, 0], sizes = [2, 16], strides = [1, 1]} : vector<2x48xf32> to vector<2x16xf32>
    %27 = vector.extract_strided_slice %25 {offsets = [0, 0], sizes = [2, 16], strides = [1, 1]} : vector<2x48xf32> to vector<2x16xf32>
    %28 = arith.addf %26, %27 : vector<2x16xf32>
    %29 = arith.negf %28 : vector<2x16xf32>
    %30 = math.exp %29 : vector<2x16xf32>
    %cst_22 = arith.constant 1.000000e+00 : f32
    %31 = vector.broadcast %cst_22 : f32 to vector<2x16xf32>
    %32 = arith.addf %31, %30 : vector<2x16xf32>
    %33 = arith.divf %31, %32 : vector<2x16xf32>
    %34 = vector.extract_strided_slice %22 {offsets = [0, 16], sizes = [2, 16], strides = [1, 1]} : vector<2x48xf32> to vector<2x16xf32>
    %35 = vector.extract_strided_slice %25 {offsets = [0, 16], sizes = [2, 16], strides = [1, 1]} : vector<2x48xf32> to vector<2x16xf32>
    %36 = arith.addf %34, %35 : vector<2x16xf32>
    %37 = arith.negf %36 : vector<2x16xf32>
    %38 = math.exp %37 : vector<2x16xf32>
    %cst_23 = arith.constant 1.000000e+00 : f32
    %39 = vector.broadcast %cst_23 : f32 to vector<2x16xf32>
    %40 = arith.addf %39, %38 : vector<2x16xf32>
    %41 = arith.divf %39, %40 : vector<2x16xf32>
    %42 = vector.extract_strided_slice %22 {offsets = [0, 32], sizes = [2, 16], strides = [1, 1]} : vector<2x48xf32> to vector<2x16xf32>
    %43 = vector.extract_strided_slice %25 {offsets = [0, 32], sizes = [2, 16], strides = [1, 1]} : vector<2x48xf32> to vector<2x16xf32>
    %44 = arith.mulf %33, %43 : vector<2x16xf32>
    %45 = arith.addf %42, %44 : vector<2x16xf32>
    %46 = math.tanh %45 : vector<2x16xf32>
    %cst_24 = arith.constant 1.000000e+00 : f32
    %47 = vector.broadcast %cst_24 : f32 to vector<2x16xf32>
    %48 = arith.subf %47, %41 : vector<2x16xf32>
    %49 = arith.mulf %48, %46 : vector<2x16xf32>
    %50 = arith.mulf %41, %17 : vector<2x16xf32>
    %51 = arith.addf %49, %50 : vector<2x16xf32>
    %c0_25 = arith.constant 0 : index
    %52 = arith.index_cast %20 : i32 to index
    %c0_26 = arith.constant 0 : index
    %53 = vector.load %arg6[%c0_25, %52, %c0_26] : memref<1x16x16xf32, #tpu.memory_space<vmem>>, vector<1x2x16xf32>
    %54 = vector.shape_cast %53 : vector<1x2x16xf32> to vector<2x16xf32>
    %55 = vector.shape_cast %51 : vector<2x16xf32> to vector<1x2x16xf32>
    tpu.vector_store %arg6[%c0_25, %52, %c0_26], %55 {strides = array<i32>} : memref<1x16x16xf32, #tpu.memory_space<vmem>>, vector<1x2x16xf32>,
    %c0_i32_27 = arith.constant 0 : i32
    %56 = arith.cmpi eq, %arg0, %c0_i32_27 : i32
    %c1_i32 = arith.constant 1 : i32
    %c6_i32 = arith.constant 6 : i32
    %57 = arith.select %56, %c1_i32, %c6_i32 : i32
    %c2_i32_28 = arith.constant 2 : i32
    %58 = arith.muli %57, %c2_i32_28 : i32
    %59 = arith.index_cast %58 : i32 to index
    %c0_29 = arith.constant 0 : index
    %60 = vector.load %arg7[%59, %c0_29] : memref<16x48xf32, #tpu.memory_space<vmem>>, vector<2x48xf32>
    %cst_30 = arith.constant dense<0.000000e+00> : vector<2x48xf32>
    %61 = tpu.matmul %51, %14, %cst_30 {dimension_numbers = #tpu.dot_dimension_numbers<[1], [0], [0], [1], [0, 0, 1, 1], [], []>} : vector<2x16xf32>, vector<16x48xf32>, vector<2x48xf32> -> vector<2x48xf32>
    %62 = vector.broadcast %16 : vector<1x48xf32> to vector<2x48xf32>
    %63 = arith.addf %61, %62 : vector<2x48xf32>
    %64 = vector.extract_strided_slice %60 {offsets = [0, 0], sizes = [2, 16], strides = [1, 1]} : vector<2x48xf32> to vector<2x16xf32>
    %65 = vector.extract_strided_slice %63 {offsets = [0, 0], sizes = [2, 16], strides = [1, 1]} : vector<2x48xf32> to vector<2x16xf32>
    %66 = arith.addf %64, %65 : vector<2x16xf32>
    %67 = arith.negf %66 : vector<2x16xf32>
    %68 = math.exp %67 : vector<2x16xf32>
    %cst_31 = arith.constant 1.000000e+00 : f32
    %69 = vector.broadcast %cst_31 : f32 to vector<2x16xf32>
    %70 = arith.addf %69, %68 : vector<2x16xf32>
    %71 = arith.divf %69, %70 : vector<2x16xf32>
    %72 = vector.extract_strided_slice %60 {offsets = [0, 16], sizes = [2, 16], strides = [1, 1]} : vector<2x48xf32> to vector<2x16xf32>
    %73 = vector.extract_strided_slice %63 {offsets = [0, 16], sizes = [2, 16], strides = [1, 1]} : vector<2x48xf32> to vector<2x16xf32>
    %74 = arith.addf %72, %73 : vector<2x16xf32>
    %75 = arith.negf %74 : vector<2x16xf32>
    %76 = math.exp %75 : vector<2x16xf32>
    %cst_32 = arith.constant 1.000000e+00 : f32
    %77 = vector.broadcast %cst_32 : f32 to vector<2x16xf32>
    %78 = arith.addf %77, %76 : vector<2x16xf32>
    %79 = arith.divf %77, %78 : vector<2x16xf32>
    %80 = vector.extract_strided_slice %60 {offsets = [0, 32], sizes = [2, 16], strides = [1, 1]} : vector<2x48xf32> to vector<2x16xf32>
    %81 = vector.extract_strided_slice %63 {offsets = [0, 32], sizes = [2, 16], strides = [1, 1]} : vector<2x48xf32> to vector<2x16xf32>
    %82 = arith.mulf %71, %81 : vector<2x16xf32>
    %83 = arith.addf %80, %82 : vector<2x16xf32>
    %84 = math.tanh %83 : vector<2x16xf32>
    %cst_33 = arith.constant 1.000000e+00 : f32
    %85 = vector.broadcast %cst_33 : f32 to vector<2x16xf32>
    %86 = arith.subf %85, %79 : vector<2x16xf32>
    %87 = arith.mulf %86, %84 : vector<2x16xf32>
    %88 = arith.mulf %79, %51 : vector<2x16xf32>
    %89 = arith.addf %87, %88 : vector<2x16xf32>
    %c0_34 = arith.constant 0 : index
    %90 = arith.index_cast %58 : i32 to index
    %c0_35 = arith.constant 0 : index
    %91 = vector.load %arg6[%c0_34, %90, %c0_35] : memref<1x16x16xf32, #tpu.memory_space<vmem>>, vector<1x2x16xf32>
    %92 = vector.shape_cast %91 : vector<1x2x16xf32> to vector<2x16xf32>
    %93 = vector.shape_cast %89 : vector<2x16xf32> to vector<1x2x16xf32>
    tpu.vector_store %arg6[%c0_34, %90, %c0_35], %93 {strides = array<i32>} : memref<1x16x16xf32, #tpu.memory_space<vmem>>, vector<1x2x16xf32>,
    %c0_i32_36 = arith.constant 0 : i32
    %94 = arith.cmpi eq, %arg0, %c0_i32_36 : i32
    %c2_i32_37 = arith.constant 2 : i32
    %c5_i32 = arith.constant 5 : i32
    %95 = arith.select %94, %c2_i32_37, %c5_i32 : i32
    %c2_i32_38 = arith.constant 2 : i32
    %96 = arith.muli %95, %c2_i32_38 : i32
    %97 = arith.index_cast %96 : i32 to index
    %c0_39 = arith.constant 0 : index
    %98 = vector.load %arg7[%97, %c0_39] : memref<16x48xf32, #tpu.memory_space<vmem>>, vector<2x48xf32>
    %cst_40 = arith.constant dense<0.000000e+00> : vector<2x48xf32>
    %99 = tpu.matmul %89, %14, %cst_40 {dimension_numbers = #tpu.dot_dimension_numbers<[1], [0], [0], [1], [0, 0, 1, 1], [], []>} : vector<2x16xf32>, vector<16x48xf32>, vector<2x48xf32> -> vector<2x48xf32>
    %100 = vector.broadcast %16 : vector<1x48xf32> to vector<2x48xf32>
    %101 = arith.addf %99, %100 : vector<2x48xf32>
    %102 = vector.extract_strided_slice %98 {offsets = [0, 0], sizes = [2, 16], strides = [1, 1]} : vector<2x48xf32> to vector<2x16xf32>
    %103 = vector.extract_strided_slice %101 {offsets = [0, 0], sizes = [2, 16], strides = [1, 1]} : vector<2x48xf32> to vector<2x16xf32>
    %104 = arith.addf %102, %103 : vector<2x16xf32>
    %105 = arith.negf %104 : vector<2x16xf32>
    %106 = math.exp %105 : vector<2x16xf32>
    %cst_41 = arith.constant 1.000000e+00 : f32
    %107 = vector.broadcast %cst_41 : f32 to vector<2x16xf32>
    %108 = arith.addf %107, %106 : vector<2x16xf32>
    %109 = arith.divf %107, %108 : vector<2x16xf32>
    %110 = vector.extract_strided_slice %98 {offsets = [0, 16], sizes = [2, 16], strides = [1, 1]} : vector<2x48xf32> to vector<2x16xf32>
    %111 = vector.extract_strided_slice %101 {offsets = [0, 16], sizes = [2, 16], strides = [1, 1]} : vector<2x48xf32> to vector<2x16xf32>
    %112 = arith.addf %110, %111 : vector<2x16xf32>
    %113 = arith.negf %112 : vector<2x16xf32>
    %114 = math.exp %113 : vector<2x16xf32>
    %cst_42 = arith.constant 1.000000e+00 : f32
    %115 = vector.broadcast %cst_42 : f32 to vector<2x16xf32>
    %116 = arith.addf %115, %114 : vector<2x16xf32>
    %117 = arith.divf %115, %116 : vector<2x16xf32>
    %118 = vector.extract_strided_slice %98 {offsets = [0, 32], sizes = [2, 16], strides = [1, 1]} : vector<2x48xf32> to vector<2x16xf32>
    %119 = vector.extract_strided_slice %101 {offsets = [0, 32], sizes = [2, 16], strides = [1, 1]} : vector<2x48xf32> to vector<2x16xf32>
    %120 = arith.mulf %109, %119 : vector<2x16xf32>
    %121 = arith.addf %118, %120 : vector<2x16xf32>
    %122 = math.tanh %121 : vector<2x16xf32>
    %cst_43 = arith.constant 1.000000e+00 : f32
    %123 = vector.broadcast %cst_43 : f32 to vector<2x16xf32>
    %124 = arith.subf %123, %117 : vector<2x16xf32>
    %125 = arith.mulf %124, %122 : vector<2x16xf32>
    %126 = arith.mulf %117, %89 : vector<2x16xf32>
    %127 = arith.addf %125, %126 : vector<2x16xf32>
    %c0_44 = arith.constant 0 : index
    %128 = arith.index_cast %96 : i32 to index
    %c0_45 = arith.constant 0 : index
    %129 = vector.load %arg6[%c0_44, %128, %c0_45] : memref<1x16x16xf32, #tpu.memory_space<vmem>>, vector<1x2x16xf32>
    %130 = vector.shape_cast %129 : vector<1x2x16xf32> to vector<2x16xf32>
    %131 = vector.shape_cast %127 : vector<2x16xf32> to vector<1x2x16xf32>
    tpu.vector_store %arg6[%c0_44, %128, %c0_45], %131 {strides = array<i32>} : memref<1x16x16xf32, #tpu.memory_space<vmem>>, vector<1x2x16xf32>,
    %c0_i32_46 = arith.constant 0 : i32
    %132 = arith.cmpi eq, %arg0, %c0_i32_46 : i32
    %c3_i32 = arith.constant 3 : i32
    %c4_i32 = arith.constant 4 : i32
    %133 = arith.select %132, %c3_i32, %c4_i32 : i32
    %c2_i32_47 = arith.constant 2 : i32
    %134 = arith.muli %133, %c2_i32_47 : i32
    %135 = arith.index_cast %134 : i32 to index
    %c0_48 = arith.constant 0 : index
    %136 = vector.load %arg7[%135, %c0_48] : memref<16x48xf32, #tpu.memory_space<vmem>>, vector<2x48xf32>
    %cst_49 = arith.constant dense<0.000000e+00> : vector<2x48xf32>
    %137 = tpu.matmul %127, %14, %cst_49 {dimension_numbers = #tpu.dot_dimension_numbers<[1], [0], [0], [1], [0, 0, 1, 1], [], []>} : vector<2x16xf32>, vector<16x48xf32>, vector<2x48xf32> -> vector<2x48xf32>
    %138 = vector.broadcast %16 : vector<1x48xf32> to vector<2x48xf32>
    %139 = arith.addf %137, %138 : vector<2x48xf32>
    %140 = vector.extract_strided_slice %136 {offsets = [0, 0], sizes = [2, 16], strides = [1, 1]} : vector<2x48xf32> to vector<2x16xf32>
    %141 = vector.extract_strided_slice %139 {offsets = [0, 0], sizes = [2, 16], strides = [1, 1]} : vector<2x48xf32> to vector<2x16xf32>
    %142 = arith.addf %140, %141 : vector<2x16xf32>
    %143 = arith.negf %142 : vector<2x16xf32>
    %144 = math.exp %143 : vector<2x16xf32>
    %cst_50 = arith.constant 1.000000e+00 : f32
    %145 = vector.broadcast %cst_50 : f32 to vector<2x16xf32>
    %146 = arith.addf %145, %144 : vector<2x16xf32>
    %147 = arith.divf %145, %146 : vector<2x16xf32>
    %148 = vector.extract_strided_slice %136 {offsets = [0, 16], sizes = [2, 16], strides = [1, 1]} : vector<2x48xf32> to vector<2x16xf32>
    %149 = vector.extract_strided_slice %139 {offsets = [0, 16], sizes = [2, 16], strides = [1, 1]} : vector<2x48xf32> to vector<2x16xf32>
    %150 = arith.addf %148, %149 : vector<2x16xf32>
    %151 = arith.negf %150 : vector<2x16xf32>
    %152 = math.exp %151 : vector<2x16xf32>
    %cst_51 = arith.constant 1.000000e+00 : f32
    %153 = vector.broadcast %cst_51 : f32 to vector<2x16xf32>
    %154 = arith.addf %153, %152 : vector<2x16xf32>
    %155 = arith.divf %153, %154 : vector<2x16xf32>
    %156 = vector.extract_strided_slice %136 {offsets = [0, 32], sizes = [2, 16], strides = [1, 1]} : vector<2x48xf32> to vector<2x16xf32>
    %157 = vector.extract_strided_slice %139 {offsets = [0, 32], sizes = [2, 16], strides = [1, 1]} : vector<2x48xf32> to vector<2x16xf32>
    %158 = arith.mulf %147, %157 : vector<2x16xf32>
    %159 = arith.addf %156, %158 : vector<2x16xf32>
    %160 = math.tanh %159 : vector<2x16xf32>
    %cst_52 = arith.constant 1.000000e+00 : f32
    %161 = vector.broadcast %cst_52 : f32 to vector<2x16xf32>
    %162 = arith.subf %161, %155 : vector<2x16xf32>
    %163 = arith.mulf %162, %160 : vector<2x16xf32>
    %164 = arith.mulf %155, %127 : vector<2x16xf32>
    %165 = arith.addf %163, %164 : vector<2x16xf32>
    %c0_53 = arith.constant 0 : index
    %166 = arith.index_cast %134 : i32 to index
    %c0_54 = arith.constant 0 : index
    %167 = vector.load %arg6[%c0_53, %166, %c0_54] : memref<1x16x16xf32, #tpu.memory_space<vmem>>, vector<1x2x16xf32>
    %168 = vector.shape_cast %167 : vector<1x2x16xf32> to vector<2x16xf32>
    %169 = vector.shape_cast %165 : vector<2x16xf32> to vector<1x2x16xf32>
    tpu.vector_store %arg6[%c0_53, %166, %c0_54], %169 {strides = array<i32>} : memref<1x16x16xf32, #tpu.memory_space<vmem>>, vector<1x2x16xf32>,
    %c0_i32_55 = arith.constant 0 : i32
    %170 = arith.cmpi eq, %arg0, %c0_i32_55 : i32
    %c4_i32_56 = arith.constant 4 : i32
    %c3_i32_57 = arith.constant 3 : i32
    %171 = arith.select %170, %c4_i32_56, %c3_i32_57 : i32
    %c2_i32_58 = arith.constant 2 : i32
    %172 = arith.muli %171, %c2_i32_58 : i32
    %173 = arith.index_cast %172 : i32 to index
    %c0_59 = arith.constant 0 : index
    %174 = vector.load %arg7[%173, %c0_59] : memref<16x48xf32, #tpu.memory_space<vmem>>, vector<2x48xf32>
    %cst_60 = arith.constant dense<0.000000e+00> : vector<2x48xf32>
    %175 = tpu.matmul %165, %14, %cst_60 {dimension_numbers = #tpu.dot_dimension_numbers<[1], [0], [0], [1], [0, 0, 1, 1], [], []>} : vector<2x16xf32>, vector<16x48xf32>, vector<2x48xf32> -> vector<2x48xf32>
    %176 = vector.broadcast %16 : vector<1x48xf32> to vector<2x48xf32>
    %177 = arith.addf %175, %176 : vector<2x48xf32>
    %178 = vector.extract_strided_slice %174 {offsets = [0, 0], sizes = [2, 16], strides = [1, 1]} : vector<2x48xf32> to vector<2x16xf32>
    %179 = vector.extract_strided_slice %177 {offsets = [0, 0], sizes = [2, 16], strides = [1, 1]} : vector<2x48xf32> to vector<2x16xf32>
    %180 = arith.addf %178, %179 : vector<2x16xf32>
    %181 = arith.negf %180 : vector<2x16xf32>
    %182 = math.exp %181 : vector<2x16xf32>
    %cst_61 = arith.constant 1.000000e+00 : f32
    %183 = vector.broadcast %cst_61 : f32 to vector<2x16xf32>
    %184 = arith.addf %183, %182 : vector<2x16xf32>
    %185 = arith.divf %183, %184 : vector<2x16xf32>
    %186 = vector.extract_strided_slice %174 {offsets = [0, 16], sizes = [2, 16], strides = [1, 1]} : vector<2x48xf32> to vector<2x16xf32>
    %187 = vector.extract_strided_slice %177 {offsets = [0, 16], sizes = [2, 16], strides = [1, 1]} : vector<2x48xf32> to vector<2x16xf32>
    %188 = arith.addf %186, %187 : vector<2x16xf32>
    %189 = arith.negf %188 : vector<2x16xf32>
    %190 = math.exp %189 : vector<2x16xf32>
    %cst_62 = arith.constant 1.000000e+00 : f32
    %191 = vector.broadcast %cst_62 : f32 to vector<2x16xf32>
    %192 = arith.addf %191, %190 : vector<2x16xf32>
    %193 = arith.divf %191, %192 : vector<2x16xf32>
    %194 = vector.extract_strided_slice %174 {offsets = [0, 32], sizes = [2, 16], strides = [1, 1]} : vector<2x48xf32> to vector<2x16xf32>
    %195 = vector.extract_strided_slice %177 {offsets = [0, 32], sizes = [2, 16], strides = [1, 1]} : vector<2x48xf32> to vector<2x16xf32>
    %196 = arith.mulf %185, %195 : vector<2x16xf32>
    %197 = arith.addf %194, %196 : vector<2x16xf32>
    %198 = math.tanh %197 : vector<2x16xf32>
    %cst_63 = arith.constant 1.000000e+00 : f32
    %199 = vector.broadcast %cst_63 : f32 to vector<2x16xf32>
    %200 = arith.subf %199, %193 : vector<2x16xf32>
    %201 = arith.mulf %200, %198 : vector<2x16xf32>
    %202 = arith.mulf %193, %165 : vector<2x16xf32>
    %203 = arith.addf %201, %202 : vector<2x16xf32>
    %c0_64 = arith.constant 0 : index
    %204 = arith.index_cast %172 : i32 to index
    %c0_65 = arith.constant 0 : index
    %205 = vector.load %arg6[%c0_64, %204, %c0_65] : memref<1x16x16xf32, #tpu.memory_space<vmem>>, vector<1x2x16xf32>
    %206 = vector.shape_cast %205 : vector<1x2x16xf32> to vector<2x16xf32>
    %207 = vector.shape_cast %203 : vector<2x16xf32> to vector<1x2x16xf32>
    tpu.vector_store %arg6[%c0_64, %204, %c0_65], %207 {strides = array<i32>} : memref<1x16x16xf32, #tpu.memory_space<vmem>>, vector<1x2x16xf32>,
    %c0_i32_66 = arith.constant 0 : i32
    %208 = arith.cmpi eq, %arg0, %c0_i32_66 : i32
    %c5_i32_67 = arith.constant 5 : i32
    %c2_i32_68 = arith.constant 2 : i32
    %209 = arith.select %208, %c5_i32_67, %c2_i32_68 : i32
    %c2_i32_69 = arith.constant 2 : i32
    %210 = arith.muli %209, %c2_i32_69 : i32
    %211 = arith.index_cast %210 : i32 to index
    %c0_70 = arith.constant 0 : index
    %212 = vector.load %arg7[%211, %c0_70] : memref<16x48xf32, #tpu.memory_space<vmem>>, vector<2x48xf32>
    %cst_71 = arith.constant dense<0.000000e+00> : vector<2x48xf32>
    %213 = tpu.matmul %203, %14, %cst_71 {dimension_numbers = #tpu.dot_dimension_numbers<[1], [0], [0], [1], [0, 0, 1, 1], [], []>} : vector<2x16xf32>, vector<16x48xf32>, vector<2x48xf32> -> vector<2x48xf32>
    %214 = vector.broadcast %16 : vector<1x48xf32> to vector<2x48xf32>
    %215 = arith.addf %213, %214 : vector<2x48xf32>
    %216 = vector.extract_strided_slice %212 {offsets = [0, 0], sizes = [2, 16], strides = [1, 1]} : vector<2x48xf32> to vector<2x16xf32>
    %217 = vector.extract_strided_slice %215 {offsets = [0, 0], sizes = [2, 16], strides = [1, 1]} : vector<2x48xf32> to vector<2x16xf32>
    %218 = arith.addf %216, %217 : vector<2x16xf32>
    %219 = arith.negf %218 : vector<2x16xf32>
    %220 = math.exp %219 : vector<2x16xf32>
    %cst_72 = arith.constant 1.000000e+00 : f32
    %221 = vector.broadcast %cst_72 : f32 to vector<2x16xf32>
    %222 = arith.addf %221, %220 : vector<2x16xf32>
    %223 = arith.divf %221, %222 : vector<2x16xf32>
    %224 = vector.extract_strided_slice %212 {offsets = [0, 16], sizes = [2, 16], strides = [1, 1]} : vector<2x48xf32> to vector<2x16xf32>
    %225 = vector.extract_strided_slice %215 {offsets = [0, 16], sizes = [2, 16], strides = [1, 1]} : vector<2x48xf32> to vector<2x16xf32>
    %226 = arith.addf %224, %225 : vector<2x16xf32>
    %227 = arith.negf %226 : vector<2x16xf32>
    %228 = math.exp %227 : vector<2x16xf32>
    %cst_73 = arith.constant 1.000000e+00 : f32
    %229 = vector.broadcast %cst_73 : f32 to vector<2x16xf32>
    %230 = arith.addf %229, %228 : vector<2x16xf32>
    %231 = arith.divf %229, %230 : vector<2x16xf32>
    %232 = vector.extract_strided_slice %212 {offsets = [0, 32], sizes = [2, 16], strides = [1, 1]} : vector<2x48xf32> to vector<2x16xf32>
    %233 = vector.extract_strided_slice %215 {offsets = [0, 32], sizes = [2, 16], strides = [1, 1]} : vector<2x48xf32> to vector<2x16xf32>
    %234 = arith.mulf %223, %233 : vector<2x16xf32>
    %235 = arith.addf %232, %234 : vector<2x16xf32>
    %236 = math.tanh %235 : vector<2x16xf32>
    %cst_74 = arith.constant 1.000000e+00 : f32
    %237 = vector.broadcast %cst_74 : f32 to vector<2x16xf32>
    %238 = arith.subf %237, %231 : vector<2x16xf32>
    %239 = arith.mulf %238, %236 : vector<2x16xf32>
    %240 = arith.mulf %231, %203 : vector<2x16xf32>
    %241 = arith.addf %239, %240 : vector<2x16xf32>
    %c0_75 = arith.constant 0 : index
    %242 = arith.index_cast %210 : i32 to index
    %c0_76 = arith.constant 0 : index
    %243 = vector.load %arg6[%c0_75, %242, %c0_76] : memref<1x16x16xf32, #tpu.memory_space<vmem>>, vector<1x2x16xf32>
    %244 = vector.shape_cast %243 : vector<1x2x16xf32> to vector<2x16xf32>
    %245 = vector.shape_cast %241 : vector<2x16xf32> to vector<1x2x16xf32>
    tpu.vector_store %arg6[%c0_75, %242, %c0_76], %245 {strides = array<i32>} : memref<1x16x16xf32, #tpu.memory_space<vmem>>, vector<1x2x16xf32>,
    %c0_i32_77 = arith.constant 0 : i32
    %246 = arith.cmpi eq, %arg0, %c0_i32_77 : i32
    %c6_i32_78 = arith.constant 6 : i32
    %c1_i32_79 = arith.constant 1 : i32
    %247 = arith.select %246, %c6_i32_78, %c1_i32_79 : i32
    %c2_i32_80 = arith.constant 2 : i32
    %248 = arith.muli %247, %c2_i32_80 : i32
    %249 = arith.index_cast %248 : i32 to index
    %c0_81 = arith.constant 0 : index
    %250 = vector.load %arg7[%249, %c0_81] : memref<16x48xf32, #tpu.memory_space<vmem>>, vector<2x48xf32>
    %cst_82 = arith.constant dense<0.000000e+00> : vector<2x48xf32>
    %251 = tpu.matmul %241, %14, %cst_82 {dimension_numbers = #tpu.dot_dimension_numbers<[1], [0], [0], [1], [0, 0, 1, 1], [], []>} : vector<2x16xf32>, vector<16x48xf32>, vector<2x48xf32> -> vector<2x48xf32>
    %252 = vector.broadcast %16 : vector<1x48xf32> to vector<2x48xf32>
    %253 = arith.addf %251, %252 : vector<2x48xf32>
    %254 = vector.extract_strided_slice %250 {offsets = [0, 0], sizes = [2, 16], strides = [1, 1]} : vector<2x48xf32> to vector<2x16xf32>
    %255 = vector.extract_strided_slice %253 {offsets = [0, 0], sizes = [2, 16], strides = [1, 1]} : vector<2x48xf32> to vector<2x16xf32>
    %256 = arith.addf %254, %255 : vector<2x16xf32>
    %257 = arith.negf %256 : vector<2x16xf32>
    %258 = math.exp %257 : vector<2x16xf32>
    %cst_83 = arith.constant 1.000000e+00 : f32
    %259 = vector.broadcast %cst_83 : f32 to vector<2x16xf32>
    %260 = arith.addf %259, %258 : vector<2x16xf32>
    %261 = arith.divf %259, %260 : vector<2x16xf32>
    %262 = vector.extract_strided_slice %250 {offsets = [0, 16], sizes = [2, 16], strides = [1, 1]} : vector<2x48xf32> to vector<2x16xf32>
    %263 = vector.extract_strided_slice %253 {offsets = [0, 16], sizes = [2, 16], strides = [1, 1]} : vector<2x48xf32> to vector<2x16xf32>
    %264 = arith.addf %262, %263 : vector<2x16xf32>
    %265 = arith.negf %264 : vector<2x16xf32>
    %266 = math.exp %265 : vector<2x16xf32>
    %cst_84 = arith.constant 1.000000e+00 : f32
    %267 = vector.broadcast %cst_84 : f32 to vector<2x16xf32>
    %268 = arith.addf %267, %266 : vector<2x16xf32>
    %269 = arith.divf %267, %268 : vector<2x16xf32>
    %270 = vector.extract_strided_slice %250 {offsets = [0, 32], sizes = [2, 16], strides = [1, 1]} : vector<2x48xf32> to vector<2x16xf32>
    %271 = vector.extract_strided_slice %253 {offsets = [0, 32], sizes = [2, 16], strides = [1, 1]} : vector<2x48xf32> to vector<2x16xf32>
    %272 = arith.mulf %261, %271 : vector<2x16xf32>
    %273 = arith.addf %270, %272 : vector<2x16xf32>
    %274 = math.tanh %273 : vector<2x16xf32>
    %cst_85 = arith.constant 1.000000e+00 : f32
    %275 = vector.broadcast %cst_85 : f32 to vector<2x16xf32>
    %276 = arith.subf %275, %269 : vector<2x16xf32>
    %277 = arith.mulf %276, %274 : vector<2x16xf32>
    %278 = arith.mulf %269, %241 : vector<2x16xf32>
    %279 = arith.addf %277, %278 : vector<2x16xf32>
    %c0_86 = arith.constant 0 : index
    %280 = arith.index_cast %248 : i32 to index
    %c0_87 = arith.constant 0 : index
    %281 = vector.load %arg6[%c0_86, %280, %c0_87] : memref<1x16x16xf32, #tpu.memory_space<vmem>>, vector<1x2x16xf32>
    %282 = vector.shape_cast %281 : vector<1x2x16xf32> to vector<2x16xf32>
    %283 = vector.shape_cast %279 : vector<2x16xf32> to vector<1x2x16xf32>
    tpu.vector_store %arg6[%c0_86, %280, %c0_87], %283 {strides = array<i32>} : memref<1x16x16xf32, #tpu.memory_space<vmem>>, vector<1x2x16xf32>,
    %c0_i32_88 = arith.constant 0 : i32
    %284 = arith.cmpi eq, %arg0, %c0_i32_88 : i32
    %c7_i32_89 = arith.constant 7 : i32
    %c0_i32_90 = arith.constant 0 : i32
    %285 = arith.select %284, %c7_i32_89, %c0_i32_90 : i32
    %c2_i32_91 = arith.constant 2 : i32
    %286 = arith.muli %285, %c2_i32_91 : i32
    %287 = arith.index_cast %286 : i32 to index
    %c0_92 = arith.constant 0 : index
    %288 = vector.load %arg7[%287, %c0_92] : memref<16x48xf32, #tpu.memory_space<vmem>>, vector<2x48xf32>
    %cst_93 = arith.constant dense<0.000000e+00> : vector<2x48xf32>
    %289 = tpu.matmul %279, %14, %cst_93 {dimension_numbers = #tpu.dot_dimension_numbers<[1], [0], [0], [1], [0, 0, 1, 1], [], []>} : vector<2x16xf32>, vector<16x48xf32>, vector<2x48xf32> -> vector<2x48xf32>
    %290 = vector.broadcast %16 : vector<1x48xf32> to vector<2x48xf32>
    %291 = arith.addf %289, %290 : vector<2x48xf32>
    %292 = vector.extract_strided_slice %288 {offsets = [0, 0], sizes = [2, 16], strides = [1, 1]} : vector<2x48xf32> to vector<2x16xf32>
    %293 = vector.extract_strided_slice %291 {offsets = [0, 0], sizes = [2, 16], strides = [1, 1]} : vector<2x48xf32> to vector<2x16xf32>
    %294 = arith.addf %292, %293 : vector<2x16xf32>
    %295 = arith.negf %294 : vector<2x16xf32>
    %296 = math.exp %295 : vector<2x16xf32>
    %cst_94 = arith.constant 1.000000e+00 : f32
    %297 = vector.broadcast %cst_94 : f32 to vector<2x16xf32>
    %298 = arith.addf %297, %296 : vector<2x16xf32>
    %299 = arith.divf %297, %298 : vector<2x16xf32>
    %300 = vector.extract_strided_slice %288 {offsets = [0, 16], sizes = [2, 16], strides = [1, 1]} : vector<2x48xf32> to vector<2x16xf32>
    %301 = vector.extract_strided_slice %291 {offsets = [0, 16], sizes = [2, 16], strides = [1, 1]} : vector<2x48xf32> to vector<2x16xf32>
    %302 = arith.addf %300, %301 : vector<2x16xf32>
    %303 = arith.negf %302 : vector<2x16xf32>
    %304 = math.exp %303 : vector<2x16xf32>
    %cst_95 = arith.constant 1.000000e+00 : f32
    %305 = vector.broadcast %cst_95 : f32 to vector<2x16xf32>
    %306 = arith.addf %305, %304 : vector<2x16xf32>
    %307 = arith.divf %305, %306 : vector<2x16xf32>
    %308 = vector.extract_strided_slice %288 {offsets = [0, 32], sizes = [2, 16], strides = [1, 1]} : vector<2x48xf32> to vector<2x16xf32>
    %309 = vector.extract_strided_slice %291 {offsets = [0, 32], sizes = [2, 16], strides = [1, 1]} : vector<2x48xf32> to vector<2x16xf32>
    %310 = arith.mulf %299, %309 : vector<2x16xf32>
    %311 = arith.addf %308, %310 : vector<2x16xf32>
    %312 = math.tanh %311 : vector<2x16xf32>
    %cst_96 = arith.constant 1.000000e+00 : f32
    %313 = vector.broadcast %cst_96 : f32 to vector<2x16xf32>
    %314 = arith.subf %313, %307 : vector<2x16xf32>
    %315 = arith.mulf %314, %312 : vector<2x16xf32>
    %316 = arith.mulf %307, %279 : vector<2x16xf32>
    %317 = arith.addf %315, %316 : vector<2x16xf32>
    %c0_97 = arith.constant 0 : index
    %318 = arith.index_cast %286 : i32 to index
    %c0_98 = arith.constant 0 : index
    %319 = vector.load %arg6[%c0_97, %318, %c0_98] : memref<1x16x16xf32, #tpu.memory_space<vmem>>, vector<1x2x16xf32>
    %320 = vector.shape_cast %319 : vector<1x2x16xf32> to vector<2x16xf32>
    %321 = vector.shape_cast %317 : vector<2x16xf32> to vector<1x2x16xf32>
    tpu.vector_store %arg6[%c0_97, %318, %c0_98], %321 {strides = array<i32>} : memref<1x16x16xf32, #tpu.memory_space<vmem>>, vector<1x2x16xf32>,
    return
  }
  func.func @transform_0(%arg0: i32) -> (i32, i32, i32) {
    %c0_i32 = arith.constant 0 : i32
    %c0_i32_0 = arith.constant 0 : i32
    %c0_i32_1 = arith.constant 0 : i32
    %c0_i32_2 = arith.constant 0 : i32
    return %c0_i32, %c0_i32_0, %c0_i32_1 : i32, i32, i32
  }
  func.func @transform_1(%arg0: i32) -> (i32, i32, i32) {
    %c0_i32 = arith.constant 0 : i32
    %c0_i32_0 = arith.constant 0 : i32
    %c0_i32_1 = arith.constant 0 : i32
    return %arg0, %c0_i32, %c0_i32_0 : i32, i32, i32
  }
  func.func @transform_2(%arg0: i32) -> (i32, i32, i32) {
    %c0_i32 = arith.constant 0 : i32
    %c0_i32_0 = arith.constant 0 : i32
    %c0_i32_1 = arith.constant 0 : i32
    return %arg0, %c0_i32, %c0_i32_0 : i32, i32, i32
  }
  func.func @transform_3(%arg0: i32) -> (i32, i32, i32) {
    %c0_i32 = arith.constant 0 : i32
    %c0_i32_0 = arith.constant 0 : i32
    %c0_i32_1 = arith.constant 0 : i32
    return %arg0, %c0_i32, %c0_i32_0 : i32, i32, i32
  }
  func.func @transform_4(%arg0: i32) -> (i32, i32, i32) {
    %c0_i32 = arith.constant 0 : i32
    %c0_i32_0 = arith.constant 0 : i32
    %c0_i32_1 = arith.constant 0 : i32
    return %arg0, %c0_i32, %c0_i32_0 : i32, i32, i32
  }
  func.func @transform_5(%arg0: i32) -> (i32, i32, i32) {
    %c0_i32 = arith.constant 0 : i32
    %c0_i32_0 = arith.constant 0 : i32
    %c0_i32_1 = arith.constant 0 : i32
    return %arg0, %c0_i32, %c0_i32_0 : i32, i32, i32
  }
}

</mosaic_0001>

<llo_original>
// kernel: seld_decoder_forward.5
$region0: #{seld_decoder_forward.5}
  #allocation0 [shape = 'u32[]', space=smem, size = 0x4, offset = 0x4, fixed_abs, tag = 'smem constant byte address 0x4 - core index']
  #allocation1 [shape = 'u32[72,128]{1,0:T(1,128)}', space=vmem, size = 0x9000, scoped, tag = 'internal scratch']
  %s0 = inlined_call_operand.vmem [shape: f32[2,16,16], index: 0, kind: input, shape index: {}]
  %s1 = inlined_call_operand.vmem [shape: f32[2,16,64], index: 1, kind: input, shape index: {}]
  %s2 = inlined_call_operand.vmem [shape: f32[1,64], index: 2, kind: input, shape index: {}]
  %s3 = inlined_call_operand.vmem [shape: f32[64,8], index: 3, kind: input, shape index: {}]
  %s4 = inlined_call_operand.vmem [shape: f32[1,8], index: 4, kind: input, shape index: {}]
  %s5 = inlined_call_operand.vmem [shape: f32[16,2], index: 5, kind: output, shape index: {0}]
  %s6 = inlined_call_operand.vmem [shape: f32[16,6], index: 6, kind: output, shape index: {1}]
  %7 = xla_tuple %s5, %s6
  %s8 = sld [smem:[#allocation0]]
  $region38: #{seld_decoder_forward.5} parent=0
    _
  %s10 = ssub.s32 1, %s8
  %s11 = scalar_select 0, %s10, %s8
  // Predicated region
  $region2: #{seld_decoder_forward.5} parent=0 // pred_check
    _
  $region3: #{seld_decoder_forward.5} parent=0 // pred_check_branch
    %13 = sbr.rel (0) target = $region5
  $region4: #{seld_decoder_forward.5} parent=0 // pred_region
    _
  $region5: #{seld_decoder_forward.5} parent=0 // pred_fallthru
    _
  // Predicated region
  $region6: #{seld_decoder_forward.5} parent=0 // pred_check
    _
  $region7: #{seld_decoder_forward.5} parent=0 // pred_check_branch
    %15 = sbr.rel (0) target = $region9
  $region8: #{seld_decoder_forward.5} parent=0 // pred_region
    _
  $region9: #{seld_decoder_forward.5} parent=0 // pred_fallthru
    _
  // Predicated region
  $region10: #{seld_decoder_forward.5} parent=0 // pred_check
    _
  $region11: #{seld_decoder_forward.5} parent=0 // pred_check_branch
    %17 = sbr.rel (0) target = $region13
  $region12: #{seld_decoder_forward.5} parent=0 // pred_region
    _
  $region13: #{seld_decoder_forward.5} parent=0 // pred_fallthru
    _
  // Predicated region
  $region14: #{seld_decoder_forward.5} parent=0 // pred_check
    _
  $region15: #{seld_decoder_forward.5} parent=0 // pred_check_branch
    %19 = sbr.rel (0) target = $region17
  $region16: #{seld_decoder_forward.5} parent=0 // pred_region
    _
  $region17: #{seld_decoder_forward.5} parent=0 // pred_fallthru
    _
  // Predicated region
  $region18: #{seld_decoder_forward.5} parent=0 // pred_check
    _
  $region19: #{seld_decoder_forward.5} parent=0 // pred_check_branch
    %21 = sbr.rel (0) target = $region21
  $region20: #{seld_decoder_forward.5} parent=0 // pred_region
    _
  $region21: #{seld_decoder_forward.5} parent=0 // pred_fallthru
    _
  %v22 = vld [vmem:[%s0] sm:$0xff]
  %v23 = vld [vmem:[%s0 + $0x8] sm:$0xff]
  %v24 = vld [vmem:[%s1] sm:$0xff]
  %v25 = vld [vmem:[%s1 + $0x8] sm:$0xff]
  %s26 = scalar_lea.vmem %s0, 16
  %v27 = vld [vmem:[%s26] sm:$0xff]
  %v28 = vld [vmem:[%s26 + $0x8] sm:$0xff]
  %s29 = scalar_lea.vmem %s1, 16
  %v30 = vld [vmem:[%s29] sm:$0xff]
  %v31 = vld [vmem:[%s29 + $0x8] sm:$0xff]
  %vm32 = vcmask 130048
  %v34 = vsel %vm32, %v27, 0
  %v37 = vsel %vm32, %v28, 0
  %39 = vmatpush.msra.mxu0 0.0
  %40 = vmatpush.msra.mxu0 0.0
  %41 = vmatpush.msra.mxu0 0.0
  %42 = vmatpush.msra.mxu0 0.0
  %43 = vmatpush.msra.mxu0 0.0
  %44 = vmatpush.msra.mxu0 0.0
  %45 = vmatpush.msra.mxu0 0.0
  %46 = vmatpush.msra.mxu0 0.0
  %47 = vmatpush.msra.mxu0 0.0
  %48 = vmatpush.msra.mxu0 0.0
  %49 = vmatpush.msra.mxu0 0.0
  %50 = vmatpush.msra.mxu0 0.0
  %51 = vmatpush.msra.mxu0 0.0
  %52 = vmatpush.msra.mxu0 0.0
  %53 = vmatpush.msra.mxu0 %v31
  %54 = vmatpush.msra.mxu0 %v30
  %55 = vmatmul.f32.gmra.mxu0 %v34
  %v56 = vpop.f32.mrf.mxu0
  %v57 = vadd.f32 0.0, %v56
  %58 = vmatmul.f32.gmra.mxu0 %v37
  %v59 = vpop.f32.mrf.mxu0
  %v60 = vadd.f32 0.0, %v59
  %61 = vdwg.mxu0
  %v63 = vsel %vm32, %v22, 0
  %v66 = vsel %vm32, %v23, 0
  %68 = vmatpush.msra.mxu0 0.0
  %69 = vmatpush.msra.mxu0 0.0
  %70 = vmatpush.msra.mxu0 0.0
  %71 = vmatpush.msra.mxu0 0.0
  %72 = vmatpush.msra.mxu0 0.0
  %73 = vmatpush.msra.mxu0 0.0
  %74 = vmatpush.msra.mxu0 0.0
  %75 = vmatpush.msra.mxu0 0.0
  %76 = vmatpush.msra.mxu0 0.0
  %77 = vmatpush.msra.mxu0 0.0
  %78 = vmatpush.msra.mxu0 0.0
  %79 = vmatpush.msra.mxu0 0.0
  %80 = vmatpush.msra.mxu0 0.0
  %81 = vmatpush.msra.mxu0 0.0
  %82 = vmatpush.msra.mxu0 %v25
  %83 = vmatpush.msra.mxu0 %v24
  %84 = vmatmul.f32.gmra.mxu0 %v63
  %v85 = vpop.f32.mrf.mxu0
  %v86 = vadd.f32 %v57, %v85
  %87 = vmatmul.f32.gmra.mxu0 %v66
  %v88 = vpop.f32.mrf.mxu0
  %v89 = vadd.f32 %v60, %v88
  %90 = vdwg.mxu0
  %v91 = vld [vmem:[%s2] sm:$0x1]
  %v93 = vperm.slane %v91, 0
  %v95 = vadd.f32 %v86, %v93
  %v96 = vadd.f32 %v89, %v93
  %v97 = vmax.f32 %v95, 0.0
  %v98 = vmax.f32 %v96, 0.0
  %v99 = vld [vmem:[%s3] sm:$0xff]
  %v100 = vld [vmem:[%s3 + $0x8] sm:$0xff]
  %v101 = vld [vmem:[%s3 + $0x10] sm:$0xff]
  %v102 = vld [vmem:[%s3 + $0x18] sm:$0xff]
  %v103 = vld [vmem:[%s3 + $0x20] sm:$0xff]
  %v104 = vld [vmem:[%s3 + $0x28] sm:$0xff]
  %v105 = vld [vmem:[%s3 + $0x30] sm:$0xff]
  %v106 = vld [vmem:[%s3 + $0x38] sm:$0xff]
  %v107 = vld [vmem:[%s4] sm:$0x1]
  %v109 = vperm.slane %v107, 0
  %vm111 = vcmask 523264
  %v113 = vsel %vm111, %v97, 0
  %v116 = vsel %vm111, %v98, 0
  %118 = vmatpush.msra.mxu0 0.0
  %119 = vmatpush.msra.mxu0 0.0
  %120 = vmatpush.msra.mxu0 0.0
  %121 = vmatpush.msra.mxu0 0.0
  %122 = vmatpush.msra.mxu0 0.0
  %123 = vmatpush.msra.mxu0 0.0
  %124 = vmatpush.msra.mxu0 0.0
  %125 = vmatpush.msra.mxu0 0.0
  %126 = vmatpush.msra.mxu0 %v106
  %127 = vmatpush.msra.mxu0 %v105
  %128 = vmatpush.msra.mxu0 %v104
  %129 = vmatpush.msra.mxu0 %v103
  %130 = vmatpush.msra.mxu0 %v102
  %131 = vmatpush.msra.mxu0 %v101
  %132 = vmatpush.msra.mxu0 %v100
  %133 = vmatpush.msra.mxu0 %v99
  %134 = vmatmul.f32.gmra.mxu0 %v113
  %v135 = vpop.f32.mrf.mxu0
  %v136 = vadd.f32 %v109, %v135
  %137 = vmatmul.f32.gmra.mxu0 %v116
  %v138 = vpop.f32.mrf.mxu0
  %v139 = vadd.f32 %v109, %v138
  %140 = vdwg.mxu0
  %vm141 = vcmask 15360
  %142 = vst.msk [vmem:[%s5] sm:$0xff] %vm141, %v136
  %143 = vst.msk [vmem:[%s5 + $0x8] sm:$0xff] %vm141, %v139
  %v144 = vtanh.pop %v136
  %v145 = vtanh.pop %v139
  %148 = vrot.lane.b32.xlu0 %v144, 126
  %v149 = vpop.permute.xlu0 %148
  %150 = vrot.lane.b32.xlu0 %v145, 126
  %v151 = vpop.permute.xlu0 %150
  %vm154 = vcmask 48128
  %155 = vst.msk [vmem:[%s6] sm:$0xff] %vm154, %v149
  %156 = vst.msk [vmem:[%s6 + $0x8] sm:$0xff] %vm154, %v151
  // Predicated region
  $region22: #{seld_decoder_forward.5} parent=0 // pred_check
    _
  $region23: #{seld_decoder_forward.5} parent=0 // pred_check_branch
    %158 = sbr.rel (0) target = $region25
  $region24: #{seld_decoder_forward.5} parent=0 // pred_region
    _
  $region25: #{seld_decoder_forward.5} parent=0 // pred_fallthru
    _
  // Predicated region
  $region26: #{seld_decoder_forward.5} parent=0 // pred_check
    _
  $region27: #{seld_decoder_forward.5} parent=0 // pred_check_branch
    %160 = sbr.rel (0) target = $region29
  $region28: #{seld_decoder_forward.5} parent=0 // pred_region
    _
  $region29: #{seld_decoder_forward.5} parent=0 // pred_fallthru
    _
  // Predicated region
  $region30: #{seld_decoder_forward.5} parent=0 // pred_check
    _
  $region31: #{seld_decoder_forward.5} parent=0 // pred_check_branch
    %162 = sbr.rel (0) target = $region33
  $region32: #{seld_decoder_forward.5} parent=0 // pred_region
    _
  $region33: #{seld_decoder_forward.5} parent=0 // pred_fallthru
    _
  // Predicated region
  $region34: #{seld_decoder_forward.5} parent=0 // pred_check
    _
  $region35: #{seld_decoder_forward.5} parent=0 // pred_check_branch
    %164 = sbr.rel (0) target = $region37
  $region36: #{seld_decoder_forward.5} parent=0 // pred_region
    _
  $region37: #{seld_decoder_forward.5} parent=0 // pred_fallthru
    _

// kernel: seld_decoder_forward.4
$region0: #{seld_decoder_forward.4}
  #allocation0 [shape = 'u32[]', space=smem, size = 0x4, offset = 0x4, fixed_abs, tag = 'smem constant byte address 0x4 - core index']
  #allocation1 [shape = 'u32[72,128]{1,0:T(1,128)}', space=vmem, size = 0x9000, scoped, tag = 'internal scratch']
  #allocation2 [shape = 'f32[16,48]{1,0:T(8,128)}', space=vmem, size = 0x2000, scoped, tag = 'scratch operand']
  %s0 = inlined_call_operand.vmem [shape: f32[2,16,16], index: 0, kind: input, shape index: {}]
  %s1 = inlined_call_operand.vmem [shape: f32[2,32,48], index: 1, kind: input, shape index: {}]
  %s2 = inlined_call_operand.vmem [shape: f32[2,1,48], index: 2, kind: input, shape index: {}]
  %s3 = inlined_call_operand.vmem [shape: f32[2,16,48], index: 3, kind: input, shape index: {}]
  %s4 = inlined_call_operand.vmem [shape: f32[2,1,48], index: 4, kind: input, shape index: {}]
  %s5 = inlined_call_operand.vmem [shape: f32[2,16,16], index: 5, kind: output, shape index: {}]
  %s6 = sld [smem:[#allocation0]]
  $region53: #{seld_decoder_forward.4} parent=0
    _
  %s8 = ssub.s32 1, %s6
  %s9 = scalar_select 0, %s8, %s6
  loop: start=0, step=1, limit=4
  $region2: #{seld_decoder_forward.4} parent=0 // loop_pre_header
    _
  $region3: #{seld_decoder_forward.4} parent=0 // loop_header
    %s11 = sphi 0, %s15
    %p12 = scmp.ge.s32.totalorder %s11, 4
    %s19 = sphi 0, %s19
    %s21 = sphi 0, %s19
    %s22 = sphi 0, %s21
    %s36 = sphi 0, %s22
    %s42 = sphi 0, %s44
    %s45 = sphi 0, %s42
    %s46 = sphi 0, %s45
    %s62 = sphi 0, %s46
    %s68 = sphi 0, %s70
    %s71 = sphi 0, %s68
    %s72 = sphi 0, %s71
    %s88 = sphi 0, %s72
    %s94 = sphi 0, %s96
    %s97 = sphi 0, %s94
    %s98 = sphi 0, %s97
    %s114 = sphi 0, %s98
    %s120 = sphi 0, %s122
    %s123 = sphi 0, %s120
    %s124 = sphi 0, %s123
    %s140 = sphi 0, %s124
    %s146 = sphi 0, %s148
    %s149 = sphi 0, %s146
    %s150 = sphi 0, %s149
    %s166 = sphi 0, %s150
  $region4: #{seld_decoder_forward.4} parent=0 // loop_header_branch
    %14 = sbr.rel (%p12) target = $region8
  $region5: #{seld_decoder_forward.4} parent=0 // loop_body
    %s16 = ssub.s32 %s11, 1
    %s17 = ssub.s32 %s11, 2
    %s18 = sadd.s32 %s11, 1
    %s20 = sadd.s32 %s19, 1
    %p23 = scmp.eq.s32.totalorder %s11, 1
    %p24 = scmp.ne.s32.totalorder %s19, %s21
    %p25 = scmp.eq.s32.totalorder %s11, 0
    %p26 = por %p24, %p25
    %p27 = scmp.ne.s32.totalorder %s19, %s21
    %p28 = scmp.eq.s32.totalorder %s16, 1
    %p29 = por %p27, %p28
    %p30 = scmp.ne.s32.totalorder %s21, %s22
    %p31 = scmp.eq.s32.totalorder %s16, 0
    %p32 = por %p30, %p31
    %p33 = scmp.ne.s32.totalorder %s21, %s22
    %p34 = scmp.eq.s32.totalorder %s17, 1
    %p35 = por %p33, %p34
    %p37 = scmp.ne.s32.totalorder %s22, %s36
    %p38 = scmp.eq.s32.totalorder %s17, 0
    %p39 = por %p37, %p38
    %s40 = ssub.s32 %s11, %s18
    %p41 = scmp.eq.s32.totalorder %s40, 0
    %s43 = sadd.s32 %s42, 1
    %s44 = scalar_select %p41, %s42, %s43
    %p47 = pneg %p41
    %p48 = scmp.eq.s32.totalorder %s11, 1
    %p49 = por %p47, %p48
    %p50 = scmp.ne.s32.totalorder %s42, %s45
    %p51 = scmp.eq.s32.totalorder %s11, 0
    %p52 = por %p50, %p51
    %p53 = scmp.ne.s32.totalorder %s42, %s45
    %p54 = scmp.eq.s32.totalorder %s16, 1
    %p55 = por %p53, %p54
    %p56 = scmp.ne.s32.totalorder %s45, %s46
    %p57 = scmp.eq.s32.totalorder %s16, 0
    %p58 = por %p56, %p57
    %p59 = scmp.ne.s32.totalorder %s45, %s46
    %p60 = scmp.eq.s32.totalorder %s17, 1
    %p61 = por %p59, %p60
    %p63 = scmp.ne.s32.totalorder %s46, %s62
    %p64 = scmp.eq.s32.totalorder %s17, 0
    %p65 = por %p63, %p64
    %s66 = ssub.s32 %s11, %s18
    %p67 = scmp.eq.s32.totalorder %s66, 0
    %s69 = sadd.s32 %s68, 1
    %s70 = scalar_select %p67, %s68, %s69
    %p73 = pneg %p67
    %p74 = scmp.eq.s32.totalorder %s11, 1
    %p75 = por %p73, %p74
    %p76 = scmp.ne.s32.totalorder %s68, %s71
    %p77 = scmp.eq.s32.totalorder %s11, 0
    %p78 = por %p76, %p77
    %p79 = scmp.ne.s32.totalorder %s68, %s71
    %p80 = scmp.eq.s32.totalorder %s16, 1
    %p81 = por %p79, %p80
    %p82 = scmp.ne.s32.totalorder %s71, %s72
    %p83 = scmp.eq.s32.totalorder %s16, 0
    %p84 = por %p82, %p83
    %p85 = scmp.ne.s32.totalorder %s71, %s72
    %p86 = scmp.eq.s32.totalorder %s17, 1
    %p87 = por %p85, %p86
    %p89 = scmp.ne.s32.totalorder %s72, %s88
    %p90 = scmp.eq.s32.totalorder %s17, 0
    %p91 = por %p89, %p90
    %s92 = ssub.s32 %s11, %s18
    %p93 = scmp.eq.s32.totalorder %s92, 0
    %s95 = sadd.s32 %s94, 1
    %s96 = scalar_select %p93, %s94, %s95
    %p99 = pneg %p93
    %p100 = scmp.eq.s32.totalorder %s11, 1
    %p101 = por %p99, %p100
    %p102 = scmp.ne.s32.totalorder %s94, %s97
    %p103 = scmp.eq.s32.totalorder %s11, 0
    %p104 = por %p102, %p103
    %p105 = scmp.ne.s32.totalorder %s94, %s97
    %p106 = scmp.eq.s32.totalorder %s16, 1
    %p107 = por %p105, %p106
    %p108 = scmp.ne.s32.totalorder %s97, %s98
    %p109 = scmp.eq.s32.totalorder %s16, 0
    %p110 = por %p108, %p109
    %p111 = scmp.ne.s32.totalorder %s97, %s98
    %p112 = scmp.eq.s32.totalorder %s17, 1
    %p113 = por %p111, %p112
    %p115 = scmp.ne.s32.totalorder %s98, %s114
    %p116 = scmp.eq.s32.totalorder %s17, 0
    %p117 = por %p115, %p116
    %s118 = ssub.s32 %s11, %s18
    %p119 = scmp.eq.s32.totalorder %s118, 0
    %s121 = sadd.s32 %s120, 1
    %s122 = scalar_select %p119, %s120, %s121
    %p125 = pneg %p119
    %p126 = scmp.eq.s32.totalorder %s11, 1
    %p127 = por %p125, %p126
    %p128 = scmp.ne.s32.totalorder %s120, %s123
    %p129 = scmp.eq.s32.totalorder %s11, 0
    %p130 = por %p128, %p129
    %p131 = scmp.ne.s32.totalorder %s120, %s123
    %p132 = scmp.eq.s32.totalorder %s16, 1
    %p133 = por %p131, %p132
    %p134 = scmp.ne.s32.totalorder %s123, %s124
    %p135 = scmp.eq.s32.totalorder %s16, 0
    %p136 = por %p134, %p135
    %p137 = scmp.ne.s32.totalorder %s123, %s124
    %p138 = scmp.eq.s32.totalorder %s17, 1
    %p139 = por %p137, %p138
    %p141 = scmp.ne.s32.totalorder %s124, %s140
    %p142 = scmp.eq.s32.totalorder %s17, 0
    %p143 = por %p141, %p142
    %s144 = ssub.s32 %s11, %s18
    %p145 = scmp.eq.s32.totalorder %s144, 0
    %s147 = sadd.s32 %s146, 1
    %s148 = scalar_select %p145, %s146, %s147
    %p151 = pneg %p145
    %p152 = scmp.eq.s32.totalorder %s11, 1
    %p153 = por %p151, %p152
    %p154 = scmp.ne.s32.totalorder %s146, %s149
    %p155 = scmp.eq.s32.totalorder %s11, 0
    %p156 = por %p154, %p155
    %p157 = scmp.ne.s32.totalorder %s146, %s149
    %p158 = scmp.eq.s32.totalorder %s16, 1
    %p159 = por %p157, %p158
    %p160 = scmp.ne.s32.totalorder %s149, %s150
    %p161 = scmp.eq.s32.totalorder %s16, 0
    %p162 = por %p160, %p161
    %p163 = scmp.ne.s32.totalorder %s149, %s150
    %p164 = scmp.eq.s32.totalorder %s17, 1
    %p165 = por %p163, %p164
    %p167 = scmp.ne.s32.totalorder %s150, %s166
    %p168 = scmp.eq.s32.totalorder %s17, 0
    %p169 = por %p167, %p168
    %p170 = scmp.le.s32.totalorder 1, %s11
    %p171 = scmp.lt.s32.totalorder %s11, 3
    %p172 = pnand %p170, %p171
    %p173 = pneg %p172
    // Predicated region
    $region9: #{seld_decoder_forward.4} parent=5 // pred_check
      _
    $region10: #{seld_decoder_forward.4} parent=5 // pred_check_branch
      %175 = sbr.rel (%p172) target = $region12
    $region11: #{seld_decoder_forward.4} parent=5 // pred_region
      %s176 = ssub.s32 %s11, 1
      // Predicated region
      $region13: #{seld_decoder_forward.4} parent=11 // pred_check
        %p177 = pneg %p32
      $region14: #{seld_decoder_forward.4} parent=11 // pred_check_branch
        %179 = sbr.rel (%p177) target = $region16
      $region15: #{seld_decoder_forward.4} parent=11 // pred_region
        _
      $region16: #{seld_decoder_forward.4} parent=11 // pred_fallthru
        _
    $region12: #{seld_decoder_forward.4} parent=5 // pred_fallthru
      _
    %p180 = scmp.lt.s32.totalorder %s11, 2
    // Predicated region
    $region17: #{seld_decoder_forward.4} parent=5 // pred_check
      %p181 = pneg %p180
    $region18: #{seld_decoder_forward.4} parent=5 // pred_check_branch
      %183 = sbr.rel (%p181) target = $region20
    $region19: #{seld_decoder_forward.4} parent=5 // pred_region
      // Predicated region
      $region21: #{seld_decoder_forward.4} parent=19 // pred_check
        %p184 = pneg %p52
      $region22: #{seld_decoder_forward.4} parent=19 // pred_check_branch
        %186 = sbr.rel (%p184) target = $region24
      $region23: #{seld_decoder_forward.4} parent=19 // pred_region
        %p187 = scmp.lt.s32.totalorder %s11, 1
        %s188 = scalar_select %p187, %s11, 1
        %s189 = smul.addr %s188, 4
        %s190 = smul.addr %s189, 8
        %s191 = scalar_lea.vmem %s1, %s190
      $region24: #{seld_decoder_forward.4} parent=19 // pred_fallthru
        _
      // Predicated region
      $region25: #{seld_decoder_forward.4} parent=19 // pred_check
        %p192 = pneg %p78
      $region26: #{seld_decoder_forward.4} parent=19 // pred_check_branch
        %194 = sbr.rel (%p192) target = $region28
      $region27: #{seld_decoder_forward.4} parent=19 // pred_region
        %p195 = scmp.lt.s32.totalorder %s11, 1
        %s196 = scalar_select %p195, %s11, 1
        %s197 = scalar_lea.vmem %s2, %s196
      $region28: #{seld_decoder_forward.4} parent=19 // pred_fallthru
        _
      // Predicated region
      $region29: #{seld_decoder_forward.4} parent=19 // pred_check
        %p198 = pneg %p104
      $region30: #{seld_decoder_forward.4} parent=19 // pred_check_branch
        %200 = sbr.rel (%p198) target = $region32
      $region31: #{seld_decoder_forward.4} parent=19 // pred_region
        %p201 = scmp.lt.s32.totalorder %s11, 1
        %s202 = scalar_select %p201, %s11, 1
        %s203 = smul.addr %s202, 2
        %s204 = smul.addr %s203, 8
        %s205 = scalar_lea.vmem %s3, %s204
      $region32: #{seld_decoder_forward.4} parent=19 // pred_fallthru
        _
      // Predicated region
      $region33: #{seld_decoder_forward.4} parent=19 // pred_check
        %p206 = pneg %p130
      $region34: #{seld_decoder_forward.4} parent=19 // pred_check_branch
        %208 = sbr.rel (%p206) target = $region36
      $region35: #{seld_decoder_forward.4} parent=19 // pred_region
        %p209 = scmp.lt.s32.totalorder %s11, 1
        %s210 = scalar_select %p209, %s11, 1
        %s211 = scalar_lea.vmem %s4, %s210
      $region36: #{seld_decoder_forward.4} parent=19 // pred_fallthru
        _
    $region20: #{seld_decoder_forward.4} parent=5 // pred_fallthru
      _
    %p212 = scmp.le.s32.totalorder 1, %s11
    %p213 = scmp.lt.s32.totalorder %s11, 3
    %p214 = pnand %p212, %p213
    %p215 = pneg %p214
    // Predicated region
    $region37: #{seld_decoder_forward.4} parent=5 // pred_check
      _
    $region38: #{seld_decoder_forward.4} parent=5 // pred_check_branch
      %217 = sbr.rel (%p214) target = $region40
    $region39: #{seld_decoder_forward.4} parent=5 // pred_region
      %s218 = ssub.s32 %s11, 1
      %p219 = pneg %p32
      %p220 = pneg %p29
      %p221 = scmp.lt.s32.totalorder %s16, 1
      %s222 = scalar_select %p221, %s16, 1
      %s223 = smul.addr %s222, 4
      %s224 = smul.addr %s223, 8
      %s225 = scalar_lea.vmem %s1, %s224
      %p226 = pneg %p58
      %p227 = pneg %p55
      %p228 = scmp.lt.s32.totalorder %s16, 1
      %s229 = scalar_select %p228, %s16, 1
      %s230 = scalar_lea.vmem %s2, %s229
      %p231 = pneg %p84
      %p232 = pneg %p81
      %p233 = scmp.lt.s32.totalorder %s16, 1
      %s234 = scalar_select %p233, %s16, 1
      %s235 = smul.addr %s234, 2
      %s236 = smul.addr %s235, 8
      %s237 = scalar_lea.vmem %s3, %s236
      %p238 = pneg %p110
      %p239 = pneg %p107
      %p240 = scmp.lt.s32.totalorder %s16, 1
      %s241 = scalar_select %p240, %s16, 1
      %s242 = scalar_lea.vmem %s4, %s241
      %p243 = pneg %p136
      %p244 = pneg %p133
      %p245 = pneg %p162
      %p246 = pneg %p159
      %p247 = scmp.lt.s32.totalorder %s16, 1
      %s248 = scalar_select %p247, %s16, 1
      %s249 = smul.addr %s248, 2
      %s250 = smul.addr %s249, 8
      %s251 = scalar_lea.vmem %s5, %s250
      %p252 = scmp.lt.s32.totalorder %s16, 1
      %s253 = scalar_select %p252, %s16, 1
      %s254 = smul.addr %s253, 4
      %s255 = smul.addr %s254, 8
      %s256 = scalar_lea.vmem %s1, %s255
      %p257 = scmp.lt.s32.totalorder %s16, 1
      %s258 = scalar_select %p257, %s16, 1
      %s259 = scalar_lea.vmem %s2, %s258
      %p260 = scmp.lt.s32.totalorder %s16, 1
      %s261 = scalar_select %p260, %s16, 1
      %s262 = smul.addr %s261, 2
      %s263 = smul.addr %s262, 8
      %s264 = scalar_lea.vmem %s3, %s263
      %p265 = scmp.lt.s32.totalorder %s16, 1
      %s266 = scalar_select %p265, %s16, 1
      %s267 = scalar_lea.vmem %s4, %s266
      %p268 = scmp.lt.s32.totalorder %s16, 1
      %s269 = scalar_select %p268, %s16, 1
      %s270 = smul.addr %s269, 2
      %s271 = smul.addr %s270, 8
      %s272 = scalar_lea.vmem %s5, %s271
      %v273 = vld [vmem:[%s0] sm:$0xff]
      %v274 = vld [vmem:[%s0 + $0x8] sm:$0xff]
      %s275 = scalar_lea.vmem %s0, 16
      %v276 = vld [vmem:[%s275] sm:$0xff]
      %v277 = vld [vmem:[%s275 + $0x8] sm:$0xff]
      %280 = vrot.lane.b32.xlu0 %v276, 16
      %v281 = vpop.permute.xlu0 %280
      %282 = vrot.lane.b32.xlu0 %v277, 16
      %v283 = vpop.permute.xlu0 %282
      %vm286 = vcmask 130048
      %v287 = vsel %vm286, %v273, %v281
      %v288 = vsel %vm286, %v274, %v283
      %v289 = vld [vmem:[%s256] sm:$0xff]
      %v290 = vld [vmem:[%s256 + $0x8] sm:$0xff]
      %v291 = vld [vmem:[%s256 + $0x10] sm:$0xff]
      %v292 = vld [vmem:[%s256 + $0x18] sm:$0xff]
      %v293 = vld [vmem:[%s259] sm:$0x1]
      %v295 = vperm.slane %v293, 0
      %vm297 = vcmask 261120
      %v299 = vsel %vm297, %v287, 0
      %v302 = vsel %vm297, %v288, 0
      %304 = vmatpush.msra.mxu0 0.0
      %305 = vmatpush.msra.mxu0 0.0
      %306 = vmatpush.msra.mxu0 0.0
      %307 = vmatpush.msra.mxu0 0.0
      %308 = vmatpush.msra.mxu0 0.0
      %309 = vmatpush.msra.mxu0 0.0
      %310 = vmatpush.msra.mxu0 0.0
      %311 = vmatpush.msra.mxu0 0.0
      %312 = vmatpush.msra.mxu0 0.0
      %313 = vmatpush.msra.mxu0 0.0
      %314 = vmatpush.msra.mxu0 0.0
      %315 = vmatpush.msra.mxu0 0.0
      %316 = vmatpush.msra.mxu0 %v292
      %317 = vmatpush.msra.mxu0 %v291
      %318 = vmatpush.msra.mxu0 %v290
      %319 = vmatpush.msra.mxu0 %v289
      %320 = vmatmul.f32.gmra.mxu0 %v299
      %v321 = vpop.f32.mrf.mxu0
      %v322 = vadd.f32 %v295, %v321
      %323 = vmatmul.f32.gmra.mxu0 %v302
      %v324 = vpop.f32.mrf.mxu0
      %v325 = vadd.f32 %v295, %v324
      %326 = vdwg.mxu0
      %vm327 = vcmask 392192
      %328 = vst.msk [vmem:[#allocation2] sm:$0xff] %vm327, %v322
      %329 = vst.msk [vmem:[#allocation2 + $0x8] sm:$0xff] %vm327, %v325
      %v330 = vld [vmem:[%s264] sm:$0xff]
      %v331 = vld [vmem:[%s264 + $0x8] sm:$0xff]
      %v332 = vld [vmem:[%s267] sm:$0x1]
      %p333 = scmp.eq.s32.totalorder %s16, 0
      %s334 = scalar_select %p333, 0, 7
      %s335 = smul.u32 %s334, 2
      %s336 = scalar_lea.vmem [#allocation2], %s335
      %v337 = vld [vmem:[%s336] sm:$0x3]
      %v339 = vperm.slane %v332, 0
      %v342 = vsel %vm286, 0.0, 0
      %344 = vmatpush.msra.mxu0 0.0
      %345 = vmatpush.msra.mxu0 0.0
      %346 = vmatpush.msra.mxu0 0.0
      %347 = vmatpush.msra.mxu0 0.0
      %348 = vmatpush.msra.mxu0 0.0
      %349 = vmatpush.msra.mxu0 0.0
      %350 = vmatpush.msra.mxu0 0.0
      %351 = vmatpush.msra.mxu0 0.0
      %352 = vmatpush.msra.mxu0 0.0
      %353 = vmatpush.msra.mxu0 0.0
      %354 = vmatpush.msra.mxu0 0.0
      %355 = vmatpush.msra.mxu0 0.0
      %356 = vmatpush.msra.mxu0 0.0
      %357 = vmatpush.msra.mxu0 0.0
      %358 = vmatpush.msra.mxu0 %v331
      %359 = vmatpush.msra.mxu0 %v330
      %360 = vmatmul.f32.gmra.mxu0 %v342
      %v361 = vpop.f32.mrf.mxu0
      %v362 = vadd.f32 %v339, %v361
      %363 = vdwg.mxu0
      %v364 = vadd.f32 %v337, %v362
      %v365 = vxor.u32 %v364, 2147483648
      %v366 = vmul.f32 %v365, 1.442695
      %v367 = vpow.pop %v366
      %v368 = vadd.f32 %v367, 1.0
      %v369 = vrcp.pop %v368
      %v370 = vmul.f32 %v368, %v369
      %v371 = vsub.f32 1.0, %v370
      %v372 = vmul.f32 %v369, %v371
      %v373 = vadd.f32 %v369, %v372
      %vm374 = vweird.f32 %v368
      %vm375 = vweird.f32 %v369
      %vm376 = vmor %vm374, %vm375
      %v377 = vsel %vm376, %v369, %v373
      %v378 = vand.u32 2147483647, %v368
      %vm379 = vcmp.eq.f32.partialorder %v378, 8.507059e+37
      %v380 = vand.u32 %v368, 2147483648
      %v381 = vor.u32 1.1754944e-38, %v380
      %v382 = vsel %vm379, %v381, %v377
      %v383 = vmul.f32 1.0, %v382
      %385 = vrot.lane.b32.xlu0 %v362, 96
      %v386 = vpop.permute.xlu0 %385
      %v388 = vmul.f32 %v383, %v386
      %390 = vrot.lane.b32.xlu0 %v388, 32
      %v391 = vpop.permute.xlu0 %390
      %v393 = vadd.f32 %v337, %v391
      %v394 = vtanh.pop %v393
      %v395 = vsub.f32 1.0, %v383
      %397 = vrot.lane.b32.xlu0 %v394, 112
      %v398 = vpop.permute.xlu0 %397
      %v400 = vmul.f32 %v395, %v398
      %v401 = vmul.f32 %v383, 0.0
      %v402 = vadd.f32 %v400, %v401
      %404 = vrot.lane.b32.xlu0 %v402, 112
      %v405 = vpop.permute.xlu0 %404
      %s407 = scalar_lea.vmem %s272, %s335
      %vm408 = vcmask 123904
      %409 = vst.msk [vmem:[%s407] sm:$0x3] %vm408, %v405
      %s410 = scalar_select %p333, 1, 6
      %s411 = smul.u32 %s410, 2
      %s412 = scalar_lea.vmem [#allocation2], %s411
      %v413 = vld [vmem:[%s412] sm:$0x3]
      %v414 = vsel %vm286, %v405, 0
      %416 = vmatpush.msra.mxu0 0.0
      %417 = vmatpush.msra.mxu0 0.0
      %418 = vmatpush.msra.mxu0 0.0
      %419 = vmatpush.msra.mxu0 0.0
      %420 = vmatpush.msra.mxu0 0.0
      %421 = vmatpush.msra.mxu0 0.0
      %422 = vmatpush.msra.mxu0 0.0
      %423 = vmatpush.msra.mxu0 0.0
      %424 = vmatpush.msra.mxu0 0.0
      %425 = vmatpush.msra.mxu0 0.0
      %426 = vmatpush.msra.mxu0 0.0
      %427 = vmatpush.msra.mxu0 0.0
      %428 = vmatpush.msra.mxu0 0.0
      %429 = vmatpush.msra.mxu0 0.0
      %430 = vmatpush.msra.mxu0 %v331
      %431 = vmatpush.msra.mxu0 %v330
      %432 = vmatmul.f32.gmra.mxu0 %v414
      %v433 = vpop.f32.mrf.mxu0
      %v434 = vadd.f32 %v339, %v433
      %435 = vdwg.mxu0
      %v436 = vadd.f32 %v413, %v434
      %v437 = vxor.u32 %v436, 2147483648
      %v438 = vmul.f32 %v437, 1.442695
      %v439 = vpow.pop %v438
      %v440 = vadd.f32 %v439, 1.0
      %v441 = vrcp.pop %v440
      %v442 = vmul.f32 %v440, %v441
      %v443 = vsub.f32 1.0, %v442
      %v444 = vmul.f32 %v441, %v443
      %v445 = vadd.f32 %v441, %v444
      %vm446 = vweird.f32 %v440
      %vm447 = vweird.f32 %v441
      %vm448 = vmor %vm446, %vm447
      %v449 = vsel %vm448, %v441, %v445
      %v450 = vand.u32 2147483647, %v440
      %vm451 = vcmp.eq.f32.partialorder %v450, 8.507059e+37
      %v452 = vand.u32 %v440, 2147483648
      %v453 = vor.u32 1.1754944e-38, %v452
      %v454 = vsel %vm451, %v453, %v449
      %v455 = vmul.f32 1.0, %v454
      %457 = vrot.lane.b32.xlu0 %v434, 96
      %v458 = vpop.permute.xlu0 %457
      %v460 = vmul.f32 %v455, %v458
      %462 = vrot.lane.b32.xlu0 %v460, 32
      %v463 = vpop.permute.xlu0 %462
      %v465 = vadd.f32 %v413, %v463
      %v466 = vtanh.pop %v465
      %v467 = vsub.f32 1.0, %v455
      %469 = vrot.lane.b32.xlu0 %v466, 112
      %v470 = vpop.permute.xlu0 %469
      %v472 = vmul.f32 %v467, %v470
      %v473 = vmul.f32 %v455, %v402
      %v474 = vadd.f32 %v472, %v473
      %476 = vrot.lane.b32.xlu0 %v474, 112
      %v477 = vpop.permute.xlu0 %476
      %s479 = scalar_lea.vmem %s272, %s411
      %480 = vst.msk [vmem:[%s479] sm:$0x3] %vm408, %v477
      %s481 = scalar_select %p333, 2, 5
      %s482 = smul.u32 %s481, 2
      %s483 = scalar_lea.vmem [#allocation2], %s482
      %v484 = vld [vmem:[%s483] sm:$0x3]
      %v485 = vsel %vm286, %v477, 0
      %487 = vmatpush.msra.mxu0 0.0
      %488 = vmatpush.msra.mxu0 0.0
      %489 = vmatpush.msra.mxu0 0.0
      %490 = vmatpush.msra.mxu0 0.0
      %491 = vmatpush.msra.mxu0 0.0
      %492 = vmatpush.msra.mxu0 0.0
      %493 = vmatpush.msra.mxu0 0.0
      %494 = vmatpush.msra.mxu0 0.0
      %495 = vmatpush.msra.mxu0 0.0
      %496 = vmatpush.msra.mxu0 0.0
      %497 = vmatpush.msra.mxu0 0.0
      %498 = vmatpush.msra.mxu0 0.0
      %499 = vmatpush.msra.mxu0 0.0
      %500 = vmatpush.msra.mxu0 0.0
      %501 = vmatpush.msra.mxu0 %v331
      %502 = vmatpush.msra.mxu0 %v330
      %503 = vmatmul.f32.gmra.mxu0 %v485
      %v504 = vpop.f32.mrf.mxu0
      %v505 = vadd.f32 %v339, %v504
      %506 = vdwg.mxu0
      %v507 = vadd.f32 %v484, %v505
      %v508 = vxor.u32 %v507, 2147483648
      %v509 = vmul.f32 %v508, 1.442695
      %v510 = vpow.pop %v509
      %v511 = vadd.f32 %v510, 1.0
      %v512 = vrcp.pop %v511
      %v513 = vmul.f32 %v511, %v512
      %v514 = vsub.f32 1.0, %v513
      %v515 = vmul.f32 %v512, %v514
      %v516 = vadd.f32 %v512, %v515
      %vm517 = vweird.f32 %v511
      %vm518 = vweird.f32 %v512
      %vm519 = vmor %vm517, %vm518
      %v520 = vsel %vm519, %v512, %v516
      %v521 = vand.u32 2147483647, %v511
      %vm522 = vcmp.eq.f32.partialorder %v521, 8.507059e+37
      %v523 = vand.u32 %v511, 2147483648
      %v524 = vor.u32 1.1754944e-38, %v523
      %v525 = vsel %vm522, %v524, %v520
      %v526 = vmul.f32 1.0, %v525
      %528 = vrot.lane.b32.xlu0 %v505, 96
      %v529 = vpop.permute.xlu0 %528
      %v531 = vmul.f32 %v526, %v529
      %533 = vrot.lane.b32.xlu0 %v531, 32
      %v534 = vpop.permute.xlu0 %533
      %v536 = vadd.f32 %v484, %v534
      %v537 = vtanh.pop %v536
      %v538 = vsub.f32 1.0, %v526
      %540 = vrot.lane.b32.xlu0 %v537, 112
      %v541 = vpop.permute.xlu0 %540
      %v543 = vmul.f32 %v538, %v541
      %v544 = vmul.f32 %v526, %v474
      %v545 = vadd.f32 %v543, %v544
      %547 = vrot.lane.b32.xlu0 %v545, 112
      %v548 = vpop.permute.xlu0 %547
      %s550 = scalar_lea.vmem %s272, %s482
      %551 = vst.msk [vmem:[%s550] sm:$0x3] %vm408, %v548
      %s552 = scalar_select %p333, 3, 4
      %s553 = smul.u32 %s552, 2
      %s554 = scalar_lea.vmem [#allocation2], %s553
      %v555 = vld [vmem:[%s554] sm:$0x3]
      %v556 = vsel %vm286, %v548, 0
      %558 = vmatpush.msra.mxu0 0.0
      %559 = vmatpush.msra.mxu0 0.0
      %560 = vmatpush.msra.mxu0 0.0
      %561 = vmatpush.msra.mxu0 0.0
      %562 = vmatpush.msra.mxu0 0.0
      %563 = vmatpush.msra.mxu0 0.0
      %564 = vmatpush.msra.mxu0 0.0
      %565 = vmatpush.msra.mxu0 0.0
      %566 = vmatpush.msra.mxu0 0.0
      %567 = vmatpush.msra.mxu0 0.0
      %568 = vmatpush.msra.mxu0 0.0
      %569 = vmatpush.msra.mxu0 0.0
      %570 = vmatpush.msra.mxu0 0.0
      %571 = vmatpush.msra.mxu0 0.0
      %572 = vmatpush.msra.mxu0 %v331
      %573 = vmatpush.msra.mxu0 %v330
      %574 = vmatmul.f32.gmra.mxu0 %v556
      %v575 = vpop.f32.mrf.mxu0
      %v576 = vadd.f32 %v339, %v575
      %577 = vdwg.mxu0
      %v578 = vadd.f32 %v555, %v576
      %v579 = vxor.u32 %v578, 2147483648
      %v580 = vmul.f32 %v579, 1.442695
      %v581 = vpow.pop %v580
      %v582 = vadd.f32 %v581, 1.0
      %v583 = vrcp.pop %v582
      %v584 = vmul.f32 %v582, %v583
      %v585 = vsub.f32 1.0, %v584
      %v586 = vmul.f32 %v583, %v585
      %v587 = vadd.f32 %v583, %v586
      %vm588 = vweird.f32 %v582
      %vm589 = vweird.f32 %v583
      %vm590 = vmor %vm588, %vm589
      %v591 = vsel %vm590, %v583, %v587
      %v592 = vand.u32 2147483647, %v582
      %vm593 = vcmp.eq.f32.partialorder %v592, 8.507059e+37
      %v594 = vand.u32 %v582, 2147483648
      %v595 = vor.u32 1.1754944e-38, %v594
      %v596 = vsel %vm593, %v595, %v591
      %v597 = vmul.f32 1.0, %v596
      %599 = vrot.lane.b32.xlu0 %v576, 96
      %v600 = vpop.permute.xlu0 %599
      %v602 = vmul.f32 %v597, %v600
      %604 = vrot.lane.b32.xlu0 %v602, 32
      %v605 = vpop.permute.xlu0 %604
      %v607 = vadd.f32 %v555, %v605
      %v608 = vtanh.pop %v607
      %v609 = vsub.f32 1.0, %v597
      %611 = vrot.lane.b32.xlu0 %v608, 112
      %v612 = vpop.permute.xlu0 %611
      %v614 = vmul.f32 %v609, %v612
      %v615 = vmul.f32 %v597, %v545
      %v616 = vadd.f32 %v614, %v615
      %618 = vrot.lane.b32.xlu0 %v616, 112
      %v619 = vpop.permute.xlu0 %618
      %s621 = scalar_lea.vmem %s272, %s553
      %622 = vst.msk [vmem:[%s621] sm:$0x3] %vm408, %v619
      %s623 = scalar_select %p333, 4, 3
      %s624 = smul.u32 %s623, 2
      %s625 = scalar_lea.vmem [#allocation2], %s624
      %v626 = vld [vmem:[%s625] sm:$0x3]
      %v627 = vsel %vm286, %v619, 0
      %629 = vmatpush.msra.mxu0 0.0
      %630 = vmatpush.msra.mxu0 0.0
      %631 = vmatpush.msra.mxu0 0.0
      %632 = vmatpush.msra.mxu0 0.0
      %633 = vmatpush.msra.mxu0 0.0
      %634 = vmatpush.msra.mxu0 0.0
      %635 = vmatpush.msra.mxu0 0.0
      %636 = vmatpush.msra.mxu0 0.0
      %637 = vmatpush.msra.mxu0 0.0
      %638 = vmatpush.msra.mxu0 0.0
      %639 = vmatpush.msra.mxu0 0.0
      %640 = vmatpush.msra.mxu0 0.0
      %641 = vmatpush.msra.mxu0 0.0
      %642 = vmatpush.msra.mxu0 0.0
      %643 = vmatpush.msra.mxu0 %v331
      %644 = vmatpush.msra.mxu0 %v330
      %645 = vmatmul.f32.gmra.mxu0 %v627
      %v646 = vpop.f32.mrf.mxu0
      %v647 = vadd.f32 %v339, %v646
      %648 = vdwg.mxu0
      %v649 = vadd.f32 %v626, %v647
      %v650 = vxor.u32 %v649, 2147483648
      %v651 = vmul.f32 %v650, 1.442695
      %v652 = vpow.pop %v651
      %v653 = vadd.f32 %v652, 1.0
      %v654 = vrcp.pop %v653
      %v655 = vmul.f32 %v653, %v654
      %v656 = vsub.f32 1.0, %v655
      %v657 = vmul.f32 %v654, %v656
      %v658 = vadd.f32 %v654, %v657
      %vm659 = vweird.f32 %v653
      %vm660 = vweird.f32 %v654
      %vm661 = vmor %vm659, %vm660
      %v662 = vsel %vm661, %v654, %v658
      %v663 = vand.u32 2147483647, %v653
      %vm664 = vcmp.eq.f32.partialorder %v663, 8.507059e+37
      %v665 = vand.u32 %v653, 2147483648
      %v666 = vor.u32 1.1754944e-38, %v665
      %v667 = vsel %vm664, %v666, %v662
      %v668 = vmul.f32 1.0, %v667
      %670 = vrot.lane.b32.xlu0 %v647, 96
      %v671 = vpop.permute.xlu0 %670
      %v673 = vmul.f32 %v668, %v671
      %675 = vrot.lane.b32.xlu0 %v673, 32
      %v676 = vpop.permute.xlu0 %675
      %v678 = vadd.f32 %v626, %v676
      %v679 = vtanh.pop %v678
      %v680 = vsub.f32 1.0, %v668
      %682 = vrot.lane.b32.xlu0 %v679, 112
      %v683 = vpop.permute.xlu0 %682
      %v685 = vmul.f32 %v680, %v683
      %v686 = vmul.f32 %v668, %v616
      %v687 = vadd.f32 %v685, %v686
      %689 = vrot.lane.b32.xlu0 %v687, 112
      %v690 = vpop.permute.xlu0 %689
      %s692 = scalar_lea.vmem %s272, %s624
      %693 = vst.msk [vmem:[%s692] sm:$0x3] %vm408, %v690
      %s694 = scalar_select %p333, 5, 2
      %s695 = smul.u32 %s694, 2
      %s696 = scalar_lea.vmem [#allocation2], %s695
      %v697 = vld [vmem:[%s696] sm:$0x3]
      %v698 = vsel %vm286, %v690, 0
      %700 = vmatpush.msra.mxu0 0.0
      %701 = vmatpush.msra.mxu0 0.0
      %702 = vmatpush.msra.mxu0 0.0
      %703 = vmatpush.msra.mxu0 0.0
      %704 = vmatpush.msra.mxu0 0.0
      %705 = vmatpush.msra.mxu0 0.0
      %706 = vmatpush.msra.mxu0 0.0
      %707 = vmatpush.msra.mxu0 0.0
      %708 = vmatpush.msra.mxu0 0.0
      %709 = vmatpush.msra.mxu0 0.0
      %710 = vmatpush.msra.mxu0 0.0
      %711 = vmatpush.msra.mxu0 0.0
      %712 = vmatpush.msra.mxu0 0.0
      %713 = vmatpush.msra.mxu0 0.0
      %714 = vmatpush.msra.mxu0 %v331
      %715 = vmatpush.msra.mxu0 %v330
      %716 = vmatmul.f32.gmra.mxu0 %v698
      %v717 = vpop.f32.mrf.mxu0
      %v718 = vadd.f32 %v339, %v717
      %719 = vdwg.mxu0
      %v720 = vadd.f32 %v697, %v718
      %v721 = vxor.u32 %v720, 2147483648
      %v722 = vmul.f32 %v721, 1.442695
      %v723 = vpow.pop %v722
      %v724 = vadd.f32 %v723, 1.0
      %v725 = vrcp.pop %v724
      %v726 = vmul.f32 %v724, %v725
      %v727 = vsub.f32 1.0, %v726
      %v728 = vmul.f32 %v725, %v727
      %v729 = vadd.f32 %v725, %v728
      %vm730 = vweird.f32 %v724
      %vm731 = vweird.f32 %v725
      %vm732 = vmor %vm730, %vm731
      %v733 = vsel %vm732, %v725, %v729
      %v734 = vand.u32 2147483647, %v724
      %vm735 = vcmp.eq.f32.partialorder %v734, 8.507059e+37
      %v736 = vand.u32 %v724, 2147483648
      %v737 = vor.u32 1.1754944e-38, %v736
      %v738 = vsel %vm735, %v737, %v733
      %v739 = vmul.f32 1.0, %v738
      %741 = vrot.lane.b32.xlu0 %v718, 96
      %v742 = vpop.permute.xlu0 %741
      %v744 = vmul.f32 %v739, %v742
      %746 = vrot.lane.b32.xlu0 %v744, 32
      %v747 = vpop.permute.xlu0 %746
      %v749 = vadd.f32 %v697, %v747
      %v750 = vtanh.pop %v749
      %v751 = vsub.f32 1.0, %v739
      %753 = vrot.lane.b32.xlu0 %v750, 112
      %v754 = vpop.permute.xlu0 %753
      %v756 = vmul.f32 %v751, %v754
      %v757 = vmul.f32 %v739, %v687
      %v758 = vadd.f32 %v756, %v757
      %760 = vrot.lane.b32.xlu0 %v758, 112
      %v761 = vpop.permute.xlu0 %760
      %s763 = scalar_lea.vmem %s272, %s695
      %764 = vst.msk [vmem:[%s763] sm:$0x3] %vm408, %v761
      %s765 = scalar_select %p333, 6, 1
      %s766 = smul.u32 %s765, 2
      %s767 = scalar_lea.vmem [#allocation2], %s766
      %v768 = vld [vmem:[%s767] sm:$0x3]
      %v769 = vsel %vm286, %v761, 0
      %771 = vmatpush.msra.mxu0 0.0
      %772 = vmatpush.msra.mxu0 0.0
      %773 = vmatpush.msra.mxu0 0.0
      %774 = vmatpush.msra.mxu0 0.0
      %775 = vmatpush.msra.mxu0 0.0
      %776 = vmatpush.msra.mxu0 0.0
      %777 = vmatpush.msra.mxu0 0.0
      %778 = vmatpush.msra.mxu0 0.0
      %779 = vmatpush.msra.mxu0 0.0
      %780 = vmatpush.msra.mxu0 0.0
      %781 = vmatpush.msra.mxu0 0.0
      %782 = vmatpush.msra.mxu0 0.0
      %783 = vmatpush.msra.mxu0 0.0
      %784 = vmatpush.msra.mxu0 0.0
      %785 = vmatpush.msra.mxu0 %v331
      %786 = vmatpush.msra.mxu0 %v330
      %787 = vmatmul.f32.gmra.mxu0 %v769
      %v788 = vpop.f32.mrf.mxu0
      %v789 = vadd.f32 %v339, %v788
      %790 = vdwg.mxu0
      %v791 = vadd.f32 %v768, %v789
      %v792 = vxor.u32 %v791, 2147483648
      %v793 = vmul.f32 %v792, 1.442695
      %v794 = vpow.pop %v793
      %v795 = vadd.f32 %v794, 1.0
      %v796 = vrcp.pop %v795
      %v797 = vmul.f32 %v795, %v796
      %v798 = vsub.f32 1.0, %v797
      %v799 = vmul.f32 %v796, %v798
      %v800 = vadd.f32 %v796, %v799
      %vm801 = vweird.f32 %v795
      %vm802 = vweird.f32 %v796
      %vm803 = vmor %vm801, %vm802
      %v804 = vsel %vm803, %v796, %v800
      %v805 = vand.u32 2147483647, %v795
      %vm806 = vcmp.eq.f32.partialorder %v805, 8.507059e+37
      %v807 = vand.u32 %v795, 2147483648
      %v808 = vor.u32 1.1754944e-38, %v807
      %v809 = vsel %vm806, %v808, %v804
      %v810 = vmul.f32 1.0, %v809
      %812 = vrot.lane.b32.xlu0 %v789, 96
      %v813 = vpop.permute.xlu0 %812
      %v815 = vmul.f32 %v810, %v813
      %817 = vrot.lane.b32.xlu0 %v815, 32
      %v818 = vpop.permute.xlu0 %817
      %v820 = vadd.f32 %v768, %v818
      %v821 = vtanh.pop %v820
      %v822 = vsub.f32 1.0, %v810
      %824 = vrot.lane.b32.xlu0 %v821, 112
      %v825 = vpop.permute.xlu0 %824
      %v827 = vmul.f32 %v822, %v825
      %v828 = vmul.f32 %v810, %v758
      %v829 = vadd.f32 %v827, %v828
      %831 = vrot.lane.b32.xlu0 %v829, 112
      %v832 = vpop.permute.xlu0 %831
      %s834 = scalar_lea.vmem %s272, %s766
      %835 = vst.msk [vmem:[%s834] sm:$0x3] %vm408, %v832
      %s836 = scalar_select %p333, 7, 0
      %s837 = smul.u32 %s836, 2
      %s838 = scalar_lea.vmem [#allocation2], %s837
      %v839 = vld [vmem:[%s838] sm:$0x3]
      %v840 = vsel %vm286, %v832, 0
      %842 = vmatpush.msra.mxu0 0.0
      %843 = vmatpush.msra.mxu0 0.0
      %844 = vmatpush.msra.mxu0 0.0
      %845 = vmatpush.msra.mxu0 0.0
      %846 = vmatpush.msra.mxu0 0.0
      %847 = vmatpush.msra.mxu0 0.0
      %848 = vmatpush.msra.mxu0 0.0
      %849 = vmatpush.msra.mxu0 0.0
      %850 = vmatpush.msra.mxu0 0.0
      %851 = vmatpush.msra.mxu0 0.0
      %852 = vmatpush.msra.mxu0 0.0
      %853 = vmatpush.msra.mxu0 0.0
      %854 = vmatpush.msra.mxu0 0.0
      %855 = vmatpush.msra.mxu0 0.0
      %856 = vmatpush.msra.mxu0 %v331
      %857 = vmatpush.msra.mxu0 %v330
      %858 = vmatmul.f32.gmra.mxu0 %v840
      %v859 = vpop.f32.mrf.mxu0
      %v860 = vadd.f32 %v339, %v859
      %861 = vdwg.mxu0
      %v862 = vadd.f32 %v839, %v860
      %v863 = vxor.u32 %v862, 2147483648
      %v864 = vmul.f32 %v863, 1.442695
      %v865 = vpow.pop %v864
      %v866 = vadd.f32 %v865, 1.0
      %v867 = vrcp.pop %v866
      %v868 = vmul.f32 %v866, %v867
      %v869 = vsub.f32 1.0, %v868
      %v870 = vmul.f32 %v867, %v869
      %v871 = vadd.f32 %v867, %v870
      %vm872 = vweird.f32 %v866
      %vm873 = vweird.f32 %v867
      %vm874 = vmor %vm872, %vm873
      %v875 = vsel %vm874, %v867, %v871
      %v876 = vand.u32 2147483647, %v866
      %vm877 = vcmp.eq.f32.partialorder %v876, 8.507059e+37
      %v878 = vand.u32 %v866, 2147483648
      %v879 = vor.u32 1.1754944e-38, %v878
      %v880 = vsel %vm877, %v879, %v875
      %v881 = vmul.f32 1.0, %v880
      %883 = vrot.lane.b32.xlu0 %v860, 96
      %v884 = vpop.permute.xlu0 %883
      %v886 = vmul.f32 %v881, %v884
      %888 = vrot.lane.b32.xlu0 %v886, 32
      %v889 = vpop.permute.xlu0 %888
      %v891 = vadd.f32 %v839, %v889
      %v892 = vtanh.pop %v891
      %v893 = vsub.f32 1.0, %v881
      %895 = vrot.lane.b32.xlu0 %v892, 112
      %v896 = vpop.permute.xlu0 %895
      %v898 = vmul.f32 %v893, %v896
      %v899 = vmul.f32 %v881, %v829
      %v900 = vadd.f32 %v898, %v899
      %902 = vrot.lane.b32.xlu0 %v900, 112
      %v903 = vpop.permute.xlu0 %902
      %s905 = scalar_lea.vmem %s272, %s837
      %906 = vst.msk [vmem:[%s905] sm:$0x3] %vm408, %v903
      %p907 = scmp.lt.s32.totalorder %s16, 1
      %s908 = scalar_select %p907, %s16, 1
      %s909 = smul.addr %s908, 2
      %s910 = smul.addr %s909, 8
      %s911 = scalar_lea.vmem %s5, %s910
      // Predicated region
      $region41: #{seld_decoder_forward.4} parent=39 // pred_check
        %p912 = pneg %p159
      $region42: #{seld_decoder_forward.4} parent=39 // pred_check_branch
        %914 = sbr.rel (%p912) target = $region44
      $region43: #{seld_decoder_forward.4} parent=39 // pred_region
        _
      $region44: #{seld_decoder_forward.4} parent=39 // pred_fallthru
        _
    $region40: #{seld_decoder_forward.4} parent=5 // pred_fallthru
      _
    %p915 = scmp.le.s32.totalorder 2, %s11
    // Predicated region
    $region45: #{seld_decoder_forward.4} parent=5 // pred_check
      %p916 = pneg %p915
    $region46: #{seld_decoder_forward.4} parent=5 // pred_check_branch
      %918 = sbr.rel (%p916) target = $region48
    $region47: #{seld_decoder_forward.4} parent=5 // pred_region
      %s919 = ssub.s32 %s11, 2
      // Predicated region
      $region49: #{seld_decoder_forward.4} parent=47 // pred_check
        %p920 = pneg %p165
      $region50: #{seld_decoder_forward.4} parent=47 // pred_check_branch
        %922 = sbr.rel (%p920) target = $region52
      $region51: #{seld_decoder_forward.4} parent=47 // pred_region
        %p923 = scmp.lt.s32.totalorder %s17, 1
        %s924 = scalar_select %p923, %s17, 1
        %s925 = smul.addr %s924, 2
        %s926 = smul.addr %s925, 8
        %s927 = scalar_lea.vmem %s5, %s926
      $region52: #{seld_decoder_forward.4} parent=47 // pred_fallthru
        _
    $region48: #{seld_decoder_forward.4} parent=5 // pred_fallthru
      _
  $region6: #{seld_decoder_forward.4} parent=0 // loop_footer
    %s15 = sadd.s32 1, %s11
  $region7: #{seld_decoder_forward.4} parent=0 // loop_footer_branch
    %10 = sbr.rel target = $region3
  $region8: #{seld_decoder_forward.4} parent=0 // loop_exit
    _

// kernel: seld_decoder_forward.3
$region0: #{seld_decoder_forward.3}
  #allocation0 [shape = 'u32[]', space=smem, size = 0x4, offset = 0x4, fixed_abs, tag = 'smem constant byte address 0x4 - core index']
  #allocation1 [shape = 'u32[72,128]{1,0:T(1,128)}', space=vmem, size = 0x9000, scoped, tag = 'internal scratch']
  #allocation2 [shape = 'f32[16,48]{1,0:T(8,128)}', space=vmem, size = 0x2000, scoped, tag = 'scratch operand']
  %s0 = inlined_call_operand.vmem [shape: f32[16,128], index: 0, kind: input, shape index: {}]
  %s1 = inlined_call_operand.vmem [shape: f32[2,128,48], index: 1, kind: input, shape index: {}]
  %s2 = inlined_call_operand.vmem [shape: f32[2,1,48], index: 2, kind: input, shape index: {}]
  %s3 = inlined_call_operand.vmem [shape: f32[2,16,48], index: 3, kind: input, shape index: {}]
  %s4 = inlined_call_operand.vmem [shape: f32[2,1,48], index: 4, kind: input, shape index: {}]
  %s5 = inlined_call_operand.vmem [shape: f32[2,16,16], index: 5, kind: output, shape index: {}]
  %s6 = sld [smem:[#allocation0]]
  $region53: #{seld_decoder_forward.3} parent=0
    _
  %s8 = ssub.s32 1, %s6
  %s9 = scalar_select 0, %s8, %s6
  loop: start=0, step=1, limit=4
  $region2: #{seld_decoder_forward.3} parent=0 // loop_pre_header
    _
  $region3: #{seld_decoder_forward.3} parent=0 // loop_header
    %s11 = sphi 0, %s15
    %p12 = scmp.ge.s32.totalorder %s11, 4
    %s19 = sphi 0, %s19
    %s21 = sphi 0, %s19
    %s22 = sphi 0, %s21
    %s36 = sphi 0, %s22
    %s42 = sphi 0, %s44
    %s45 = sphi 0, %s42
    %s46 = sphi 0, %s45
    %s62 = sphi 0, %s46
    %s68 = sphi 0, %s70
    %s71 = sphi 0, %s68
    %s72 = sphi 0, %s71
    %s88 = sphi 0, %s72
    %s94 = sphi 0, %s96
    %s97 = sphi 0, %s94
    %s98 = sphi 0, %s97
    %s114 = sphi 0, %s98
    %s120 = sphi 0, %s122
    %s123 = sphi 0, %s120
    %s124 = sphi 0, %s123
    %s140 = sphi 0, %s124
    %s146 = sphi 0, %s148
    %s149 = sphi 0, %s146
    %s150 = sphi 0, %s149
    %s166 = sphi 0, %s150
  $region4: #{seld_decoder_forward.3} parent=0 // loop_header_branch
    %14 = sbr.rel (%p12) target = $region8
  $region5: #{seld_decoder_forward.3} parent=0 // loop_body
    %s16 = ssub.s32 %s11, 1
    %s17 = ssub.s32 %s11, 2
    %s18 = sadd.s32 %s11, 1
    %s20 = sadd.s32 %s19, 1
    %p23 = scmp.eq.s32.totalorder %s11, 1
    %p24 = scmp.ne.s32.totalorder %s19, %s21
    %p25 = scmp.eq.s32.totalorder %s11, 0
    %p26 = por %p24, %p25
    %p27 = scmp.ne.s32.totalorder %s19, %s21
    %p28 = scmp.eq.s32.totalorder %s16, 1
    %p29 = por %p27, %p28
    %p30 = scmp.ne.s32.totalorder %s21, %s22
    %p31 = scmp.eq.s32.totalorder %s16, 0
    %p32 = por %p30, %p31
    %p33 = scmp.ne.s32.totalorder %s21, %s22
    %p34 = scmp.eq.s32.totalorder %s17, 1
    %p35 = por %p33, %p34
    %p37 = scmp.ne.s32.totalorder %s22, %s36
    %p38 = scmp.eq.s32.totalorder %s17, 0
    %p39 = por %p37, %p38
    %s40 = ssub.s32 %s11, %s18
    %p41 = scmp.eq.s32.totalorder %s40, 0
    %s43 = sadd.s32 %s42, 1
    %s44 = scalar_select %p41, %s42, %s43
    %p47 = pneg %p41
    %p48 = scmp.eq.s32.totalorder %s11, 1
    %p49 = por %p47, %p48
    %p50 = scmp.ne.s32.totalorder %s42, %s45
    %p51 = scmp.eq.s32.totalorder %s11, 0
    %p52 = por %p50, %p51
    %p53 = scmp.ne.s32.totalorder %s42, %s45
    %p54 = scmp.eq.s32.totalorder %s16, 1
    %p55 = por %p53, %p54
    %p56 = scmp.ne.s32.totalorder %s45, %s46
    %p57 = scmp.eq.s32.totalorder %s16, 0
    %p58 = por %p56, %p57
    %p59 = scmp.ne.s32.totalorder %s45, %s46
    %p60 = scmp.eq.s32.totalorder %s17, 1
    %p61 = por %p59, %p60
    %p63 = scmp.ne.s32.totalorder %s46, %s62
    %p64 = scmp.eq.s32.totalorder %s17, 0
    %p65 = por %p63, %p64
    %s66 = ssub.s32 %s11, %s18
    %p67 = scmp.eq.s32.totalorder %s66, 0
    %s69 = sadd.s32 %s68, 1
    %s70 = scalar_select %p67, %s68, %s69
    %p73 = pneg %p67
    %p74 = scmp.eq.s32.totalorder %s11, 1
    %p75 = por %p73, %p74
    %p76 = scmp.ne.s32.totalorder %s68, %s71
    %p77 = scmp.eq.s32.totalorder %s11, 0
    %p78 = por %p76, %p77
    %p79 = scmp.ne.s32.totalorder %s68, %s71
    %p80 = scmp.eq.s32.totalorder %s16, 1
    %p81 = por %p79, %p80
    %p82 = scmp.ne.s32.totalorder %s71, %s72
    %p83 = scmp.eq.s32.totalorder %s16, 0
    %p84 = por %p82, %p83
    %p85 = scmp.ne.s32.totalorder %s71, %s72
    %p86 = scmp.eq.s32.totalorder %s17, 1
    %p87 = por %p85, %p86
    %p89 = scmp.ne.s32.totalorder %s72, %s88
    %p90 = scmp.eq.s32.totalorder %s17, 0
    %p91 = por %p89, %p90
    %s92 = ssub.s32 %s11, %s18
    %p93 = scmp.eq.s32.totalorder %s92, 0
    %s95 = sadd.s32 %s94, 1
    %s96 = scalar_select %p93, %s94, %s95
    %p99 = pneg %p93
    %p100 = scmp.eq.s32.totalorder %s11, 1
    %p101 = por %p99, %p100
    %p102 = scmp.ne.s32.totalorder %s94, %s97
    %p103 = scmp.eq.s32.totalorder %s11, 0
    %p104 = por %p102, %p103
    %p105 = scmp.ne.s32.totalorder %s94, %s97
    %p106 = scmp.eq.s32.totalorder %s16, 1
    %p107 = por %p105, %p106
    %p108 = scmp.ne.s32.totalorder %s97, %s98
    %p109 = scmp.eq.s32.totalorder %s16, 0
    %p110 = por %p108, %p109
    %p111 = scmp.ne.s32.totalorder %s97, %s98
    %p112 = scmp.eq.s32.totalorder %s17, 1
    %p113 = por %p111, %p112
    %p115 = scmp.ne.s32.totalorder %s98, %s114
    %p116 = scmp.eq.s32.totalorder %s17, 0
    %p117 = por %p115, %p116
    %s118 = ssub.s32 %s11, %s18
    %p119 = scmp.eq.s32.totalorder %s118, 0
    %s121 = sadd.s32 %s120, 1
    %s122 = scalar_select %p119, %s120, %s121
    %p125 = pneg %p119
    %p126 = scmp.eq.s32.totalorder %s11, 1
    %p127 = por %p125, %p126
    %p128 = scmp.ne.s32.totalorder %s120, %s123
    %p129 = scmp.eq.s32.totalorder %s11, 0
    %p130 = por %p128, %p129
    %p131 = scmp.ne.s32.totalorder %s120, %s123
    %p132 = scmp.eq.s32.totalorder %s16, 1
    %p133 = por %p131, %p132
    %p134 = scmp.ne.s32.totalorder %s123, %s124
    %p135 = scmp.eq.s32.totalorder %s16, 0
    %p136 = por %p134, %p135
    %p137 = scmp.ne.s32.totalorder %s123, %s124
    %p138 = scmp.eq.s32.totalorder %s17, 1
    %p139 = por %p137, %p138
    %p141 = scmp.ne.s32.totalorder %s124, %s140
    %p142 = scmp.eq.s32.totalorder %s17, 0
    %p143 = por %p141, %p142
    %s144 = ssub.s32 %s11, %s18
    %p145 = scmp.eq.s32.totalorder %s144, 0
    %s147 = sadd.s32 %s146, 1
    %s148 = scalar_select %p145, %s146, %s147
    %p151 = pneg %p145
    %p152 = scmp.eq.s32.totalorder %s11, 1
    %p153 = por %p151, %p152
    %p154 = scmp.ne.s32.totalorder %s146, %s149
    %p155 = scmp.eq.s32.totalorder %s11, 0
    %p156 = por %p154, %p155
    %p157 = scmp.ne.s32.totalorder %s146, %s149
    %p158 = scmp.eq.s32.totalorder %s16, 1
    %p159 = por %p157, %p158
    %p160 = scmp.ne.s32.totalorder %s149, %s150
    %p161 = scmp.eq.s32.totalorder %s16, 0
    %p162 = por %p160, %p161
    %p163 = scmp.ne.s32.totalorder %s149, %s150
    %p164 = scmp.eq.s32.totalorder %s17, 1
    %p165 = por %p163, %p164
    %p167 = scmp.ne.s32.totalorder %s150, %s166
    %p168 = scmp.eq.s32.totalorder %s17, 0
    %p169 = por %p167, %p168
    %p170 = scmp.le.s32.totalorder 1, %s11
    %p171 = scmp.lt.s32.totalorder %s11, 3
    %p172 = pnand %p170, %p171
    %p173 = pneg %p172
    // Predicated region
    $region9: #{seld_decoder_forward.3} parent=5 // pred_check
      _
    $region10: #{seld_decoder_forward.3} parent=5 // pred_check_branch
      %175 = sbr.rel (%p172) target = $region12
    $region11: #{seld_decoder_forward.3} parent=5 // pred_region
      %s176 = ssub.s32 %s11, 1
      // Predicated region
      $region13: #{seld_decoder_forward.3} parent=11 // pred_check
        %p177 = pneg %p32
      $region14: #{seld_decoder_forward.3} parent=11 // pred_check_branch
        %179 = sbr.rel (%p177) target = $region16
      $region15: #{seld_decoder_forward.3} parent=11 // pred_region
        _
      $region16: #{seld_decoder_forward.3} parent=11 // pred_fallthru
        _
    $region12: #{seld_decoder_forward.3} parent=5 // pred_fallthru
      _
    %p180 = scmp.lt.s32.totalorder %s11, 2
    // Predicated region
    $region17: #{seld_decoder_forward.3} parent=5 // pred_check
      %p181 = pneg %p180
    $region18: #{seld_decoder_forward.3} parent=5 // pred_check_branch
      %183 = sbr.rel (%p181) target = $region20
    $region19: #{seld_decoder_forward.3} parent=5 // pred_region
      // Predicated region
      $region21: #{seld_decoder_forward.3} parent=19 // pred_check
        %p184 = pneg %p52
      $region22: #{seld_decoder_forward.3} parent=19 // pred_check_branch
        %186 = sbr.rel (%p184) target = $region24
      $region23: #{seld_decoder_forward.3} parent=19 // pred_region
        %p187 = scmp.lt.s32.totalorder %s11, 1
        %s188 = scalar_select %p187, %s11, 1
        %s189 = smul.addr %s188, 16
        %s190 = smul.addr %s189, 8
        %s191 = scalar_lea.vmem %s1, %s190
      $region24: #{seld_decoder_forward.3} parent=19 // pred_fallthru
        _
      // Predicated region
      $region25: #{seld_decoder_forward.3} parent=19 // pred_check
        %p192 = pneg %p78
      $region26: #{seld_decoder_forward.3} parent=19 // pred_check_branch
        %194 = sbr.rel (%p192) target = $region28
      $region27: #{seld_decoder_forward.3} parent=19 // pred_region
        %p195 = scmp.lt.s32.totalorder %s11, 1
        %s196 = scalar_select %p195, %s11, 1
        %s197 = scalar_lea.vmem %s2, %s196
      $region28: #{seld_decoder_forward.3} parent=19 // pred_fallthru
        _
      // Predicated region
      $region29: #{seld_decoder_forward.3} parent=19 // pred_check
        %p198 = pneg %p104
      $region30: #{seld_decoder_forward.3} parent=19 // pred_check_branch
        %200 = sbr.rel (%p198) target = $region32
      $region31: #{seld_decoder_forward.3} parent=19 // pred_region
        %p201 = scmp.lt.s32.totalorder %s11, 1
        %s202 = scalar_select %p201, %s11, 1
        %s203 = smul.addr %s202, 2
        %s204 = smul.addr %s203, 8
        %s205 = scalar_lea.vmem %s3, %s204
      $region32: #{seld_decoder_forward.3} parent=19 // pred_fallthru
        _
      // Predicated region
      $region33: #{seld_decoder_forward.3} parent=19 // pred_check
        %p206 = pneg %p130
      $region34: #{seld_decoder_forward.3} parent=19 // pred_check_branch
        %208 = sbr.rel (%p206) target = $region36
      $region35: #{seld_decoder_forward.3} parent=19 // pred_region
        %p209 = scmp.lt.s32.totalorder %s11, 1
        %s210 = scalar_select %p209, %s11, 1
        %s211 = scalar_lea.vmem %s4, %s210
      $region36: #{seld_decoder_forward.3} parent=19 // pred_fallthru
        _
    $region20: #{seld_decoder_forward.3} parent=5 // pred_fallthru
      _
    %p212 = scmp.le.s32.totalorder 1, %s11
    %p213 = scmp.lt.s32.totalorder %s11, 3
    %p214 = pnand %p212, %p213
    %p215 = pneg %p214
    // Predicated region
    $region37: #{seld_decoder_forward.3} parent=5 // pred_check
      _
    $region38: #{seld_decoder_forward.3} parent=5 // pred_check_branch
      %217 = sbr.rel (%p214) target = $region40
    $region39: #{seld_decoder_forward.3} parent=5 // pred_region
      %s218 = ssub.s32 %s11, 1
      %p219 = pneg %p32
      %p220 = pneg %p29
      %p221 = scmp.lt.s32.totalorder %s16, 1
      %s222 = scalar_select %p221, %s16, 1
      %s223 = smul.addr %s222, 16
      %s224 = smul.addr %s223, 8
      %s225 = scalar_lea.vmem %s1, %s224
      %p226 = pneg %p58
      %p227 = pneg %p55
      %p228 = scmp.lt.s32.totalorder %s16, 1
      %s229 = scalar_select %p228, %s16, 1
      %s230 = scalar_lea.vmem %s2, %s229
      %p231 = pneg %p84
      %p232 = pneg %p81
      %p233 = scmp.lt.s32.totalorder %s16, 1
      %s234 = scalar_select %p233, %s16, 1
      %s235 = smul.addr %s234, 2
      %s236 = smul.addr %s235, 8
      %s237 = scalar_lea.vmem %s3, %s236
      %p238 = pneg %p110
      %p239 = pneg %p107
      %p240 = scmp.lt.s32.totalorder %s16, 1
      %s241 = scalar_select %p240, %s16, 1
      %s242 = scalar_lea.vmem %s4, %s241
      %p243 = pneg %p136
      %p244 = pneg %p133
      %p245 = pneg %p162
      %p246 = pneg %p159
      %p247 = scmp.lt.s32.totalorder %s16, 1
      %s248 = scalar_select %p247, %s16, 1
      %s249 = smul.addr %s248, 2
      %s250 = smul.addr %s249, 8
      %s251 = scalar_lea.vmem %s5, %s250
      %p252 = scmp.lt.s32.totalorder %s16, 1
      %s253 = scalar_select %p252, %s16, 1
      %s254 = smul.addr %s253, 16
      %s255 = smul.addr %s254, 8
      %s256 = scalar_lea.vmem %s1, %s255
      %p257 = scmp.lt.s32.totalorder %s16, 1
      %s258 = scalar_select %p257, %s16, 1
      %s259 = scalar_lea.vmem %s2, %s258
      %p260 = scmp.lt.s32.totalorder %s16, 1
      %s261 = scalar_select %p260, %s16, 1
      %s262 = smul.addr %s261, 2
      %s263 = smul.addr %s262, 8
      %s264 = scalar_lea.vmem %s3, %s263
      %p265 = scmp.lt.s32.totalorder %s16, 1
      %s266 = scalar_select %p265, %s16, 1
      %s267 = scalar_lea.vmem %s4, %s266
      %p268 = scmp.lt.s32.totalorder %s16, 1
      %s269 = scalar_select %p268, %s16, 1
      %s270 = smul.addr %s269, 2
      %s271 = smul.addr %s270, 8
      %s272 = scalar_lea.vmem %s5, %s271
      %v273 = vld [vmem:[%s0] sm:$0xff]
      %v274 = vld [vmem:[%s0 + $0x8] sm:$0xff]
      %v275 = vld [vmem:[%s256] sm:$0xff]
      %v276 = vld [vmem:[%s256 + $0x8] sm:$0xff]
      %v277 = vld [vmem:[%s256 + $0x10] sm:$0xff]
      %v278 = vld [vmem:[%s256 + $0x18] sm:$0xff]
      %v279 = vld [vmem:[%s256 + $0x20] sm:$0xff]
      %v280 = vld [vmem:[%s256 + $0x28] sm:$0xff]
      %v281 = vld [vmem:[%s256 + $0x30] sm:$0xff]
      %v282 = vld [vmem:[%s256 + $0x38] sm:$0xff]
      %v283 = vld [vmem:[%s256 + $0x40] sm:$0xff]
      %v284 = vld [vmem:[%s256 + $0x48] sm:$0xff]
      %v285 = vld [vmem:[%s256 + $0x50] sm:$0xff]
      %v286 = vld [vmem:[%s256 + $0x58] sm:$0xff]
      %v287 = vld [vmem:[%s256 + $0x60] sm:$0xff]
      %v288 = vld [vmem:[%s256 + $0x68] sm:$0xff]
      %v289 = vld [vmem:[%s256 + $0x70] sm:$0xff]
      %v290 = vld [vmem:[%s256 + $0x78] sm:$0xff]
      %v291 = vld [vmem:[%s259] sm:$0x1]
      %v293 = vperm.slane %v291, 0
      %295 = vmatpush.msra.mxu0 %v290
      %296 = vmatpush.msra.mxu0 %v289
      %297 = vmatpush.msra.mxu0 %v288
      %298 = vmatpush.msra.mxu0 %v287
      %299 = vmatpush.msra.mxu0 %v286
      %300 = vmatpush.msra.mxu0 %v285
      %301 = vmatpush.msra.mxu0 %v284
      %302 = vmatpush.msra.mxu0 %v283
      %303 = vmatpush.msra.mxu0 %v282
      %304 = vmatpush.msra.mxu0 %v281
      %305 = vmatpush.msra.mxu0 %v280
      %306 = vmatpush.msra.mxu0 %v279
      %307 = vmatpush.msra.mxu0 %v278
      %308 = vmatpush.msra.mxu0 %v277
      %309 = vmatpush.msra.mxu0 %v276
      %310 = vmatpush.msra.mxu0 %v275
      %311 = vmatmul.f32.gmra.mxu0 %v273
      %v312 = vpop.f32.mrf.mxu0
      %v313 = vadd.f32 %v293, %v312
      %314 = vmatmul.f32.gmra.mxu0 %v274
      %v315 = vpop.f32.mrf.mxu0
      %v316 = vadd.f32 %v293, %v315
      %317 = vdwg.mxu0
      %vm318 = vcmask 392192
      %319 = vst.msk [vmem:[#allocation2] sm:$0xff] %vm318, %v313
      %320 = vst.msk [vmem:[#allocation2 + $0x8] sm:$0xff] %vm318, %v316
      %v321 = vld [vmem:[%s264] sm:$0xff]
      %v322 = vld [vmem:[%s264 + $0x8] sm:$0xff]
      %v323 = vld [vmem:[%s267] sm:$0x1]
      %p324 = scmp.eq.s32.totalorder %s16, 0
      %s325 = scalar_select %p324, 0, 7
      %s326 = smul.u32 %s325, 2
      %s327 = scalar_lea.vmem [#allocation2], %s326
      %v328 = vld [vmem:[%s327] sm:$0x3]
      %v330 = vperm.slane %v323, 0
      %vm332 = vcmask 130048
      %v334 = vsel %vm332, 0.0, 0
      %336 = vmatpush.msra.mxu0 0.0
      %337 = vmatpush.msra.mxu0 0.0
      %338 = vmatpush.msra.mxu0 0.0
      %339 = vmatpush.msra.mxu0 0.0
      %340 = vmatpush.msra.mxu0 0.0
      %341 = vmatpush.msra.mxu0 0.0
      %342 = vmatpush.msra.mxu0 0.0
      %343 = vmatpush.msra.mxu0 0.0
      %344 = vmatpush.msra.mxu0 0.0
      %345 = vmatpush.msra.mxu0 0.0
      %346 = vmatpush.msra.mxu0 0.0
      %347 = vmatpush.msra.mxu0 0.0
      %348 = vmatpush.msra.mxu0 0.0
      %349 = vmatpush.msra.mxu0 0.0
      %350 = vmatpush.msra.mxu0 %v322
      %351 = vmatpush.msra.mxu0 %v321
      %352 = vmatmul.f32.gmra.mxu0 %v334
      %v353 = vpop.f32.mrf.mxu0
      %v354 = vadd.f32 %v330, %v353
      %355 = vdwg.mxu0
      %v356 = vadd.f32 %v328, %v354
      %v357 = vxor.u32 %v356, 2147483648
      %v358 = vmul.f32 %v357, 1.442695
      %v359 = vpow.pop %v358
      %v360 = vadd.f32 %v359, 1.0
      %v361 = vrcp.pop %v360
      %v362 = vmul.f32 %v360, %v361
      %v363 = vsub.f32 1.0, %v362
      %v364 = vmul.f32 %v361, %v363
      %v365 = vadd.f32 %v361, %v364
      %vm366 = vweird.f32 %v360
      %vm367 = vweird.f32 %v361
      %vm368 = vmor %vm366, %vm367
      %v369 = vsel %vm368, %v361, %v365
      %v370 = vand.u32 2147483647, %v360
      %vm371 = vcmp.eq.f32.partialorder %v370, 8.507059e+37
      %v372 = vand.u32 %v360, 2147483648
      %v373 = vor.u32 1.1754944e-38, %v372
      %v374 = vsel %vm371, %v373, %v369
      %v375 = vmul.f32 1.0, %v374
      %377 = vrot.lane.b32.xlu0 %v354, 96
      %v378 = vpop.permute.xlu0 %377
      %v380 = vmul.f32 %v375, %v378
      %382 = vrot.lane.b32.xlu0 %v380, 32
      %v383 = vpop.permute.xlu0 %382
      %v385 = vadd.f32 %v328, %v383
      %v386 = vtanh.pop %v385
      %v387 = vsub.f32 1.0, %v375
      %389 = vrot.lane.b32.xlu0 %v386, 112
      %v390 = vpop.permute.xlu0 %389
      %v392 = vmul.f32 %v387, %v390
      %v393 = vmul.f32 %v375, 0.0
      %v394 = vadd.f32 %v392, %v393
      %396 = vrot.lane.b32.xlu0 %v394, 112
      %v397 = vpop.permute.xlu0 %396
      %s399 = scalar_lea.vmem %s272, %s326
      %vm400 = vcmask 123904
      %401 = vst.msk [vmem:[%s399] sm:$0x3] %vm400, %v397
      %s402 = scalar_select %p324, 1, 6
      %s403 = smul.u32 %s402, 2
      %s404 = scalar_lea.vmem [#allocation2], %s403
      %v405 = vld [vmem:[%s404] sm:$0x3]
      %v406 = vsel %vm332, %v397, 0
      %408 = vmatpush.msra.mxu0 0.0
      %409 = vmatpush.msra.mxu0 0.0
      %410 = vmatpush.msra.mxu0 0.0
      %411 = vmatpush.msra.mxu0 0.0
      %412 = vmatpush.msra.mxu0 0.0
      %413 = vmatpush.msra.mxu0 0.0
      %414 = vmatpush.msra.mxu0 0.0
      %415 = vmatpush.msra.mxu0 0.0
      %416 = vmatpush.msra.mxu0 0.0
      %417 = vmatpush.msra.mxu0 0.0
      %418 = vmatpush.msra.mxu0 0.0
      %419 = vmatpush.msra.mxu0 0.0
      %420 = vmatpush.msra.mxu0 0.0
      %421 = vmatpush.msra.mxu0 0.0
      %422 = vmatpush.msra.mxu0 %v322
      %423 = vmatpush.msra.mxu0 %v321
      %424 = vmatmul.f32.gmra.mxu0 %v406
      %v425 = vpop.f32.mrf.mxu0
      %v426 = vadd.f32 %v330, %v425
      %427 = vdwg.mxu0
      %v428 = vadd.f32 %v405, %v426
      %v429 = vxor.u32 %v428, 2147483648
      %v430 = vmul.f32 %v429, 1.442695
      %v431 = vpow.pop %v430
      %v432 = vadd.f32 %v431, 1.0
      %v433 = vrcp.pop %v432
      %v434 = vmul.f32 %v432, %v433
      %v435 = vsub.f32 1.0, %v434
      %v436 = vmul.f32 %v433, %v435
      %v437 = vadd.f32 %v433, %v436
      %vm438 = vweird.f32 %v432
      %vm439 = vweird.f32 %v433
      %vm440 = vmor %vm438, %vm439
      %v441 = vsel %vm440, %v433, %v437
      %v442 = vand.u32 2147483647, %v432
      %vm443 = vcmp.eq.f32.partialorder %v442, 8.507059e+37
      %v444 = vand.u32 %v432, 2147483648
      %v445 = vor.u32 1.1754944e-38, %v444
      %v446 = vsel %vm443, %v445, %v441
      %v447 = vmul.f32 1.0, %v446
      %449 = vrot.lane.b32.xlu0 %v426, 96
      %v450 = vpop.permute.xlu0 %449
      %v452 = vmul.f32 %v447, %v450
      %454 = vrot.lane.b32.xlu0 %v452, 32
      %v455 = vpop.permute.xlu0 %454
      %v457 = vadd.f32 %v405, %v455
      %v458 = vtanh.pop %v457
      %v459 = vsub.f32 1.0, %v447
      %461 = vrot.lane.b32.xlu0 %v458, 112
      %v462 = vpop.permute.xlu0 %461
      %v464 = vmul.f32 %v459, %v462
      %v465 = vmul.f32 %v447, %v394
      %v466 = vadd.f32 %v464, %v465
      %468 = vrot.lane.b32.xlu0 %v466, 112
      %v469 = vpop.permute.xlu0 %468
      %s471 = scalar_lea.vmem %s272, %s403
      %472 = vst.msk [vmem:[%s471] sm:$0x3] %vm400, %v469
      %s473 = scalar_select %p324, 2, 5
      %s474 = smul.u32 %s473, 2
      %s475 = scalar_lea.vmem [#allocation2], %s474
      %v476 = vld [vmem:[%s475] sm:$0x3]
      %v477 = vsel %vm332, %v469, 0
      %479 = vmatpush.msra.mxu0 0.0
      %480 = vmatpush.msra.mxu0 0.0
      %481 = vmatpush.msra.mxu0 0.0
      %482 = vmatpush.msra.mxu0 0.0
      %483 = vmatpush.msra.mxu0 0.0
      %484 = vmatpush.msra.mxu0 0.0
      %485 = vmatpush.msra.mxu0 0.0
      %486 = vmatpush.msra.mxu0 0.0
      %487 = vmatpush.msra.mxu0 0.0
      %488 = vmatpush.msra.mxu0 0.0
      %489 = vmatpush.msra.mxu0 0.0
      %490 = vmatpush.msra.mxu0 0.0
      %491 = vmatpush.msra.mxu0 0.0
      %492 = vmatpush.msra.mxu0 0.0
      %493 = vmatpush.msra.mxu0 %v322
      %494 = vmatpush.msra.mxu0 %v321
      %495 = vmatmul.f32.gmra.mxu0 %v477
      %v496 = vpop.f32.mrf.mxu0
      %v497 = vadd.f32 %v330, %v496
      %498 = vdwg.mxu0
      %v499 = vadd.f32 %v476, %v497
      %v500 = vxor.u32 %v499, 2147483648
      %v501 = vmul.f32 %v500, 1.442695
      %v502 = vpow.pop %v501
      %v503 = vadd.f32 %v502, 1.0
      %v504 = vrcp.pop %v503
      %v505 = vmul.f32 %v503, %v504
      %v506 = vsub.f32 1.0, %v505
      %v507 = vmul.f32 %v504, %v506
      %v508 = vadd.f32 %v504, %v507
      %vm509 = vweird.f32 %v503
      %vm510 = vweird.f32 %v504
      %vm511 = vmor %vm509, %vm510
      %v512 = vsel %vm511, %v504, %v508
      %v513 = vand.u32 2147483647, %v503
      %vm514 = vcmp.eq.f32.partialorder %v513, 8.507059e+37
      %v515 = vand.u32 %v503, 2147483648
      %v516 = vor.u32 1.1754944e-38, %v515
      %v517 = vsel %vm514, %v516, %v512
      %v518 = vmul.f32 1.0, %v517
      %520 = vrot.lane.b32.xlu0 %v497, 96
      %v521 = vpop.permute.xlu0 %520
      %v523 = vmul.f32 %v518, %v521
      %525 = vrot.lane.b32.xlu0 %v523, 32
      %v526 = vpop.permute.xlu0 %525
      %v528 = vadd.f32 %v476, %v526
      %v529 = vtanh.pop %v528
      %v530 = vsub.f32 1.0, %v518
      %532 = vrot.lane.b32.xlu0 %v529, 112
      %v533 = vpop.permute.xlu0 %532
      %v535 = vmul.f32 %v530, %v533
      %v536 = vmul.f32 %v518, %v466
      %v537 = vadd.f32 %v535, %v536
      %539 = vrot.lane.b32.xlu0 %v537, 112
      %v540 = vpop.permute.xlu0 %539
      %s542 = scalar_lea.vmem %s272, %s474
      %543 = vst.msk [vmem:[%s542] sm:$0x3] %vm400, %v540
      %s544 = scalar_select %p324, 3, 4
      %s545 = smul.u32 %s544, 2
      %s546 = scalar_lea.vmem [#allocation2], %s545
      %v547 = vld [vmem:[%s546] sm:$0x3]
      %v548 = vsel %vm332, %v540, 0
      %550 = vmatpush.msra.mxu0 0.0
      %551 = vmatpush.msra.mxu0 0.0
      %552 = vmatpush.msra.mxu0 0.0
      %553 = vmatpush.msra.mxu0 0.0
      %554 = vmatpush.msra.mxu0 0.0
      %555 = vmatpush.msra.mxu0 0.0
      %556 = vmatpush.msra.mxu0 0.0
      %557 = vmatpush.msra.mxu0 0.0
      %558 = vmatpush.msra.mxu0 0.0
      %559 = vmatpush.msra.mxu0 0.0
      %560 = vmatpush.msra.mxu0 0.0
      %561 = vmatpush.msra.mxu0 0.0
      %562 = vmatpush.msra.mxu0 0.0
      %563 = vmatpush.msra.mxu0 0.0
      %564 = vmatpush.msra.mxu0 %v322
      %565 = vmatpush.msra.mxu0 %v321
      %566 = vmatmul.f32.gmra.mxu0 %v548
      %v567 = vpop.f32.mrf.mxu0
      %v568 = vadd.f32 %v330, %v567
      %569 = vdwg.mxu0
      %v570 = vadd.f32 %v547, %v568
      %v571 = vxor.u32 %v570, 2147483648
      %v572 = vmul.f32 %v571, 1.442695
      %v573 = vpow.pop %v572
      %v574 = vadd.f32 %v573, 1.0
      %v575 = vrcp.pop %v574
      %v576 = vmul.f32 %v574, %v575
      %v577 = vsub.f32 1.0, %v576
      %v578 = vmul.f32 %v575, %v577
      %v579 = vadd.f32 %v575, %v578
      %vm580 = vweird.f32 %v574
      %vm581 = vweird.f32 %v575
      %vm582 = vmor %vm580, %vm581
      %v583 = vsel %vm582, %v575, %v579
      %v584 = vand.u32 2147483647, %v574
      %vm585 = vcmp.eq.f32.partialorder %v584, 8.507059e+37
      %v586 = vand.u32 %v574, 2147483648
      %v587 = vor.u32 1.1754944e-38, %v586
      %v588 = vsel %vm585, %v587, %v583
      %v589 = vmul.f32 1.0, %v588
      %591 = vrot.lane.b32.xlu0 %v568, 96
      %v592 = vpop.permute.xlu0 %591
      %v594 = vmul.f32 %v589, %v592
      %596 = vrot.lane.b32.xlu0 %v594, 32
      %v597 = vpop.permute.xlu0 %596
      %v599 = vadd.f32 %v547, %v597
      %v600 = vtanh.pop %v599
      %v601 = vsub.f32 1.0, %v589
      %603 = vrot.lane.b32.xlu0 %v600, 112
      %v604 = vpop.permute.xlu0 %603
      %v606 = vmul.f32 %v601, %v604
      %v607 = vmul.f32 %v589, %v537
      %v608 = vadd.f32 %v606, %v607
      %610 = vrot.lane.b32.xlu0 %v608, 112
      %v611 = vpop.permute.xlu0 %610
      %s613 = scalar_lea.vmem %s272, %s545
      %614 = vst.msk [vmem:[%s613] sm:$0x3] %vm400, %v611
      %s615 = scalar_select %p324, 4, 3
      %s616 = smul.u32 %s615, 2
      %s617 = scalar_lea.vmem [#allocation2], %s616
      %v618 = vld [vmem:[%s617] sm:$0x3]
      %v619 = vsel %vm332, %v611, 0
      %621 = vmatpush.msra.mxu0 0.0
      %622 = vmatpush.msra.mxu0 0.0
      %623 = vmatpush.msra.mxu0 0.0
      %624 = vmatpush.msra.mxu0 0.0
      %625 = vmatpush.msra.mxu0 0.0
      %626 = vmatpush.msra.mxu0 0.0
      %627 = vmatpush.msra.mxu0 0.0
      %628 = vmatpush.msra.mxu0 0.0
      %629 = vmatpush.msra.mxu0 0.0
      %630 = vmatpush.msra.mxu0 0.0
      %631 = vmatpush.msra.mxu0 0.0
      %632 = vmatpush.msra.mxu0 0.0
      %633 = vmatpush.msra.mxu0 0.0
      %634 = vmatpush.msra.mxu0 0.0
      %635 = vmatpush.msra.mxu0 %v322
      %636 = vmatpush.msra.mxu0 %v321
      %637 = vmatmul.f32.gmra.mxu0 %v619
      %v638 = vpop.f32.mrf.mxu0
      %v639 = vadd.f32 %v330, %v638
      %640 = vdwg.mxu0
      %v641 = vadd.f32 %v618, %v639
      %v642 = vxor.u32 %v641, 2147483648
      %v643 = vmul.f32 %v642, 1.442695
      %v644 = vpow.pop %v643
      %v645 = vadd.f32 %v644, 1.0
      %v646 = vrcp.pop %v645
      %v647 = vmul.f32 %v645, %v646
      %v648 = vsub.f32 1.0, %v647
      %v649 = vmul.f32 %v646, %v648
      %v650 = vadd.f32 %v646, %v649
      %vm651 = vweird.f32 %v645
      %vm652 = vweird.f32 %v646
      %vm653 = vmor %vm651, %vm652
      %v654 = vsel %vm653, %v646, %v650
      %v655 = vand.u32 2147483647, %v645
      %vm656 = vcmp.eq.f32.partialorder %v655, 8.507059e+37
      %v657 = vand.u32 %v645, 2147483648
      %v658 = vor.u32 1.1754944e-38, %v657
      %v659 = vsel %vm656, %v658, %v654
      %v660 = vmul.f32 1.0, %v659
      %662 = vrot.lane.b32.xlu0 %v639, 96
      %v663 = vpop.permute.xlu0 %662
      %v665 = vmul.f32 %v660, %v663
      %667 = vrot.lane.b32.xlu0 %v665, 32
      %v668 = vpop.permute.xlu0 %667
      %v670 = vadd.f32 %v618, %v668
      %v671 = vtanh.pop %v670
      %v672 = vsub.f32 1.0, %v660
      %674 = vrot.lane.b32.xlu0 %v671, 112
      %v675 = vpop.permute.xlu0 %674
      %v677 = vmul.f32 %v672, %v675
      %v678 = vmul.f32 %v660, %v608
      %v679 = vadd.f32 %v677, %v678
      %681 = vrot.lane.b32.xlu0 %v679, 112
      %v682 = vpop.permute.xlu0 %681
      %s684 = scalar_lea.vmem %s272, %s616
      %685 = vst.msk [vmem:[%s684] sm:$0x3] %vm400, %v682
      %s686 = scalar_select %p324, 5, 2
      %s687 = smul.u32 %s686, 2
      %s688 = scalar_lea.vmem [#allocation2], %s687
      %v689 = vld [vmem:[%s688] sm:$0x3]
      %v690 = vsel %vm332, %v682, 0
      %692 = vmatpush.msra.mxu0 0.0
      %693 = vmatpush.msra.mxu0 0.0
      %694 = vmatpush.msra.mxu0 0.0
      %695 = vmatpush.msra.mxu0 0.0
      %696 = vmatpush.msra.mxu0 0.0
      %697 = vmatpush.msra.mxu0 0.0
      %698 = vmatpush.msra.mxu0 0.0
      %699 = vmatpush.msra.mxu0 0.0
      %700 = vmatpush.msra.mxu0 0.0
      %701 = vmatpush.msra.mxu0 0.0
      %702 = vmatpush.msra.mxu0 0.0
      %703 = vmatpush.msra.mxu0 0.0
      %704 = vmatpush.msra.mxu0 0.0
      %705 = vmatpush.msra.mxu0 0.0
      %706 = vmatpush.msra.mxu0 %v322
      %707 = vmatpush.msra.mxu0 %v321
      %708 = vmatmul.f32.gmra.mxu0 %v690
      %v709 = vpop.f32.mrf.mxu0
      %v710 = vadd.f32 %v330, %v709
      %711 = vdwg.mxu0
      %v712 = vadd.f32 %v689, %v710
      %v713 = vxor.u32 %v712, 2147483648
      %v714 = vmul.f32 %v713, 1.442695
      %v715 = vpow.pop %v714
      %v716 = vadd.f32 %v715, 1.0
      %v717 = vrcp.pop %v716
      %v718 = vmul.f32 %v716, %v717
      %v719 = vsub.f32 1.0, %v718
      %v720 = vmul.f32 %v717, %v719
      %v721 = vadd.f32 %v717, %v720
      %vm722 = vweird.f32 %v716
      %vm723 = vweird.f32 %v717
      %vm724 = vmor %vm722, %vm723
      %v725 = vsel %vm724, %v717, %v721
      %v726 = vand.u32 2147483647, %v716
      %vm727 = vcmp.eq.f32.partialorder %v726, 8.507059e+37
      %v728 = vand.u32 %v716, 2147483648
      %v729 = vor.u32 1.1754944e-38, %v728
      %v730 = vsel %vm727, %v729, %v725
      %v731 = vmul.f32 1.0, %v730
      %733 = vrot.lane.b32.xlu0 %v710, 96
      %v734 = vpop.permute.xlu0 %733
      %v736 = vmul.f32 %v731, %v734
      %738 = vrot.lane.b32.xlu0 %v736, 32
      %v739 = vpop.permute.xlu0 %738
      %v741 = vadd.f32 %v689, %v739
      %v742 = vtanh.pop %v741
      %v743 = vsub.f32 1.0, %v731
      %745 = vrot.lane.b32.xlu0 %v742, 112
      %v746 = vpop.permute.xlu0 %745
      %v748 = vmul.f32 %v743, %v746
      %v749 = vmul.f32 %v731, %v679
      %v750 = vadd.f32 %v748, %v749
      %752 = vrot.lane.b32.xlu0 %v750, 112
      %v753 = vpop.permute.xlu0 %752
      %s755 = scalar_lea.vmem %s272, %s687
      %756 = vst.msk [vmem:[%s755] sm:$0x3] %vm400, %v753
      %s757 = scalar_select %p324, 6, 1
      %s758 = smul.u32 %s757, 2
      %s759 = scalar_lea.vmem [#allocation2], %s758
      %v760 = vld [vmem:[%s759] sm:$0x3]
      %v761 = vsel %vm332, %v753, 0
      %763 = vmatpush.msra.mxu0 0.0
      %764 = vmatpush.msra.mxu0 0.0
      %765 = vmatpush.msra.mxu0 0.0
      %766 = vmatpush.msra.mxu0 0.0
      %767 = vmatpush.msra.mxu0 0.0
      %768 = vmatpush.msra.mxu0 0.0
      %769 = vmatpush.msra.mxu0 0.0
      %770 = vmatpush.msra.mxu0 0.0
      %771 = vmatpush.msra.mxu0 0.0
      %772 = vmatpush.msra.mxu0 0.0
      %773 = vmatpush.msra.mxu0 0.0
      %774 = vmatpush.msra.mxu0 0.0
      %775 = vmatpush.msra.mxu0 0.0
      %776 = vmatpush.msra.mxu0 0.0
      %777 = vmatpush.msra.mxu0 %v322
      %778 = vmatpush.msra.mxu0 %v321
      %779 = vmatmul.f32.gmra.mxu0 %v761
      %v780 = vpop.f32.mrf.mxu0
      %v781 = vadd.f32 %v330, %v780
      %782 = vdwg.mxu0
      %v783 = vadd.f32 %v760, %v781
      %v784 = vxor.u32 %v783, 2147483648
      %v785 = vmul.f32 %v784, 1.442695
      %v786 = vpow.pop %v785
      %v787 = vadd.f32 %v786, 1.0
      %v788 = vrcp.pop %v787
      %v789 = vmul.f32 %v787, %v788
      %v790 = vsub.f32 1.0, %v789
      %v791 = vmul.f32 %v788, %v790
      %v792 = vadd.f32 %v788, %v791
      %vm793 = vweird.f32 %v787
      %vm794 = vweird.f32 %v788
      %vm795 = vmor %vm793, %vm794
      %v796 = vsel %vm795, %v788, %v792
      %v797 = vand.u32 2147483647, %v787
      %vm798 = vcmp.eq.f32.partialorder %v797, 8.507059e+37
      %v799 = vand.u32 %v787, 2147483648
      %v800 = vor.u32 1.1754944e-38, %v799
      %v801 = vsel %vm798, %v800, %v796
      %v802 = vmul.f32 1.0, %v801
      %804 = vrot.lane.b32.xlu0 %v781, 96
      %v805 = vpop.permute.xlu0 %804
      %v807 = vmul.f32 %v802, %v805
      %809 = vrot.lane.b32.xlu0 %v807, 32
      %v810 = vpop.permute.xlu0 %809
      %v812 = vadd.f32 %v760, %v810
      %v813 = vtanh.pop %v812
      %v814 = vsub.f32 1.0, %v802
      %816 = vrot.lane.b32.xlu0 %v813, 112
      %v817 = vpop.permute.xlu0 %816
      %v819 = vmul.f32 %v814, %v817
      %v820 = vmul.f32 %v802, %v750
      %v821 = vadd.f32 %v819, %v820
      %823 = vrot.lane.b32.xlu0 %v821, 112
      %v824 = vpop.permute.xlu0 %823
      %s826 = scalar_lea.vmem %s272, %s758
      %827 = vst.msk [vmem:[%s826] sm:$0x3] %vm400, %v824
      %s828 = scalar_select %p324, 7, 0
      %s829 = smul.u32 %s828, 2
      %s830 = scalar_lea.vmem [#allocation2], %s829
      %v831 = vld [vmem:[%s830] sm:$0x3]
      %v832 = vsel %vm332, %v824, 0
      %834 = vmatpush.msra.mxu0 0.0
      %835 = vmatpush.msra.mxu0 0.0
      %836 = vmatpush.msra.mxu0 0.0
      %837 = vmatpush.msra.mxu0 0.0
      %838 = vmatpush.msra.mxu0 0.0
      %839 = vmatpush.msra.mxu0 0.0
      %840 = vmatpush.msra.mxu0 0.0
      %841 = vmatpush.msra.mxu0 0.0
      %842 = vmatpush.msra.mxu0 0.0
      %843 = vmatpush.msra.mxu0 0.0
      %844 = vmatpush.msra.mxu0 0.0
      %845 = vmatpush.msra.mxu0 0.0
      %846 = vmatpush.msra.mxu0 0.0
      %847 = vmatpush.msra.mxu0 0.0
      %848 = vmatpush.msra.mxu0 %v322
      %849 = vmatpush.msra.mxu0 %v321
      %850 = vmatmul.f32.gmra.mxu0 %v832
      %v851 = vpop.f32.mrf.mxu0
      %v852 = vadd.f32 %v330, %v851
      %853 = vdwg.mxu0
      %v854 = vadd.f32 %v831, %v852
      %v855 = vxor.u32 %v854, 2147483648
      %v856 = vmul.f32 %v855, 1.442695
      %v857 = vpow.pop %v856
      %v858 = vadd.f32 %v857, 1.0
      %v859 = vrcp.pop %v858
      %v860 = vmul.f32 %v858, %v859
      %v861 = vsub.f32 1.0, %v860
      %v862 = vmul.f32 %v859, %v861
      %v863 = vadd.f32 %v859, %v862
      %vm864 = vweird.f32 %v858
      %vm865 = vweird.f32 %v859
      %vm866 = vmor %vm864, %vm865
      %v867 = vsel %vm866, %v859, %v863
      %v868 = vand.u32 2147483647, %v858
      %vm869 = vcmp.eq.f32.partialorder %v868, 8.507059e+37
      %v870 = vand.u32 %v858, 2147483648
      %v871 = vor.u32 1.1754944e-38, %v870
      %v872 = vsel %vm869, %v871, %v867
      %v873 = vmul.f32 1.0, %v872
      %875 = vrot.lane.b32.xlu0 %v852, 96
      %v876 = vpop.permute.xlu0 %875
      %v878 = vmul.f32 %v873, %v876
      %880 = vrot.lane.b32.xlu0 %v878, 32
      %v881 = vpop.permute.xlu0 %880
      %v883 = vadd.f32 %v831, %v881
      %v884 = vtanh.pop %v883
      %v885 = vsub.f32 1.0, %v873
      %887 = vrot.lane.b32.xlu0 %v884, 112
      %v888 = vpop.permute.xlu0 %887
      %v890 = vmul.f32 %v885, %v888
      %v891 = vmul.f32 %v873, %v821
      %v892 = vadd.f32 %v890, %v891
      %894 = vrot.lane.b32.xlu0 %v892, 112
      %v895 = vpop.permute.xlu0 %894
      %s897 = scalar_lea.vmem %s272, %s829
      %898 = vst.msk [vmem:[%s897] sm:$0x3] %vm400, %v895
      %p899 = scmp.lt.s32.totalorder %s16, 1
      %s900 = scalar_select %p899, %s16, 1
      %s901 = smul.addr %s900, 2
      %s902 = smul.addr %s901, 8
      %s903 = scalar_lea.vmem %s5, %s902
      // Predicated region
      $region41: #{seld_decoder_forward.3} parent=39 // pred_check
        %p904 = pneg %p159
      $region42: #{seld_decoder_forward.3} parent=39 // pred_check_branch
        %906 = sbr.rel (%p904) target = $region44
      $region43: #{seld_decoder_forward.3} parent=39 // pred_region
        _
      $region44: #{seld_decoder_forward.3} parent=39 // pred_fallthru
        _
    $region40: #{seld_decoder_forward.3} parent=5 // pred_fallthru
      _
    %p907 = scmp.le.s32.totalorder 2, %s11
    // Predicated region
    $region45: #{seld_decoder_forward.3} parent=5 // pred_check
      %p908 = pneg %p907
    $region46: #{seld_decoder_forward.3} parent=5 // pred_check_branch
      %910 = sbr.rel (%p908) target = $region48
    $region47: #{seld_decoder_forward.3} parent=5 // pred_region
      %s911 = ssub.s32 %s11, 2
      // Predicated region
      $region49: #{seld_decoder_forward.3} parent=47 // pred_check
        %p912 = pneg %p165
      $region50: #{seld_decoder_forward.3} parent=47 // pred_check_branch
        %914 = sbr.rel (%p912) target = $region52
      $region51: #{seld_decoder_forward.3} parent=47 // pred_region
        %p915 = scmp.lt.s32.totalorder %s17, 1
        %s916 = scalar_select %p915, %s17, 1
        %s917 = smul.addr %s916, 2
        %s918 = smul.addr %s917, 8
        %s919 = scalar_lea.vmem %s5, %s918
      $region52: #{seld_decoder_forward.3} parent=47 // pred_fallthru
        _
    $region48: #{seld_decoder_forward.3} parent=5 // pred_fallthru
      _
  $region6: #{seld_decoder_forward.3} parent=0 // loop_footer
    %s15 = sadd.s32 1, %s11
  $region7: #{seld_decoder_forward.3} parent=0 // loop_footer_branch
    %10 = sbr.rel target = $region3
  $region8: #{seld_decoder_forward.3} parent=0 // loop_exit
    _

</llo_original>
